<compile_context>
chip_gen: v5e
topology: v5e:2x2
jax: 0.10.0
libtpu: 0.0.40
codegen_flags: <defaults>
</compile_context>

<pallas_src>
from functools import partial

import jax
import jax.numpy as jnp
from jax.experimental import pallas as pl
from jax.experimental.pallas import tpu as pltpu

LANES = 128   # vreg lane width; all channel dims are zero-padded to this
GUARD = 8     # aligned all-zero guard rows above/below the data region of a slab


def _postnet_fused_kernel(xp_ref, w_ref, scale_ref, bias_ref, mask_ref,
                          o_ref, xa_ref, xb_ref, *, K, L, Mp, mxu_dtype):
    """Fused L-layer Postnet, everything resident in VMEM.

    xp_ref:    (GUARD+Mp+GUARD, 128) f32   zero-padded input slab (see wrapper)
    w_ref:     (L, K*128, 128) mxu_dtype   tap-major flattened conv weights
    scale_ref: (L, 1, 128) f32             folded BatchNorm1d scale (0 in padded lanes)
    bias_ref:  (L, 1, 128) f32             folded conv-bias + BN bias (0 in padded lanes)
    mask_ref:  (Mp, 1) f32                 1.0 on real time rows, 0.0 on halo rows
    o_ref:     (Mp, 128) f32               lane-dense output slab (wrapper slices halos/lanes)
    xa_ref/xb_ref: (GUARD+Mp+GUARD, 128) mxu_dtype ping-pong activation scratch
    """
    pad = (K - 1) // 2
    C = o_ref.shape[-1]

    # One-time init: only the guard rows need zeroing -- the data region
    # [GUARD, GUARD+Mp) of each scratch slab is fully rewritten by every layer.
    zg = jnp.zeros((GUARD, C), mxu_dtype)
    for buf in (xa_ref, xb_ref):
        buf[pl.ds(0, GUARD), :] = zg
        buf[pl.ds(GUARD + Mp, GUARD), :] = zg

    # Hoisted row-validity mask (broadcast once; JAX does not CSE broadcasts).
    row_mask = jnp.broadcast_to(mask_ref[...], (Mp, C))

    bufs = (xa_ref, xb_ref)
    src = xp_ref                               # layer-0 source: no initial copy
    for l in range(L):                         # static unroll over layers
        # Cast ONCE, then build the K sublane-shifted tap slices on the narrow dtype.
        x16 = src[...].astype(mxu_dtype)       # (GUARD+Mp+GUARD, 128)
        # Tap k of output slab row r reads input slab row r + k - pad, so the
        # matmul output lands directly in slab coordinates (aligned store below).
        # TODO(synk): on v5e, benchmark K depth-128 accumulating matmuls instead of
        # this single (K*128)-deep im2col (v5e's MXU native depth is 128).
        xcol = jnp.concatenate(
            [x16[GUARD - pad + k: GUARD - pad + k + Mp, :] for k in range(K)],
            axis=-1)                                           # (Mp, K*128)
        y = jnp.dot(xcol, w_ref[l], preferred_element_type=jnp.float32)
        y = y * scale_ref[l] + bias_ref[l]     # folded Conv1d bias + BatchNorm1d (eval)
        if l < L - 1:
            y = jnp.tanh(y)
            # TODO(synk): F.dropout(p=0.5) is identity in eval; training-mode
            # dropout (random mask + 1/(1-p) scaling) is not implemented.
            dst = bufs[l % 2]
            # Single aligned full-lane-width store; the mask multiply re-zeroes the
            # per-block halo rows so the next layer's conv sees clean zero padding.
            dst[pl.ds(GUARD, Mp), :] = (y * row_mask).astype(mxu_dtype)
            src = dst
        else:
            # Halo rows hold don't-care (finite) values; the wrapper slices them off.
            o_ref[...] = y


def postnet_forward(x_bct, params, *, mxu_dtype=jnp.bfloat16):
    """x_bct: (B, n_mel, T) NCW like PyTorch.  Returns (B, n_mel, T) f32.

    Set mxu_dtype=jnp.float32 for bit-closer parity with the f32 PyTorch reference
    (accumulation and the BN/tanh epilogue are always f32).
    """
    B, c0, T = x_bct.shape
    L = len(params)
    K = params[0][0].shape[0]
    assert K % 2 == 1, "expects odd kernel_size (symmetric 'same' padding)"
    pad = (K - 1) // 2
    C = LANES
    Tp8 = -(-(T + K - 1) // 8) * 8          # per-batch block rows, sublane aligned
    Mp = B * Tp8
    Mtot = GUARD + Mp + GUARD
    c_last = params[-1][0].shape[2]
    assert c0 <= C and all(w.shape[1] <= C and w.shape[2] <= C for (w, _, _) in params)

    # NCW -> NWC, zero-pad channels to 128 lanes, pad time into aligned blocks:
    # each batch block = [pad zeros | T data rows | (Tp8-T-pad) zeros]; plus GUARD
    # all-zero rows at the top and bottom of the whole slab.
    x_btc = jnp.transpose(x_bct, (0, 2, 1)).astype(jnp.float32)        # (B, T, c0)
    xp = jnp.pad(x_btc, ((0, 0), (pad, Tp8 - T - pad), (0, C - c0)))   # (B, Tp8, 128)
    xp = jnp.pad(xp.reshape(Mp, C), ((GUARD, GUARD), (0, 0)))          # (Mtot, 128)

    # Row-validity mask over the data region (1 on real time rows, 0 on halo rows).
    j = jnp.arange(Tp8)
    mask = jnp.tile(((j >= pad) & (j < pad + T)).astype(jnp.float32), B).reshape(Mp, 1)

    # Stack per-layer params, zero-padded to 128x128 channels, tap-major rows.
    # TODO(synk): if deployment channel counts really are <=32 (vs the paper's 512),
    # pack the contraction densely (K*c_in -> pad to 256) instead of K*128.
    w_list, s_list, b_list = [], [], []
    for (w_kio, scale, bias) in params:
        _, ci, co = w_kio.shape
        wp = jnp.zeros((K, C, C), jnp.float32).at[:, :ci, :co].set(w_kio)
        w_list.append(wp.reshape(K * C, C).astype(mxu_dtype))          # tap-major rows
        s_list.append(jnp.zeros((C,), jnp.float32).at[:co].set(scale))
        b_list.append(jnp.zeros((C,), jnp.float32).at[:co].set(bias))
    w_all = jnp.stack(w_list)                       # (L, K*128, 128)
    s_all = jnp.stack(s_list).reshape(L, 1, C)
    b_all = jnp.stack(b_list).reshape(L, 1, C)

    kernel = partial(_postnet_fused_kernel, K=K, L=L, Mp=Mp, mxu_dtype=mxu_dtype)
    out = pl.pallas_call(
        kernel,
        out_shape=jax.ShapeDtypeStruct((Mp, C), jnp.float32),
        grid_spec=pltpu.PrefetchScalarGridSpec(
            num_scalar_prefetch=0,
            grid=(1,),
            in_specs=[
                pl.BlockSpec((Mtot, C), lambda i: (0, 0)),
                pl.BlockSpec((L, K * C, C), lambda i: (0, 0, 0)),
                pl.BlockSpec((L, 1, C), lambda i: (0, 0, 0)),
                pl.BlockSpec((L, 1, C), lambda i: (0, 0, 0)),
                pl.BlockSpec((Mp, 1), lambda i: (0, 0)),
            ],
            out_specs=pl.BlockSpec((Mp, C), lambda i: (0, 0)),
            scratch_shapes=[pltpu.VMEM((Mtot, C), mxu_dtype),
                            pltpu.VMEM((Mtot, C), mxu_dtype)],
        ),
        compiler_params=pltpu.CompilerParams(
            dimension_semantics=("arbitrary",)),
        # TODO(synk): production sizes (C=512, long T): add a "parallel" grid axis
        # over T-tiles (uses both v7x TensorCores), keep weights/scale/bias resident
        # via constant index_maps, fetch the K-1 time halo via pl.Element offsets,
        # and size tiles against v7x's 64 MiB VMEM with an explicit
        # vmem_limit_bytes.  At these toy sizes one fully-resident block is optimal.
    )(xp, w_all, s_all, b_all, mask)

    out = out.reshape(B, Tp8, C)[:, pad:pad + T, :c_last]   # drop halo rows + padded lanes
    return jnp.transpose(out, (0, 2, 1))                    # -> (B, n_mel, T)


def postnet_reference(x_bct, params):
    """Pure-JAX reference (lax.conv) of the same eval-mode forward."""
    x = x_bct.astype(jnp.float32)
    L = len(params)
    for i, (w_kio, scale, bias) in enumerate(params):
        K = w_kio.shape[0]
        pad = (K - 1) // 2
        w_oik = jnp.transpose(w_kio, (2, 1, 0))              # (C_out, C_in, K)
        y = jax.lax.conv_general_dilated(
            x, w_oik, window_strides=(1,), padding=[(pad, pad)],
            dimension_numbers=("NCW", "OIW", "NCW"))
        y = y * scale[None, :, None] + bias[None, :, None]
        x = jnp.tanh(y) if i < L - 1 else y
    return x


def make_postnet_params(key, n_mel, emb_dim, kernel_size, n_convs):
    """Deterministic synthetic params matching the PyTorch module's shapes."""
    layers = []
    dims = [n_mel] + [emb_dim] * (n_convs - 1) + [n_mel]
    for i in range(n_convs):
        c_in, c_out = dims[i], dims[i + 1]
        key, k1, k2, k3, k4, k5, k6 = jax.random.split(key, 7)
        # Conv1d weight (PyTorch layout (C_out, C_in, K)) -> kernel layout (K, C_in, C_out)
        w = 0.1 * jax.random.normal(k1, (c_out, c_in, kernel_size), jnp.float32)
        b_conv = 0.1 * jax.random.normal(k2, (c_out,), jnp.float32)
        # BatchNorm1d (eval-mode running stats), deterministic non-trivial values
        gamma = 1.0 + 0.1 * jax.random.normal(k3, (c_out,), jnp.float32)
        beta = 0.1 * jax.random.normal(k4, (c_out,), jnp.float32)
        run_mean = 0.1 * jax.random.normal(k5, (c_out,), jnp.float32)
        run_var = 1.0 + 0.1 * jax.random.uniform(k6, (c_out,), jnp.float32)
        eps = 1e-5
        scale = gamma / jnp.sqrt(run_var + eps)
        bias = (b_conv - run_mean) * scale + beta
        w_kio = jnp.transpose(w, (2, 1, 0))          # (K, C_in, C_out)
        layers.append((w_kio, scale, bias))
    return layers


if __name__ == "__main__":
    # Small hparams consistent with the module:
    #   n_mel_channels=16, postnet_embedding_dim=32,
    #   postnet_kernel_size=5, postnet_n_convolutions=5
    B, N_MEL, T = 2, 16, 24
    EMB, KSIZE, NCONV = 32, 5, 5

    key = jax.random.PRNGKey(0)
    key, kx = jax.random.split(key)
    x = jax.random.normal(kx, (B, N_MEL, T), jnp.float32)      # NCW like PyTorch

    params = make_postnet_params(key, N_MEL, EMB, KSIZE, NCONV)

    # Correctness check against a pure-JAX reference (f32 MXU path for parity).
    out_f32 = jax.jit(partial(postnet_forward, mxu_dtype=jnp.float32))(x, params)
    out_f32 = jax.block_until_ready(out_f32)
    ref = postnet_reference(x, params)
    assert out_f32.shape == (B, N_MEL, T), out_f32.shape
    assert jnp.allclose(out_f32, ref, atol=2e-3, rtol=2e-3), \
        float(jnp.max(jnp.abs(out_f32 - ref)))

    # Default fast path (bf16 MXU inputs, f32 accumulation).
    out = jax.jit(postnet_forward)(x, params)
    out = jax.block_until_ready(out)
    assert out.shape == (B, N_MEL, T), out.shape
    assert jnp.all(jnp.isfinite(out))
    print("KERNEL_OK")
</pallas_src>

<mosaic_0001>
module attributes {stable_mosaic.version = 11 : i64} {
  func.func @_postnet_fused_kernel(%arg0: i32, %arg1: memref<80x128xf32, #tpu.memory_space<vmem>>, %arg2: memref<5x640x128xf32, #tpu.memory_space<vmem>>, %arg3: memref<5x1x128xf32, #tpu.memory_space<vmem>>, %arg4: memref<5x1x128xf32, #tpu.memory_space<vmem>>, %arg5: memref<64x1xf32, #tpu.memory_space<vmem>>, %arg6: memref<64x128xf32, #tpu.memory_space<vmem>>, %arg7: memref<80x128xf32, #tpu.memory_space<vmem>>, %arg8: memref<80x128xf32, #tpu.memory_space<vmem>>) attributes {dimension_semantics = [#tpu.dimension_semantics<arbitrary>], iteration_bounds = array<i64: 1>, scalar_prefetch = 0 : i64, scratch_operands = 2 : i64, tpu.core_type = #tpu.core_type<tc>, window_params = [{pipeline_mode = #tpu.pipeline_mode<synchronous>, transform_indices = @transform_0, window_bounds = array<i64: 80, 128>}, {pipeline_mode = #tpu.pipeline_mode<synchronous>, transform_indices = @transform_1, window_bounds = array<i64: 5, 640, 128>}, {pipeline_mode = #tpu.pipeline_mode<synchronous>, transform_indices = @transform_2, window_bounds = array<i64: 5, 1, 128>}, {pipeline_mode = #tpu.pipeline_mode<synchronous>, transform_indices = @transform_3, window_bounds = array<i64: 5, 1, 128>}, {pipeline_mode = #tpu.pipeline_mode<synchronous>, transform_indices = @transform_4, window_bounds = array<i64: 64, 1>}, {pipeline_mode = #tpu.pipeline_mode<synchronous>, transform_indices = @transform_5, window_bounds = array<i64: 64, 128>}]} {
    %cst = arith.constant 0.000000e+00 : f32
    %0 = vector.broadcast %cst : f32 to vector<8x128xf32>
    %c0 = arith.constant 0 : index
    %c0_0 = arith.constant 0 : index
    %1 = vector.load %arg7[%c0, %c0_0] : memref<80x128xf32, #tpu.memory_space<vmem>>, vector<8x128xf32>
    tpu.vector_store %arg7[%c0, %c0_0], %0 {strides = array<i32>} : memref<80x128xf32, #tpu.memory_space<vmem>>, vector<8x128xf32>,
    %c72 = arith.constant 72 : index
    %c0_1 = arith.constant 0 : index
    %2 = vector.load %arg7[%c72, %c0_1] : memref<80x128xf32, #tpu.memory_space<vmem>>, vector<8x128xf32>
    tpu.vector_store %arg7[%c72, %c0_1], %0 {strides = array<i32>} : memref<80x128xf32, #tpu.memory_space<vmem>>, vector<8x128xf32>,
    %c0_2 = arith.constant 0 : index
    %c0_3 = arith.constant 0 : index
    %3 = vector.load %arg8[%c0_2, %c0_3] : memref<80x128xf32, #tpu.memory_space<vmem>>, vector<8x128xf32>
    tpu.vector_store %arg8[%c0_2, %c0_3], %0 {strides = array<i32>} : memref<80x128xf32, #tpu.memory_space<vmem>>, vector<8x128xf32>,
    %c72_4 = arith.constant 72 : index
    %c0_5 = arith.constant 0 : index
    %4 = vector.load %arg8[%c72_4, %c0_5] : memref<80x128xf32, #tpu.memory_space<vmem>>, vector<8x128xf32>
    tpu.vector_store %arg8[%c72_4, %c0_5], %0 {strides = array<i32>} : memref<80x128xf32, #tpu.memory_space<vmem>>, vector<8x128xf32>,
    %c0_6 = arith.constant 0 : index
    %c0_7 = arith.constant 0 : index
    %5 = vector.load %arg5[%c0_6, %c0_7] : memref<64x1xf32, #tpu.memory_space<vmem>>, vector<64x1xf32>
    %6 = vector.shape_cast %5 : vector<64x1xf32> to vector<64x1xf32>
    %7 = vector.broadcast %6 : vector<64x1xf32> to vector<64x128xf32>
    %c0_8 = arith.constant 0 : index
    %c0_9 = arith.constant 0 : index
    %8 = vector.load %arg1[%c0_8, %c0_9] : memref<80x128xf32, #tpu.memory_space<vmem>>, vector<80x128xf32>
    %9 = vector.extract_strided_slice %8 {offsets = [6, 0], sizes = [64, 128], strides = [1, 1]} : vector<80x128xf32> to vector<64x128xf32>
    %10 = vector.extract_strided_slice %8 {offsets = [7, 0], sizes = [64, 128], strides = [1, 1]} : vector<80x128xf32> to vector<64x128xf32>
    %11 = vector.extract_strided_slice %8 {offsets = [8, 0], sizes = [64, 128], strides = [1, 1]} : vector<80x128xf32> to vector<64x128xf32>
    %12 = vector.extract_strided_slice %8 {offsets = [9, 0], sizes = [64, 128], strides = [1, 1]} : vector<80x128xf32> to vector<64x128xf32>
    %13 = vector.extract_strided_slice %8 {offsets = [10, 0], sizes = [64, 128], strides = [1, 1]} : vector<80x128xf32> to vector<64x128xf32>
    %14 = tpu.concatenate %9, %10, %11, %12, %13 in 1 : vector<64x128xf32>, vector<64x128xf32>, vector<64x128xf32>, vector<64x128xf32>, vector<64x128xf32> -> vector<64x640xf32>
    %c0_10 = arith.constant 0 : index
    %c0_11 = arith.constant 0 : index
    %c0_12 = arith.constant 0 : index
    %15 = vector.load %arg2[%c0_10, %c0_11, %c0_12] : memref<5x640x128xf32, #tpu.memory_space<vmem>>, vector<1x640x128xf32>
    %16 = vector.shape_cast %15 : vector<1x640x128xf32> to vector<640x128xf32>
    %cst_13 = arith.constant dense<0.000000e+00> : vector<64x128xf32>
    %17 = tpu.matmul %14, %16, %cst_13 {dimension_numbers = #tpu.dot_dimension_numbers<[1], [0], [0], [1], [0, 0, 1, 1], [], []>} : vector<64x640xf32>, vector<640x128xf32>, vector<64x128xf32> -> vector<64x128xf32>
    %c0_14 = arith.constant 0 : index
    %c0_15 = arith.constant 0 : index
    %c0_16 = arith.constant 0 : index
    %18 = vector.load %arg3[%c0_14, %c0_15, %c0_16] : memref<5x1x128xf32, #tpu.memory_space<vmem>>, vector<1x1x128xf32>
    %19 = vector.shape_cast %18 : vector<1x1x128xf32> to vector<1x128xf32>
    %20 = vector.broadcast %19 : vector<1x128xf32> to vector<64x128xf32>
    %21 = arith.mulf %17, %20 : vector<64x128xf32>
    %c0_17 = arith.constant 0 : index
    %c0_18 = arith.constant 0 : index
    %c0_19 = arith.constant 0 : index
    %22 = vector.load %arg4[%c0_17, %c0_18, %c0_19] : memref<5x1x128xf32, #tpu.memory_space<vmem>>, vector<1x1x128xf32>
    %23 = vector.shape_cast %22 : vector<1x1x128xf32> to vector<1x128xf32>
    %24 = vector.broadcast %23 : vector<1x128xf32> to vector<64x128xf32>
    %25 = arith.addf %21, %24 : vector<64x128xf32>
    %26 = math.tanh %25 : vector<64x128xf32>
    %27 = arith.mulf %26, %7 : vector<64x128xf32>
    %c8 = arith.constant 8 : index
    %c0_20 = arith.constant 0 : index
    %28 = vector.load %arg7[%c8, %c0_20] : memref<80x128xf32, #tpu.memory_space<vmem>>, vector<64x128xf32>
    tpu.vector_store %arg7[%c8, %c0_20], %27 {strides = array<i32>} : memref<80x128xf32, #tpu.memory_space<vmem>>, vector<64x128xf32>,
    %c0_21 = arith.constant 0 : index
    %c0_22 = arith.constant 0 : index
    %29 = vector.load %arg7[%c0_21, %c0_22] : memref<80x128xf32, #tpu.memory_space<vmem>>, vector<80x128xf32>
    %30 = vector.extract_strided_slice %29 {offsets = [6, 0], sizes = [64, 128], strides = [1, 1]} : vector<80x128xf32> to vector<64x128xf32>
    %31 = vector.extract_strided_slice %29 {offsets = [7, 0], sizes = [64, 128], strides = [1, 1]} : vector<80x128xf32> to vector<64x128xf32>
    %32 = vector.extract_strided_slice %29 {offsets = [8, 0], sizes = [64, 128], strides = [1, 1]} : vector<80x128xf32> to vector<64x128xf32>
    %33 = vector.extract_strided_slice %29 {offsets = [9, 0], sizes = [64, 128], strides = [1, 1]} : vector<80x128xf32> to vector<64x128xf32>
    %34 = vector.extract_strided_slice %29 {offsets = [10, 0], sizes = [64, 128], strides = [1, 1]} : vector<80x128xf32> to vector<64x128xf32>
    %35 = tpu.concatenate %30, %31, %32, %33, %34 in 1 : vector<64x128xf32>, vector<64x128xf32>, vector<64x128xf32>, vector<64x128xf32>, vector<64x128xf32> -> vector<64x640xf32>
    %c1 = arith.constant 1 : index
    %c0_23 = arith.constant 0 : index
    %c0_24 = arith.constant 0 : index
    %36 = vector.load %arg2[%c1, %c0_23, %c0_24] : memref<5x640x128xf32, #tpu.memory_space<vmem>>, vector<1x640x128xf32>
    %37 = vector.shape_cast %36 : vector<1x640x128xf32> to vector<640x128xf32>
    %cst_25 = arith.constant dense<0.000000e+00> : vector<64x128xf32>
    %38 = tpu.matmul %35, %37, %cst_25 {dimension_numbers = #tpu.dot_dimension_numbers<[1], [0], [0], [1], [0, 0, 1, 1], [], []>} : vector<64x640xf32>, vector<640x128xf32>, vector<64x128xf32> -> vector<64x128xf32>
    %c1_26 = arith.constant 1 : index
    %c0_27 = arith.constant 0 : index
    %c0_28 = arith.constant 0 : index
    %39 = vector.load %arg3[%c1_26, %c0_27, %c0_28] : memref<5x1x128xf32, #tpu.memory_space<vmem>>, vector<1x1x128xf32>
    %40 = vector.shape_cast %39 : vector<1x1x128xf32> to vector<1x128xf32>
    %41 = vector.broadcast %40 : vector<1x128xf32> to vector<64x128xf32>
    %42 = arith.mulf %38, %41 : vector<64x128xf32>
    %c1_29 = arith.constant 1 : index
    %c0_30 = arith.constant 0 : index
    %c0_31 = arith.constant 0 : index
    %43 = vector.load %arg4[%c1_29, %c0_30, %c0_31] : memref<5x1x128xf32, #tpu.memory_space<vmem>>, vector<1x1x128xf32>
    %44 = vector.shape_cast %43 : vector<1x1x128xf32> to vector<1x128xf32>
    %45 = vector.broadcast %44 : vector<1x128xf32> to vector<64x128xf32>
    %46 = arith.addf %42, %45 : vector<64x128xf32>
    %47 = math.tanh %46 : vector<64x128xf32>
    %48 = arith.mulf %47, %7 : vector<64x128xf32>
    %c8_32 = arith.constant 8 : index
    %c0_33 = arith.constant 0 : index
    %49 = vector.load %arg8[%c8_32, %c0_33] : memref<80x128xf32, #tpu.memory_space<vmem>>, vector<64x128xf32>
    tpu.vector_store %arg8[%c8_32, %c0_33], %48 {strides = array<i32>} : memref<80x128xf32, #tpu.memory_space<vmem>>, vector<64x128xf32>,
    %c0_34 = arith.constant 0 : index
    %c0_35 = arith.constant 0 : index
    %50 = vector.load %arg8[%c0_34, %c0_35] : memref<80x128xf32, #tpu.memory_space<vmem>>, vector<80x128xf32>
    %51 = vector.extract_strided_slice %50 {offsets = [6, 0], sizes = [64, 128], strides = [1, 1]} : vector<80x128xf32> to vector<64x128xf32>
    %52 = vector.extract_strided_slice %50 {offsets = [7, 0], sizes = [64, 128], strides = [1, 1]} : vector<80x128xf32> to vector<64x128xf32>
    %53 = vector.extract_strided_slice %50 {offsets = [8, 0], sizes = [64, 128], strides = [1, 1]} : vector<80x128xf32> to vector<64x128xf32>
    %54 = vector.extract_strided_slice %50 {offsets = [9, 0], sizes = [64, 128], strides = [1, 1]} : vector<80x128xf32> to vector<64x128xf32>
    %55 = vector.extract_strided_slice %50 {offsets = [10, 0], sizes = [64, 128], strides = [1, 1]} : vector<80x128xf32> to vector<64x128xf32>
    %56 = tpu.concatenate %51, %52, %53, %54, %55 in 1 : vector<64x128xf32>, vector<64x128xf32>, vector<64x128xf32>, vector<64x128xf32>, vector<64x128xf32> -> vector<64x640xf32>
    %c2 = arith.constant 2 : index
    %c0_36 = arith.constant 0 : index
    %c0_37 = arith.constant 0 : index
    %57 = vector.load %arg2[%c2, %c0_36, %c0_37] : memref<5x640x128xf32, #tpu.memory_space<vmem>>, vector<1x640x128xf32>
    %58 = vector.shape_cast %57 : vector<1x640x128xf32> to vector<640x128xf32>
    %cst_38 = arith.constant dense<0.000000e+00> : vector<64x128xf32>
    %59 = tpu.matmul %56, %58, %cst_38 {dimension_numbers = #tpu.dot_dimension_numbers<[1], [0], [0], [1], [0, 0, 1, 1], [], []>} : vector<64x640xf32>, vector<640x128xf32>, vector<64x128xf32> -> vector<64x128xf32>
    %c2_39 = arith.constant 2 : index
    %c0_40 = arith.constant 0 : index
    %c0_41 = arith.constant 0 : index
    %60 = vector.load %arg3[%c2_39, %c0_40, %c0_41] : memref<5x1x128xf32, #tpu.memory_space<vmem>>, vector<1x1x128xf32>
    %61 = vector.shape_cast %60 : vector<1x1x128xf32> to vector<1x128xf32>
    %62 = vector.broadcast %61 : vector<1x128xf32> to vector<64x128xf32>
    %63 = arith.mulf %59, %62 : vector<64x128xf32>
    %c2_42 = arith.constant 2 : index
    %c0_43 = arith.constant 0 : index
    %c0_44 = arith.constant 0 : index
    %64 = vector.load %arg4[%c2_42, %c0_43, %c0_44] : memref<5x1x128xf32, #tpu.memory_space<vmem>>, vector<1x1x128xf32>
    %65 = vector.shape_cast %64 : vector<1x1x128xf32> to vector<1x128xf32>
    %66 = vector.broadcast %65 : vector<1x128xf32> to vector<64x128xf32>
    %67 = arith.addf %63, %66 : vector<64x128xf32>
    %68 = math.tanh %67 : vector<64x128xf32>
    %69 = arith.mulf %68, %7 : vector<64x128xf32>
    %c8_45 = arith.constant 8 : index
    %c0_46 = arith.constant 0 : index
    %70 = vector.load %arg7[%c8_45, %c0_46] : memref<80x128xf32, #tpu.memory_space<vmem>>, vector<64x128xf32>
    tpu.vector_store %arg7[%c8_45, %c0_46], %69 {strides = array<i32>} : memref<80x128xf32, #tpu.memory_space<vmem>>, vector<64x128xf32>,
    %c0_47 = arith.constant 0 : index
    %c0_48 = arith.constant 0 : index
    %71 = vector.load %arg7[%c0_47, %c0_48] : memref<80x128xf32, #tpu.memory_space<vmem>>, vector<80x128xf32>
    %72 = vector.extract_strided_slice %71 {offsets = [6, 0], sizes = [64, 128], strides = [1, 1]} : vector<80x128xf32> to vector<64x128xf32>
    %73 = vector.extract_strided_slice %71 {offsets = [7, 0], sizes = [64, 128], strides = [1, 1]} : vector<80x128xf32> to vector<64x128xf32>
    %74 = vector.extract_strided_slice %71 {offsets = [8, 0], sizes = [64, 128], strides = [1, 1]} : vector<80x128xf32> to vector<64x128xf32>
    %75 = vector.extract_strided_slice %71 {offsets = [9, 0], sizes = [64, 128], strides = [1, 1]} : vector<80x128xf32> to vector<64x128xf32>
    %76 = vector.extract_strided_slice %71 {offsets = [10, 0], sizes = [64, 128], strides = [1, 1]} : vector<80x128xf32> to vector<64x128xf32>
    %77 = tpu.concatenate %72, %73, %74, %75, %76 in 1 : vector<64x128xf32>, vector<64x128xf32>, vector<64x128xf32>, vector<64x128xf32>, vector<64x128xf32> -> vector<64x640xf32>
    %c3 = arith.constant 3 : index
    %c0_49 = arith.constant 0 : index
    %c0_50 = arith.constant 0 : index
    %78 = vector.load %arg2[%c3, %c0_49, %c0_50] : memref<5x640x128xf32, #tpu.memory_space<vmem>>, vector<1x640x128xf32>
    %79 = vector.shape_cast %78 : vector<1x640x128xf32> to vector<640x128xf32>
    %cst_51 = arith.constant dense<0.000000e+00> : vector<64x128xf32>
    %80 = tpu.matmul %77, %79, %cst_51 {dimension_numbers = #tpu.dot_dimension_numbers<[1], [0], [0], [1], [0, 0, 1, 1], [], []>} : vector<64x640xf32>, vector<640x128xf32>, vector<64x128xf32> -> vector<64x128xf32>
    %c3_52 = arith.constant 3 : index
    %c0_53 = arith.constant 0 : index
    %c0_54 = arith.constant 0 : index
    %81 = vector.load %arg3[%c3_52, %c0_53, %c0_54] : memref<5x1x128xf32, #tpu.memory_space<vmem>>, vector<1x1x128xf32>
    %82 = vector.shape_cast %81 : vector<1x1x128xf32> to vector<1x128xf32>
    %83 = vector.broadcast %82 : vector<1x128xf32> to vector<64x128xf32>
    %84 = arith.mulf %80, %83 : vector<64x128xf32>
    %c3_55 = arith.constant 3 : index
    %c0_56 = arith.constant 0 : index
    %c0_57 = arith.constant 0 : index
    %85 = vector.load %arg4[%c3_55, %c0_56, %c0_57] : memref<5x1x128xf32, #tpu.memory_space<vmem>>, vector<1x1x128xf32>
    %86 = vector.shape_cast %85 : vector<1x1x128xf32> to vector<1x128xf32>
    %87 = vector.broadcast %86 : vector<1x128xf32> to vector<64x128xf32>
    %88 = arith.addf %84, %87 : vector<64x128xf32>
    %89 = math.tanh %88 : vector<64x128xf32>
    %90 = arith.mulf %89, %7 : vector<64x128xf32>
    %c8_58 = arith.constant 8 : index
    %c0_59 = arith.constant 0 : index
    %91 = vector.load %arg8[%c8_58, %c0_59] : memref<80x128xf32, #tpu.memory_space<vmem>>, vector<64x128xf32>
    tpu.vector_store %arg8[%c8_58, %c0_59], %90 {strides = array<i32>} : memref<80x128xf32, #tpu.memory_space<vmem>>, vector<64x128xf32>,
    %c0_60 = arith.constant 0 : index
    %c0_61 = arith.constant 0 : index
    %92 = vector.load %arg8[%c0_60, %c0_61] : memref<80x128xf32, #tpu.memory_space<vmem>>, vector<80x128xf32>
    %93 = vector.extract_strided_slice %92 {offsets = [6, 0], sizes = [64, 128], strides = [1, 1]} : vector<80x128xf32> to vector<64x128xf32>
    %94 = vector.extract_strided_slice %92 {offsets = [7, 0], sizes = [64, 128], strides = [1, 1]} : vector<80x128xf32> to vector<64x128xf32>
    %95 = vector.extract_strided_slice %92 {offsets = [8, 0], sizes = [64, 128], strides = [1, 1]} : vector<80x128xf32> to vector<64x128xf32>
    %96 = vector.extract_strided_slice %92 {offsets = [9, 0], sizes = [64, 128], strides = [1, 1]} : vector<80x128xf32> to vector<64x128xf32>
    %97 = vector.extract_strided_slice %92 {offsets = [10, 0], sizes = [64, 128], strides = [1, 1]} : vector<80x128xf32> to vector<64x128xf32>
    %98 = tpu.concatenate %93, %94, %95, %96, %97 in 1 : vector<64x128xf32>, vector<64x128xf32>, vector<64x128xf32>, vector<64x128xf32>, vector<64x128xf32> -> vector<64x640xf32>
    %c4 = arith.constant 4 : index
    %c0_62 = arith.constant 0 : index
    %c0_63 = arith.constant 0 : index
    %99 = vector.load %arg2[%c4, %c0_62, %c0_63] : memref<5x640x128xf32, #tpu.memory_space<vmem>>, vector<1x640x128xf32>
    %100 = vector.shape_cast %99 : vector<1x640x128xf32> to vector<640x128xf32>
    %cst_64 = arith.constant dense<0.000000e+00> : vector<64x128xf32>
    %101 = tpu.matmul %98, %100, %cst_64 {dimension_numbers = #tpu.dot_dimension_numbers<[1], [0], [0], [1], [0, 0, 1, 1], [], []>} : vector<64x640xf32>, vector<640x128xf32>, vector<64x128xf32> -> vector<64x128xf32>
    %c4_65 = arith.constant 4 : index
    %c0_66 = arith.constant 0 : index
    %c0_67 = arith.constant 0 : index
    %102 = vector.load %arg3[%c4_65, %c0_66, %c0_67] : memref<5x1x128xf32, #tpu.memory_space<vmem>>, vector<1x1x128xf32>
    %103 = vector.shape_cast %102 : vector<1x1x128xf32> to vector<1x128xf32>
    %104 = vector.broadcast %103 : vector<1x128xf32> to vector<64x128xf32>
    %105 = arith.mulf %101, %104 : vector<64x128xf32>
    %c4_68 = arith.constant 4 : index
    %c0_69 = arith.constant 0 : index
    %c0_70 = arith.constant 0 : index
    %106 = vector.load %arg4[%c4_68, %c0_69, %c0_70] : memref<5x1x128xf32, #tpu.memory_space<vmem>>, vector<1x1x128xf32>
    %107 = vector.shape_cast %106 : vector<1x1x128xf32> to vector<1x128xf32>
    %108 = vector.broadcast %107 : vector<1x128xf32> to vector<64x128xf32>
    %109 = arith.addf %105, %108 : vector<64x128xf32>
    %c0_71 = arith.constant 0 : index
    %c0_72 = arith.constant 0 : index
    %110 = vector.load %arg6[%c0_71, %c0_72] : memref<64x128xf32, #tpu.memory_space<vmem>>, vector<64x128xf32>
    tpu.vector_store %arg6[%c0_71, %c0_72], %109 {strides = array<i32>} : memref<64x128xf32, #tpu.memory_space<vmem>>, vector<64x128xf32>,
    return
  }
  func.func @transform_0(%arg0: i32) -> (i32, i32) {
    %c0_i32 = arith.constant 0 : i32
    %c0_i32_0 = arith.constant 0 : i32
    %c0_i32_1 = arith.constant 0 : i32
    return %c0_i32, %c0_i32_0 : i32, i32
  }
  func.func @transform_1(%arg0: i32) -> (i32, i32, i32) {
    %c0_i32 = arith.constant 0 : i32
    %c0_i32_0 = arith.constant 0 : i32
    %c0_i32_1 = arith.constant 0 : i32
    %c0_i32_2 = arith.constant 0 : i32
    return %c0_i32, %c0_i32_0, %c0_i32_1 : i32, i32, i32
  }
  func.func @transform_2(%arg0: i32) -> (i32, i32, i32) {
    %c0_i32 = arith.constant 0 : i32
    %c0_i32_0 = arith.constant 0 : i32
    %c0_i32_1 = arith.constant 0 : i32
    %c0_i32_2 = arith.constant 0 : i32
    return %c0_i32, %c0_i32_0, %c0_i32_1 : i32, i32, i32
  }
  func.func @transform_3(%arg0: i32) -> (i32, i32, i32) {
    %c0_i32 = arith.constant 0 : i32
    %c0_i32_0 = arith.constant 0 : i32
    %c0_i32_1 = arith.constant 0 : i32
    %c0_i32_2 = arith.constant 0 : i32
    return %c0_i32, %c0_i32_0, %c0_i32_1 : i32, i32, i32
  }
  func.func @transform_4(%arg0: i32) -> (i32, i32) {
    %c0_i32 = arith.constant 0 : i32
    %c0_i32_0 = arith.constant 0 : i32
    %c0_i32_1 = arith.constant 0 : i32
    return %c0_i32, %c0_i32_0 : i32, i32
  }
  func.func @transform_5(%arg0: i32) -> (i32, i32) {
    %c0_i32 = arith.constant 0 : i32
    %c0_i32_0 = arith.constant 0 : i32
    %c0_i32_1 = arith.constant 0 : i32
    return %c0_i32, %c0_i32_0 : i32, i32
  }
}

</mosaic_0001>

<llo_original>
// kernel: tile.8
$region0: #{tile.8}
  #allocation0 [shape = 's32[1]{0}', space=sflag, size = 0x4, scoped, tag = 'scoped memory for tile.8']
  %s0 = inlined_call_operand.vmem [shape: f32[32], index: 0, kind: input, shape index: {}]
  %s1 = inlined_call_operand.vmem [shape: f32[2,32], index: 1, kind: output, shape index: {}]
  // Predicated region
  $region2: #{tile.8} parent=0 // pred_check
    _
  $region3: #{tile.8} parent=0 // pred_check_branch
    %3 = sbr.rel (0) target = $region5
  $region4: #{tile.8} parent=0 // pred_region
    _
  $region5: #{tile.8} parent=0 // pred_fallthru
    _
  %v4 = vld [vmem:[%s0] ss:$0 sm:$0xff]
  %5 = vst [vmem:[%s1] sm:$0x3] %v4

// kernel: tile.0
$region0: #{tile.0}
  %s0 = inlined_call_operand.vmem [shape: f32[2,32], index: 0, kind: input, shape index: {}]
  %s1 = inlined_call_operand.vmem [shape: f32[64,1], index: 1, kind: output, shape index: {}]
  $region1: #{tile.0} parent=0
    #allocation0 [shape = 'u8[4096]{0}', space=vmem, size = 0x1000, scoped, tag = 'scoped mem for input reshape']
    %s3 = ssub.s32 4, 1
    %v4 = vld [vmem:[%s0] sm:%s3]
    %5 = vst [vmem:[#allocation0] sm:%s3] %v4
    %v6 = vld [vmem:[#allocation0] sm:$0x3]
    %vm7 = vcmask 7168
    %8 = vst.msk [vmem:[%s1] sm:$0x1] %vm7, %v6
    %s9 = scalar_lea.vmem %s1, 31
    %10 = vst.msk [vmem:[%s9] sm:$0x2] %vm7, %v6
    %v11 = vld [vmem:[#allocation0] sm:$0x3]
    %12 = vrot.lane.b32.xlu0 %v11, 127
    %v13 = vpop.permute.xlu0 %12
    %vm14 = vcmask 7168
    %s15 = scalar_lea.vmem %s1, 1
    %16 = vst.msk [vmem:[%s15] sm:$0x1] %vm14, %v13
    %s17 = scalar_lea.vmem %s1, 32
    %18 = vst.msk [vmem:[%s17] sm:$0x2] %vm14, %v13
    %v19 = vld [vmem:[#allocation0] sm:$0x3]
    %20 = vrot.lane.b32.xlu0 %v19, 126
    %v21 = vpop.permute.xlu0 %20
    %vm22 = vcmask 7168
    %s23 = scalar_lea.vmem %s1, 2
    %24 = vst.msk [vmem:[%s23] sm:$0x1] %vm22, %v21
    %s25 = scalar_lea.vmem %s1, 33
    %26 = vst.msk [vmem:[%s25] sm:$0x2] %vm22, %v21
    %v27 = vld [vmem:[#allocation0] sm:$0x3]
    %28 = vrot.lane.b32.xlu0 %v27, 125
    %v29 = vpop.permute.xlu0 %28
    %vm30 = vcmask 7168
    %s31 = scalar_lea.vmem %s1, 3
    %32 = vst.msk [vmem:[%s31] sm:$0x1] %vm30, %v29
    %s33 = scalar_lea.vmem %s1, 34
    %34 = vst.msk [vmem:[%s33] sm:$0x2] %vm30, %v29
    %v35 = vld [vmem:[#allocation0] sm:$0x3]
    %36 = vrot.lane.b32.xlu0 %v35, 124
    %v37 = vpop.permute.xlu0 %36
    %vm38 = vcmask 7168
    %s39 = scalar_lea.vmem %s1, 4
    %40 = vst.msk [vmem:[%s39] sm:$0x1] %vm38, %v37
    %s41 = scalar_lea.vmem %s1, 35
    %42 = vst.msk [vmem:[%s41] sm:$0x2] %vm38, %v37
    %v43 = vld [vmem:[#allocation0] sm:$0x3]
    %44 = vrot.lane.b32.xlu0 %v43, 123
    %v45 = vpop.permute.xlu0 %44
    %vm46 = vcmask 7168
    %s47 = scalar_lea.vmem %s1, 5
    %48 = vst.msk [vmem:[%s47] sm:$0x1] %vm46, %v45
    %s49 = scalar_lea.vmem %s1, 36
    %50 = vst.msk [vmem:[%s49] sm:$0x2] %vm46, %v45
    %v51 = vld [vmem:[#allocation0] sm:$0x3]
    %52 = vrot.lane.b32.xlu0 %v51, 122
    %v53 = vpop.permute.xlu0 %52
    %vm54 = vcmask 7168
    %s55 = scalar_lea.vmem %s1, 6
    %56 = vst.msk [vmem:[%s55] sm:$0x1] %vm54, %v53
    %s57 = scalar_lea.vmem %s1, 37
    %58 = vst.msk [vmem:[%s57] sm:$0x2] %vm54, %v53
    %v59 = vld [vmem:[#allocation0] sm:$0x3]
    %60 = vrot.lane.b32.xlu0 %v59, 121
    %v61 = vpop.permute.xlu0 %60
    %vm62 = vcmask 7168
    %s63 = scalar_lea.vmem %s1, 7
    %64 = vst.msk [vmem:[%s63] sm:$0x1] %vm62, %v61
    %s65 = scalar_lea.vmem %s1, 38
    %66 = vst.msk [vmem:[%s65] sm:$0x2] %vm62, %v61
    %v67 = vld [vmem:[#allocation0] sm:$0x3]
    %68 = vrot.lane.b32.xlu0 %v67, 120
    %v69 = vpop.permute.xlu0 %68
    %vm70 = vcmask 7168
    %s71 = scalar_lea.vmem %s1, 8
    %72 = vst.msk [vmem:[%s71] sm:$0x1] %vm70, %v69
    %s73 = scalar_lea.vmem %s1, 39
    %74 = vst.msk [vmem:[%s73] sm:$0x2] %vm70, %v69
    %v75 = vld [vmem:[#allocation0] sm:$0x3]
    %76 = vrot.lane.b32.xlu0 %v75, 119
    %v77 = vpop.permute.xlu0 %76
    %vm78 = vcmask 7168
    %s79 = scalar_lea.vmem %s1, 9
    %80 = vst.msk [vmem:[%s79] sm:$0x1] %vm78, %v77
    %s81 = scalar_lea.vmem %s1, 40
    %82 = vst.msk [vmem:[%s81] sm:$0x2] %vm78, %v77
    %v83 = vld [vmem:[#allocation0] sm:$0x3]
    %84 = vrot.lane.b32.xlu0 %v83, 118
    %v85 = vpop.permute.xlu0 %84
    %vm86 = vcmask 7168
    %s87 = scalar_lea.vmem %s1, 10
    %88 = vst.msk [vmem:[%s87] sm:$0x1] %vm86, %v85
    %s89 = scalar_lea.vmem %s1, 41
    %90 = vst.msk [vmem:[%s89] sm:$0x2] %vm86, %v85
    %v91 = vld [vmem:[#allocation0] sm:$0x3]
    %92 = vrot.lane.b32.xlu0 %v91, 117
    %v93 = vpop.permute.xlu0 %92
    %vm94 = vcmask 7168
    %s95 = scalar_lea.vmem %s1, 11
    %96 = vst.msk [vmem:[%s95] sm:$0x1] %vm94, %v93
    %s97 = scalar_lea.vmem %s1, 42
    %98 = vst.msk [vmem:[%s97] sm:$0x2] %vm94, %v93
    %v99 = vld [vmem:[#allocation0] sm:$0x3]
    %100 = vrot.lane.b32.xlu0 %v99, 116
    %v101 = vpop.permute.xlu0 %100
    %vm102 = vcmask 7168
    %s103 = scalar_lea.vmem %s1, 12
    %104 = vst.msk [vmem:[%s103] sm:$0x1] %vm102, %v101
    %s105 = scalar_lea.vmem %s1, 43
    %106 = vst.msk [vmem:[%s105] sm:$0x2] %vm102, %v101
    %v107 = vld [vmem:[#allocation0] sm:$0x3]
    %108 = vrot.lane.b32.xlu0 %v107, 115
    %v109 = vpop.permute.xlu0 %108
    %vm110 = vcmask 7168
    %s111 = scalar_lea.vmem %s1, 13
    %112 = vst.msk [vmem:[%s111] sm:$0x1] %vm110, %v109
    %s113 = scalar_lea.vmem %s1, 44
    %114 = vst.msk [vmem:[%s113] sm:$0x2] %vm110, %v109
    %v115 = vld [vmem:[#allocation0] sm:$0x3]
    %116 = vrot.lane.b32.xlu0 %v115, 114
    %v117 = vpop.permute.xlu0 %116
    %vm118 = vcmask 7168
    %s119 = scalar_lea.vmem %s1, 14
    %120 = vst.msk [vmem:[%s119] sm:$0x1] %vm118, %v117
    %s121 = scalar_lea.vmem %s1, 45
    %122 = vst.msk [vmem:[%s121] sm:$0x2] %vm118, %v117
    %v123 = vld [vmem:[#allocation0] sm:$0x3]
    %124 = vrot.lane.b32.xlu0 %v123, 113
    %v125 = vpop.permute.xlu0 %124
    %vm126 = vcmask 7168
    %s127 = scalar_lea.vmem %s1, 15
    %128 = vst.msk [vmem:[%s127] sm:$0x1] %vm126, %v125
    %s129 = scalar_lea.vmem %s1, 46
    %130 = vst.msk [vmem:[%s129] sm:$0x2] %vm126, %v125
    %v131 = vld [vmem:[#allocation0] sm:$0x3]
    %132 = vrot.lane.b32.xlu0 %v131, 112
    %v133 = vpop.permute.xlu0 %132
    %vm134 = vcmask 7168
    %s135 = scalar_lea.vmem %s1, 16
    %136 = vst.msk [vmem:[%s135] sm:$0x1] %vm134, %v133
    %s137 = scalar_lea.vmem %s1, 47
    %138 = vst.msk [vmem:[%s137] sm:$0x2] %vm134, %v133
    %v139 = vld [vmem:[#allocation0] sm:$0x3]
    %140 = vrot.lane.b32.xlu0 %v139, 111
    %v141 = vpop.permute.xlu0 %140
    %vm142 = vcmask 7168
    %s143 = scalar_lea.vmem %s1, 17
    %144 = vst.msk [vmem:[%s143] sm:$0x1] %vm142, %v141
    %s145 = scalar_lea.vmem %s1, 48
    %146 = vst.msk [vmem:[%s145] sm:$0x2] %vm142, %v141
    %v147 = vld [vmem:[#allocation0] sm:$0x3]
    %148 = vrot.lane.b32.xlu0 %v147, 110
    %v149 = vpop.permute.xlu0 %148
    %vm150 = vcmask 7168
    %s151 = scalar_lea.vmem %s1, 18
    %152 = vst.msk [vmem:[%s151] sm:$0x1] %vm150, %v149
    %s153 = scalar_lea.vmem %s1, 49
    %154 = vst.msk [vmem:[%s153] sm:$0x2] %vm150, %v149
    %v155 = vld [vmem:[#allocation0] sm:$0x3]
    %156 = vrot.lane.b32.xlu0 %v155, 109
    %v157 = vpop.permute.xlu0 %156
    %vm158 = vcmask 7168
    %s159 = scalar_lea.vmem %s1, 19
    %160 = vst.msk [vmem:[%s159] sm:$0x1] %vm158, %v157
    %s161 = scalar_lea.vmem %s1, 50
    %162 = vst.msk [vmem:[%s161] sm:$0x2] %vm158, %v157
    %v163 = vld [vmem:[#allocation0] sm:$0x3]
    %164 = vrot.lane.b32.xlu0 %v163, 108
    %v165 = vpop.permute.xlu0 %164
    %vm166 = vcmask 7168
    %s167 = scalar_lea.vmem %s1, 20
    %168 = vst.msk [vmem:[%s167] sm:$0x1] %vm166, %v165
    %s169 = scalar_lea.vmem %s1, 51
    %170 = vst.msk [vmem:[%s169] sm:$0x2] %vm166, %v165
    %v171 = vld [vmem:[#allocation0] sm:$0x3]
    %172 = vrot.lane.b32.xlu0 %v171, 107
    %v173 = vpop.permute.xlu0 %172
    %vm174 = vcmask 7168
    %s175 = scalar_lea.vmem %s1, 21
    %176 = vst.msk [vmem:[%s175] sm:$0x1] %vm174, %v173
    %s177 = scalar_lea.vmem %s1, 52
    %178 = vst.msk [vmem:[%s177] sm:$0x2] %vm174, %v173
    %v179 = vld [vmem:[#allocation0] sm:$0x3]
    %180 = vrot.lane.b32.xlu0 %v179, 106
    %v181 = vpop.permute.xlu0 %180
    %vm182 = vcmask 7168
    %s183 = scalar_lea.vmem %s1, 22
    %184 = vst.msk [vmem:[%s183] sm:$0x1] %vm182, %v181
    %s185 = scalar_lea.vmem %s1, 53
    %186 = vst.msk [vmem:[%s185] sm:$0x2] %vm182, %v181
    %v187 = vld [vmem:[#allocation0] sm:$0x3]
    %188 = vrot.lane.b32.xlu0 %v187, 105
    %v189 = vpop.permute.xlu0 %188
    %vm190 = vcmask 7168
    %s191 = scalar_lea.vmem %s1, 23
    %192 = vst.msk [vmem:[%s191] sm:$0x1] %vm190, %v189
    %s193 = scalar_lea.vmem %s1, 54
    %194 = vst.msk [vmem:[%s193] sm:$0x2] %vm190, %v189
    %v195 = vld [vmem:[#allocation0] sm:$0x3]
    %196 = vrot.lane.b32.xlu0 %v195, 104
    %v197 = vpop.permute.xlu0 %196
    %vm198 = vcmask 7168
    %s199 = scalar_lea.vmem %s1, 24
    %200 = vst.msk [vmem:[%s199] sm:$0x1] %vm198, %v197
    %s201 = scalar_lea.vmem %s1, 55
    %202 = vst.msk [vmem:[%s201] sm:$0x2] %vm198, %v197
    %v203 = vld [vmem:[#allocation0] sm:$0x3]
    %204 = vrot.lane.b32.xlu0 %v203, 103
    %v205 = vpop.permute.xlu0 %204
    %vm206 = vcmask 7168
    %s207 = scalar_lea.vmem %s1, 25
    %208 = vst.msk [vmem:[%s207] sm:$0x1] %vm206, %v205
    %s209 = scalar_lea.vmem %s1, 56
    %210 = vst.msk [vmem:[%s209] sm:$0x2] %vm206, %v205
    %v211 = vld [vmem:[#allocation0] sm:$0x3]
    %212 = vrot.lane.b32.xlu0 %v211, 102
    %v213 = vpop.permute.xlu0 %212
    %vm214 = vcmask 7168
    %s215 = scalar_lea.vmem %s1, 26
    %216 = vst.msk [vmem:[%s215] sm:$0x1] %vm214, %v213
    %s217 = scalar_lea.vmem %s1, 57
    %218 = vst.msk [vmem:[%s217] sm:$0x2] %vm214, %v213
    %v219 = vld [vmem:[#allocation0] sm:$0x3]
    %220 = vrot.lane.b32.xlu0 %v219, 101
    %v221 = vpop.permute.xlu0 %220
    %vm222 = vcmask 7168
    %s223 = scalar_lea.vmem %s1, 27
    %224 = vst.msk [vmem:[%s223] sm:$0x1] %vm222, %v221
    %s225 = scalar_lea.vmem %s1, 58
    %226 = vst.msk [vmem:[%s225] sm:$0x2] %vm222, %v221
    %v227 = vld [vmem:[#allocation0] sm:$0x3]
    %228 = vrot.lane.b32.xlu0 %v227, 100
    %v229 = vpop.permute.xlu0 %228
    %vm230 = vcmask 7168
    %s231 = scalar_lea.vmem %s1, 28
    %232 = vst.msk [vmem:[%s231] sm:$0x1] %vm230, %v229
    %s233 = scalar_lea.vmem %s1, 59
    %234 = vst.msk [vmem:[%s233] sm:$0x2] %vm230, %v229
    %v235 = vld [vmem:[#allocation0] sm:$0x3]
    %236 = vrot.lane.b32.xlu0 %v235, 99
    %v237 = vpop.permute.xlu0 %236
    %vm238 = vcmask 7168
    %s239 = scalar_lea.vmem %s1, 29
    %240 = vst.msk [vmem:[%s239] sm:$0x1] %vm238, %v237
    %s241 = scalar_lea.vmem %s1, 60
    %242 = vst.msk [vmem:[%s241] sm:$0x2] %vm238, %v237
    %v243 = vld [vmem:[#allocation0] sm:$0x3]
    %244 = vrot.lane.b32.xlu0 %v243, 98
    %v245 = vpop.permute.xlu0 %244
    %vm246 = vcmask 7168
    %s247 = scalar_lea.vmem %s1, 30
    %248 = vst.msk [vmem:[%s247] sm:$0x1] %vm246, %v245
    %s249 = scalar_lea.vmem %s1, 61
    %250 = vst.msk [vmem:[%s249] sm:$0x2] %vm246, %v245
    %v251 = vld [vmem:[#allocation0] sm:$0x3]
    %252 = vrot.lane.b32.xlu0 %v251, 97
    %v253 = vpop.permute.xlu0 %252
    %vm254 = vcmask 7168
    %s255 = scalar_lea.vmem %s1, 31
    %256 = vst.msk [vmem:[%s255] sm:$0x1] %vm254, %v253
    %s257 = scalar_lea.vmem %s1, 62
    %258 = vst.msk [vmem:[%s257] sm:$0x2] %vm254, %v253

// kernel: postnet_forward.1
$region0: #{postnet_forward.1}
  #allocation0 [shape = 'u32[]', space=smem, size = 0x4, offset = 0x4, fixed_abs, tag = 'smem constant byte address 0x4 - core index']
  #allocation1 [shape = 'u32[72,128]{1,0:T(1,128)}', space=vmem, size = 0x9000, scoped, tag = 'internal scratch']
  #allocation2 [shape = 'f32[80,128]{1,0:T(8,128)}', space=vmem, size = 0xa000, scoped, tag = 'scratch operand']
  #allocation3 [shape = 'f32[80,128]{1,0:T(8,128)}', space=vmem, size = 0xa000, scoped, tag = 'scratch operand']
  %s0 = inlined_call_operand.vmem [shape: f32[80,128], index: 0, kind: input, shape index: {}]
  %s1 = inlined_call_operand.vmem [shape: f32[5,640,128], index: 1, kind: input, shape index: {}]
  %s2 = inlined_call_operand.vmem [shape: f32[5,1,128], index: 2, kind: input, shape index: {}]
  %s3 = inlined_call_operand.vmem [shape: f32[5,1,128], index: 3, kind: input, shape index: {}]
  %s4 = inlined_call_operand.vmem [shape: f32[64,1], index: 4, kind: input, shape index: {}]
  %s5 = inlined_call_operand.vmem [shape: f32[64,128], index: 5, kind: output, shape index: {}]
  %s6 = sld [smem:[#allocation0]]
  $region30: #{postnet_forward.1} parent=0
    _
  %s8 = ssub.s32 1, %s6
  %s9 = scalar_select 0, %s8, %s6
  // Predicated region
  $region2: #{postnet_forward.1} parent=0 // pred_check
    _
  $region3: #{postnet_forward.1} parent=0 // pred_check_branch
    %11 = sbr.rel (0) target = $region5
  $region4: #{postnet_forward.1} parent=0 // pred_region
    _
  $region5: #{postnet_forward.1} parent=0 // pred_fallthru
    _
  // Predicated region
  $region6: #{postnet_forward.1} parent=0 // pred_check
    _
  $region7: #{postnet_forward.1} parent=0 // pred_check_branch
    %13 = sbr.rel (0) target = $region9
  $region8: #{postnet_forward.1} parent=0 // pred_region
    _
  $region9: #{postnet_forward.1} parent=0 // pred_fallthru
    _
  // Predicated region
  $region10: #{postnet_forward.1} parent=0 // pred_check
    _
  $region11: #{postnet_forward.1} parent=0 // pred_check_branch
    %15 = sbr.rel (0) target = $region13
  $region12: #{postnet_forward.1} parent=0 // pred_region
    _
  $region13: #{postnet_forward.1} parent=0 // pred_fallthru
    _
  // Predicated region
  $region14: #{postnet_forward.1} parent=0 // pred_check
    _
  $region15: #{postnet_forward.1} parent=0 // pred_check_branch
    %17 = sbr.rel (0) target = $region17
  $region16: #{postnet_forward.1} parent=0 // pred_region
    _
  $region17: #{postnet_forward.1} parent=0 // pred_fallthru
    _
  // Predicated region
  $region18: #{postnet_forward.1} parent=0 // pred_check
    _
  $region19: #{postnet_forward.1} parent=0 // pred_check_branch
    %19 = sbr.rel (0) target = $region21
  $region20: #{postnet_forward.1} parent=0 // pred_region
    _
  $region21: #{postnet_forward.1} parent=0 // pred_fallthru
    _
  %20 = vst [vmem:[#allocation2] sm:$0xff] 0.0
  %21 = vst [vmem:[#allocation2 + $0x48] sm:$0xff] 0.0
  %22 = vst [vmem:[#allocation3] sm:$0xff] 0.0
  %23 = vst [vmem:[#allocation3 + $0x48] sm:$0xff] 0.0
  %v24 = vld [vmem:[%s4] sm:$0xff]
  %v25 = vld [vmem:[%s4 + $0x8] sm:$0xff]
  %v26 = vld [vmem:[%s4 + $0x10] sm:$0xff]
  %v27 = vld [vmem:[%s4 + $0x18] sm:$0xff]
  %v28 = vld [vmem:[%s4 + $0x20] sm:$0xff]
  %v29 = vld [vmem:[%s4 + $0x28] sm:$0xff]
  %v30 = vld [vmem:[%s4 + $0x30] sm:$0xff]
  %v31 = vld [vmem:[%s4 + $0x38] sm:$0xff]
  %33 = vset.pattern.permute.xlu0 0
  %34 = vperm.xlu0 %33, %v24
  %v35 = vpop.permute.xlu0 %34
  %38 = vset.pattern.permute.xlu0 0
  %39 = vperm.xlu0 %38, %v25
  %v40 = vpop.permute.xlu0 %39
  %43 = vset.pattern.permute.xlu0 0
  %44 = vperm.xlu0 %43, %v26
  %v45 = vpop.permute.xlu0 %44
  %48 = vset.pattern.permute.xlu0 0
  %49 = vperm.xlu0 %48, %v27
  %v50 = vpop.permute.xlu0 %49
  %53 = vset.pattern.permute.xlu0 0
  %54 = vperm.xlu0 %53, %v28
  %v55 = vpop.permute.xlu0 %54
  %58 = vset.pattern.permute.xlu0 0
  %59 = vperm.xlu0 %58, %v29
  %v60 = vpop.permute.xlu0 %59
  %63 = vset.pattern.permute.xlu0 0
  %64 = vperm.xlu0 %63, %v30
  %v65 = vpop.permute.xlu0 %64
  %68 = vset.pattern.permute.xlu0 0
  %69 = vperm.xlu0 %68, %v31
  %v70 = vpop.permute.xlu0 %69
  %v72 = vld [vmem:[%s0] sm:$0xff]
  %v73 = vld [vmem:[%s0 + $0x8] sm:$0xff]
  %v74 = vld [vmem:[%s0 + $0x10] sm:$0xff]
  %v75 = vld [vmem:[%s0 + $0x18] sm:$0xff]
  %v76 = vld [vmem:[%s0 + $0x20] sm:$0xff]
  %v77 = vld [vmem:[%s0 + $0x28] sm:$0xff]
  %v78 = vld [vmem:[%s0 + $0x30] sm:$0xff]
  %v79 = vld [vmem:[%s0 + $0x38] sm:$0xff]
  %v80 = vld [vmem:[%s0 + $0x40] sm:$0xff]
  %v81 = vld [vmem:[%s0 + $0x48] sm:$0xff]
  %vm91 = vcmask 1046528
  %v92 = vrot.slane %v72, 1
  %v93 = vrot.slane %v73, 1
  %v94 = vsel %vm91, %v92, %v93
  %v95 = vrot.slane %v74, 1
  %v96 = vsel %vm91, %v93, %v95
  %v97 = vrot.slane %v75, 1
  %v98 = vsel %vm91, %v95, %v97
  %v99 = vrot.slane %v76, 1
  %v100 = vsel %vm91, %v97, %v99
  %v101 = vrot.slane %v77, 1
  %v102 = vsel %vm91, %v99, %v101
  %v103 = vrot.slane %v78, 1
  %v104 = vsel %vm91, %v101, %v103
  %v105 = vrot.slane %v79, 1
  %v106 = vsel %vm91, %v103, %v105
  %v107 = vrot.slane %v80, 1
  %v108 = vsel %vm91, %v105, %v107
  %vm109 = vcmask 1045504
  %v110 = vrot.slane %v73, 2
  %v111 = vrot.slane %v74, 2
  %v112 = vsel %vm109, %v110, %v111
  %v113 = vrot.slane %v75, 2
  %v114 = vsel %vm109, %v111, %v113
  %v115 = vrot.slane %v76, 2
  %v116 = vsel %vm109, %v113, %v115
  %v117 = vrot.slane %v77, 2
  %v118 = vsel %vm109, %v115, %v117
  %v119 = vrot.slane %v78, 2
  %v120 = vsel %vm109, %v117, %v119
  %v121 = vrot.slane %v79, 2
  %v122 = vsel %vm109, %v119, %v121
  %v123 = vrot.slane %v80, 2
  %v124 = vsel %vm109, %v121, %v123
  %vm126 = vcmask 1044480
  %v127 = vrot.slane %v73, 3
  %v128 = vrot.slane %v74, 3
  %v129 = vsel %vm126, %v127, %v128
  %v130 = vrot.slane %v75, 3
  %v131 = vsel %vm126, %v128, %v130
  %v132 = vrot.slane %v76, 3
  %v133 = vsel %vm126, %v130, %v132
  %v134 = vrot.slane %v77, 3
  %v135 = vsel %vm126, %v132, %v134
  %v136 = vrot.slane %v78, 3
  %v137 = vsel %vm126, %v134, %v136
  %v138 = vrot.slane %v79, 3
  %v139 = vsel %vm126, %v136, %v138
  %v140 = vrot.slane %v80, 3
  %v141 = vsel %vm126, %v138, %v140
  %v142 = vrot.slane %v81, 3
  %v143 = vsel %vm126, %v140, %v142
  %vm144 = vcmask 1043456
  %v145 = vrot.slane %v73, 4
  %v146 = vrot.slane %v74, 4
  %v147 = vsel %vm144, %v145, %v146
  %v148 = vrot.slane %v75, 4
  %v149 = vsel %vm144, %v146, %v148
  %v150 = vrot.slane %v76, 4
  %v151 = vsel %vm144, %v148, %v150
  %v152 = vrot.slane %v77, 4
  %v153 = vsel %vm144, %v150, %v152
  %v154 = vrot.slane %v78, 4
  %v155 = vsel %vm144, %v152, %v154
  %v156 = vrot.slane %v79, 4
  %v157 = vsel %vm144, %v154, %v156
  %v158 = vrot.slane %v80, 4
  %v159 = vsel %vm144, %v156, %v158
  %v160 = vrot.slane %v81, 4
  %v161 = vsel %vm144, %v158, %v160
  %v162 = vld [vmem:[%s1] sm:$0xff]
  %v163 = vld [vmem:[%s1 + $0x8] sm:$0xff]
  %v164 = vld [vmem:[%s1 + $0x10] sm:$0xff]
  %v165 = vld [vmem:[%s1 + $0x18] sm:$0xff]
  %v166 = vld [vmem:[%s1 + $0x20] sm:$0xff]
  %v167 = vld [vmem:[%s1 + $0x28] sm:$0xff]
  %v168 = vld [vmem:[%s1 + $0x30] sm:$0xff]
  %v169 = vld [vmem:[%s1 + $0x38] sm:$0xff]
  %v170 = vld [vmem:[%s1 + $0x40] sm:$0xff]
  %v171 = vld [vmem:[%s1 + $0x48] sm:$0xff]
  %v172 = vld [vmem:[%s1 + $0x50] sm:$0xff]
  %v173 = vld [vmem:[%s1 + $0x58] sm:$0xff]
  %v174 = vld [vmem:[%s1 + $0x60] sm:$0xff]
  %v175 = vld [vmem:[%s1 + $0x68] sm:$0xff]
  %v176 = vld [vmem:[%s1 + $0x70] sm:$0xff]
  %v177 = vld [vmem:[%s1 + $0x78] sm:$0xff]
  %v178 = vld [vmem:[%s1 + $0x80] sm:$0xff]
  %v179 = vld [vmem:[%s1 + $0x88] sm:$0xff]
  %v180 = vld [vmem:[%s1 + $0x90] sm:$0xff]
  %v181 = vld [vmem:[%s1 + $0x98] sm:$0xff]
  %v182 = vld [vmem:[%s1 + $0xa0] sm:$0xff]
  %v183 = vld [vmem:[%s1 + $0xa8] sm:$0xff]
  %v184 = vld [vmem:[%s1 + $0xb0] sm:$0xff]
  %v185 = vld [vmem:[%s1 + $0xb8] sm:$0xff]
  %v186 = vld [vmem:[%s1 + $0xc0] sm:$0xff]
  %v187 = vld [vmem:[%s1 + $0xc8] sm:$0xff]
  %v188 = vld [vmem:[%s1 + $0xd0] sm:$0xff]
  %v189 = vld [vmem:[%s1 + $0xd8] sm:$0xff]
  %v190 = vld [vmem:[%s1 + $0xe0] sm:$0xff]
  %v191 = vld [vmem:[%s1 + $0xe8] sm:$0xff]
  %v192 = vld [vmem:[%s1 + $0xf0] sm:$0xff]
  %v193 = vld [vmem:[%s1 + $0xf8] sm:$0xff]
  %v194 = vld [vmem:[%s1 + $0x100] sm:$0xff]
  %v195 = vld [vmem:[%s1 + $0x108] sm:$0xff]
  %v196 = vld [vmem:[%s1 + $0x110] sm:$0xff]
  %v197 = vld [vmem:[%s1 + $0x118] sm:$0xff]
  %v198 = vld [vmem:[%s1 + $0x120] sm:$0xff]
  %v199 = vld [vmem:[%s1 + $0x128] sm:$0xff]
  %v200 = vld [vmem:[%s1 + $0x130] sm:$0xff]
  %v201 = vld [vmem:[%s1 + $0x138] sm:$0xff]
  %v202 = vld [vmem:[%s1 + $0x140] sm:$0xff]
  %v203 = vld [vmem:[%s1 + $0x148] sm:$0xff]
  %v204 = vld [vmem:[%s1 + $0x150] sm:$0xff]
  %v205 = vld [vmem:[%s1 + $0x158] sm:$0xff]
  %v206 = vld [vmem:[%s1 + $0x160] sm:$0xff]
  %v207 = vld [vmem:[%s1 + $0x168] sm:$0xff]
  %v208 = vld [vmem:[%s1 + $0x170] sm:$0xff]
  %v209 = vld [vmem:[%s1 + $0x178] sm:$0xff]
  %v210 = vld [vmem:[%s1 + $0x180] sm:$0xff]
  %v211 = vld [vmem:[%s1 + $0x188] sm:$0xff]
  %v212 = vld [vmem:[%s1 + $0x190] sm:$0xff]
  %v213 = vld [vmem:[%s1 + $0x198] sm:$0xff]
  %v214 = vld [vmem:[%s1 + $0x1a0] sm:$0xff]
  %v215 = vld [vmem:[%s1 + $0x1a8] sm:$0xff]
  %v216 = vld [vmem:[%s1 + $0x1b0] sm:$0xff]
  %v217 = vld [vmem:[%s1 + $0x1b8] sm:$0xff]
  %v218 = vld [vmem:[%s1 + $0x1c0] sm:$0xff]
  %v219 = vld [vmem:[%s1 + $0x1c8] sm:$0xff]
  %v220 = vld [vmem:[%s1 + $0x1d0] sm:$0xff]
  %v221 = vld [vmem:[%s1 + $0x1d8] sm:$0xff]
  %v222 = vld [vmem:[%s1 + $0x1e0] sm:$0xff]
  %v223 = vld [vmem:[%s1 + $0x1e8] sm:$0xff]
  %v224 = vld [vmem:[%s1 + $0x1f0] sm:$0xff]
  %v225 = vld [vmem:[%s1 + $0x1f8] sm:$0xff]
  %v226 = vld [vmem:[%s1 + $0x200] sm:$0xff]
  %v227 = vld [vmem:[%s1 + $0x208] sm:$0xff]
  %v228 = vld [vmem:[%s1 + $0x210] sm:$0xff]
  %v229 = vld [vmem:[%s1 + $0x218] sm:$0xff]
  %v230 = vld [vmem:[%s1 + $0x220] sm:$0xff]
  %v231 = vld [vmem:[%s1 + $0x228] sm:$0xff]
  %v232 = vld [vmem:[%s1 + $0x230] sm:$0xff]
  %v233 = vld [vmem:[%s1 + $0x238] sm:$0xff]
  %v234 = vld [vmem:[%s1 + $0x240] sm:$0xff]
  %v235 = vld [vmem:[%s1 + $0x248] sm:$0xff]
  %v236 = vld [vmem:[%s1 + $0x250] sm:$0xff]
  %v237 = vld [vmem:[%s1 + $0x258] sm:$0xff]
  %v238 = vld [vmem:[%s1 + $0x260] sm:$0xff]
  %v239 = vld [vmem:[%s1 + $0x268] sm:$0xff]
  %v240 = vld [vmem:[%s1 + $0x270] sm:$0xff]
  %v241 = vld [vmem:[%s1 + $0x278] sm:$0xff]
  %vm242 = vcmask 1041408
  %v243 = vrot.slane %v72, 6
  %v244 = vrot.slane %v73, 6
  %v245 = vsel %vm242, %v243, %v244
  %v246 = vrot.slane %v94, 6
  %v247 = vrot.slane %v96, 6
  %v248 = vsel %vm242, %v246, %v247
  %v249 = vrot.slane %v110, 6
  %v250 = vrot.slane %v112, 6
  %v251 = vsel %vm242, %v249, %v250
  %v252 = vrot.slane %v127, 6
  %v253 = vrot.slane %v129, 6
  %v254 = vsel %vm242, %v252, %v253
  %v255 = vrot.slane %v145, 6
  %v256 = vrot.slane %v147, 6
  %v257 = vsel %vm242, %v255, %v256
  %v258 = vrot.slane %v74, 6
  %v259 = vsel %vm242, %v244, %v258
  %v260 = vrot.slane %v98, 6
  %v261 = vsel %vm242, %v247, %v260
  %v262 = vrot.slane %v114, 6
  %v263 = vsel %vm242, %v250, %v262
  %v264 = vrot.slane %v131, 6
  %v265 = vsel %vm242, %v253, %v264
  %v266 = vrot.slane %v149, 6
  %v267 = vsel %vm242, %v256, %v266
  %v268 = vrot.slane %v75, 6
  %v269 = vsel %vm242, %v258, %v268
  %v270 = vrot.slane %v100, 6
  %v271 = vsel %vm242, %v260, %v270
  %v272 = vrot.slane %v116, 6
  %v273 = vsel %vm242, %v262, %v272
  %v274 = vrot.slane %v133, 6
  %v275 = vsel %vm242, %v264, %v274
  %v276 = vrot.slane %v151, 6
  %v277 = vsel %vm242, %v266, %v276
  %v278 = vrot.slane %v76, 6
  %v279 = vsel %vm242, %v268, %v278
  %v280 = vrot.slane %v102, 6
  %v281 = vsel %vm242, %v270, %v280
  %v282 = vrot.slane %v118, 6
  %v283 = vsel %vm242, %v272, %v282
  %v284 = vrot.slane %v135, 6
  %v285 = vsel %vm242, %v274, %v284
  %v286 = vrot.slane %v153, 6
  %v287 = vsel %vm242, %v276, %v286
  %v288 = vrot.slane %v77, 6
  %v289 = vsel %vm242, %v278, %v288
  %v290 = vrot.slane %v104, 6
  %v291 = vsel %vm242, %v280, %v290
  %v292 = vrot.slane %v120, 6
  %v293 = vsel %vm242, %v282, %v292
  %v294 = vrot.slane %v137, 6
  %v295 = vsel %vm242, %v284, %v294
  %v296 = vrot.slane %v155, 6
  %v297 = vsel %vm242, %v286, %v296
  %v298 = vrot.slane %v78, 6
  %v299 = vsel %vm242, %v288, %v298
  %v300 = vrot.slane %v106, 6
  %v301 = vsel %vm242, %v290, %v300
  %v302 = vrot.slane %v122, 6
  %v303 = vsel %vm242, %v292, %v302
  %v304 = vrot.slane %v139, 6
  %v305 = vsel %vm242, %v294, %v304
  %v306 = vrot.slane %v157, 6
  %v307 = vsel %vm242, %v296, %v306
  %v308 = vrot.slane %v79, 6
  %v309 = vsel %vm242, %v298, %v308
  %v310 = vrot.slane %v108, 6
  %v311 = vsel %vm242, %v300, %v310
  %v312 = vrot.slane %v124, 6
  %v313 = vsel %vm242, %v302, %v312
  %v314 = vrot.slane %v141, 6
  %v315 = vsel %vm242, %v304, %v314
  %v316 = vrot.slane %v159, 6
  %v317 = vsel %vm242, %v306, %v316
  %v318 = vrot.slane %v80, 6
  %v319 = vsel %vm242, %v308, %v318
  %v320 = vrot.slane %v107, 6
  %v321 = vsel %vm242, %v310, %v320
  %v322 = vrot.slane %v123, 6
  %v323 = vsel %vm242, %v312, %v322
  %v324 = vrot.slane %v143, 6
  %v325 = vsel %vm242, %v314, %v324
  %v326 = vrot.slane %v161, 6
  %v327 = vsel %vm242, %v316, %v326
  %368 = vmatpush.msra.mxu0 %v177
  %369 = vmatpush.msra.mxu0 %v176
  %370 = vmatpush.msra.mxu0 %v175
  %371 = vmatpush.msra.mxu0 %v174
  %372 = vmatpush.msra.mxu0 %v173
  %373 = vmatpush.msra.mxu0 %v172
  %374 = vmatpush.msra.mxu0 %v171
  %375 = vmatpush.msra.mxu0 %v170
  %376 = vmatpush.msra.mxu0 %v169
  %377 = vmatpush.msra.mxu0 %v168
  %378 = vmatpush.msra.mxu0 %v167
  %379 = vmatpush.msra.mxu0 %v166
  %380 = vmatpush.msra.mxu0 %v165
  %381 = vmatpush.msra.mxu0 %v164
  %382 = vmatpush.msra.mxu0 %v163
  %383 = vmatpush.msra.mxu0 %v162
  %384 = vmatmul.f32.gmra.mxu0 %v245
  %v385 = vpop.f32.mrf.mxu0
  %v386 = vadd.f32 0.0, %v385
  %387 = vmatmul.f32.gmra.mxu0 %v259
  %v388 = vpop.f32.mrf.mxu0
  %v389 = vadd.f32 0.0, %v388
  %390 = vmatmul.f32.gmra.mxu0 %v269
  %v391 = vpop.f32.mrf.mxu0
  %v392 = vadd.f32 0.0, %v391
  %393 = vmatmul.f32.gmra.mxu0 %v279
  %v394 = vpop.f32.mrf.mxu0
  %v395 = vadd.f32 0.0, %v394
  %396 = vmatmul.f32.gmra.mxu0 %v289
  %v397 = vpop.f32.mrf.mxu0
  %v398 = vadd.f32 0.0, %v397
  %399 = vmatmul.f32.gmra.mxu0 %v299
  %v400 = vpop.f32.mrf.mxu0
  %v401 = vadd.f32 0.0, %v400
  %402 = vmatmul.f32.gmra.mxu0 %v309
  %v403 = vpop.f32.mrf.mxu0
  %v404 = vadd.f32 0.0, %v403
  %405 = vmatmul.f32.gmra.mxu0 %v319
  %v406 = vpop.f32.mrf.mxu0
  %v407 = vadd.f32 0.0, %v406
  %408 = vdwg.mxu0
  %409 = vmatpush.msra.mxu0 %v193
  %410 = vmatpush.msra.mxu0 %v192
  %411 = vmatpush.msra.mxu0 %v191
  %412 = vmatpush.msra.mxu0 %v190
  %413 = vmatpush.msra.mxu0 %v189
  %414 = vmatpush.msra.mxu0 %v188
  %415 = vmatpush.msra.mxu0 %v187
  %416 = vmatpush.msra.mxu0 %v186
  %417 = vmatpush.msra.mxu0 %v185
  %418 = vmatpush.msra.mxu0 %v184
  %419 = vmatpush.msra.mxu0 %v183
  %420 = vmatpush.msra.mxu0 %v182
  %421 = vmatpush.msra.mxu0 %v181
  %422 = vmatpush.msra.mxu0 %v180
  %423 = vmatpush.msra.mxu0 %v179
  %424 = vmatpush.msra.mxu0 %v178
  %425 = vmatmul.f32.gmra.mxu0 %v248
  %v426 = vpop.f32.mrf.mxu0
  %v427 = vadd.f32 %v386, %v426
  %428 = vmatmul.f32.gmra.mxu0 %v261
  %v429 = vpop.f32.mrf.mxu0
  %v430 = vadd.f32 %v389, %v429
  %431 = vmatmul.f32.gmra.mxu0 %v271
  %v432 = vpop.f32.mrf.mxu0
  %v433 = vadd.f32 %v392, %v432
  %434 = vmatmul.f32.gmra.mxu0 %v281
  %v435 = vpop.f32.mrf.mxu0
  %v436 = vadd.f32 %v395, %v435
  %437 = vmatmul.f32.gmra.mxu0 %v291
  %v438 = vpop.f32.mrf.mxu0
  %v439 = vadd.f32 %v398, %v438
  %440 = vmatmul.f32.gmra.mxu0 %v301
  %v441 = vpop.f32.mrf.mxu0
  %v442 = vadd.f32 %v401, %v441
  %443 = vmatmul.f32.gmra.mxu0 %v311
  %v444 = vpop.f32.mrf.mxu0
  %v445 = vadd.f32 %v404, %v444
  %446 = vmatmul.f32.gmra.mxu0 %v321
  %v447 = vpop.f32.mrf.mxu0
  %v448 = vadd.f32 %v407, %v447
  %449 = vdwg.mxu0
  %450 = vmatpush.msra.mxu0 %v209
  %451 = vmatpush.msra.mxu0 %v208
  %452 = vmatpush.msra.mxu0 %v207
  %453 = vmatpush.msra.mxu0 %v206
  %454 = vmatpush.msra.mxu0 %v205
  %455 = vmatpush.msra.mxu0 %v204
  %456 = vmatpush.msra.mxu0 %v203
  %457 = vmatpush.msra.mxu0 %v202
  %458 = vmatpush.msra.mxu0 %v201
  %459 = vmatpush.msra.mxu0 %v200
  %460 = vmatpush.msra.mxu0 %v199
  %461 = vmatpush.msra.mxu0 %v198
  %462 = vmatpush.msra.mxu0 %v197
  %463 = vmatpush.msra.mxu0 %v196
  %464 = vmatpush.msra.mxu0 %v195
  %465 = vmatpush.msra.mxu0 %v194
  %466 = vmatmul.f32.gmra.mxu0 %v251
  %v467 = vpop.f32.mrf.mxu0
  %v468 = vadd.f32 %v427, %v467
  %469 = vmatmul.f32.gmra.mxu0 %v263
  %v470 = vpop.f32.mrf.mxu0
  %v471 = vadd.f32 %v430, %v470
  %472 = vmatmul.f32.gmra.mxu0 %v273
  %v473 = vpop.f32.mrf.mxu0
  %v474 = vadd.f32 %v433, %v473
  %475 = vmatmul.f32.gmra.mxu0 %v283
  %v476 = vpop.f32.mrf.mxu0
  %v477 = vadd.f32 %v436, %v476
  %478 = vmatmul.f32.gmra.mxu0 %v293
  %v479 = vpop.f32.mrf.mxu0
  %v480 = vadd.f32 %v439, %v479
  %481 = vmatmul.f32.gmra.mxu0 %v303
  %v482 = vpop.f32.mrf.mxu0
  %v483 = vadd.f32 %v442, %v482
  %484 = vmatmul.f32.gmra.mxu0 %v313
  %v485 = vpop.f32.mrf.mxu0
  %v486 = vadd.f32 %v445, %v485
  %487 = vmatmul.f32.gmra.mxu0 %v323
  %v488 = vpop.f32.mrf.mxu0
  %v489 = vadd.f32 %v448, %v488
  %490 = vdwg.mxu0
  %491 = vmatpush.msra.mxu0 %v225
  %492 = vmatpush.msra.mxu0 %v224
  %493 = vmatpush.msra.mxu0 %v223
  %494 = vmatpush.msra.mxu0 %v222
  %495 = vmatpush.msra.mxu0 %v221
  %496 = vmatpush.msra.mxu0 %v220
  %497 = vmatpush.msra.mxu0 %v219
  %498 = vmatpush.msra.mxu0 %v218
  %499 = vmatpush.msra.mxu0 %v217
  %500 = vmatpush.msra.mxu0 %v216
  %501 = vmatpush.msra.mxu0 %v215
  %502 = vmatpush.msra.mxu0 %v214
  %503 = vmatpush.msra.mxu0 %v213
  %504 = vmatpush.msra.mxu0 %v212
  %505 = vmatpush.msra.mxu0 %v211
  %506 = vmatpush.msra.mxu0 %v210
  %507 = vmatmul.f32.gmra.mxu0 %v254
  %v508 = vpop.f32.mrf.mxu0
  %v509 = vadd.f32 %v468, %v508
  %510 = vmatmul.f32.gmra.mxu0 %v265
  %v511 = vpop.f32.mrf.mxu0
  %v512 = vadd.f32 %v471, %v511
  %513 = vmatmul.f32.gmra.mxu0 %v275
  %v514 = vpop.f32.mrf.mxu0
  %v515 = vadd.f32 %v474, %v514
  %516 = vmatmul.f32.gmra.mxu0 %v285
  %v517 = vpop.f32.mrf.mxu0
  %v518 = vadd.f32 %v477, %v517
  %519 = vmatmul.f32.gmra.mxu0 %v295
  %v520 = vpop.f32.mrf.mxu0
  %v521 = vadd.f32 %v480, %v520
  %522 = vmatmul.f32.gmra.mxu0 %v305
  %v523 = vpop.f32.mrf.mxu0
  %v524 = vadd.f32 %v483, %v523
  %525 = vmatmul.f32.gmra.mxu0 %v315
  %v526 = vpop.f32.mrf.mxu0
  %v527 = vadd.f32 %v486, %v526
  %528 = vmatmul.f32.gmra.mxu0 %v325
  %v529 = vpop.f32.mrf.mxu0
  %v530 = vadd.f32 %v489, %v529
  %531 = vdwg.mxu0
  %532 = vmatpush.msra.mxu0 %v241
  %533 = vmatpush.msra.mxu0 %v240
  %534 = vmatpush.msra.mxu0 %v239
  %535 = vmatpush.msra.mxu0 %v238
  %536 = vmatpush.msra.mxu0 %v237
  %537 = vmatpush.msra.mxu0 %v236
  %538 = vmatpush.msra.mxu0 %v235
  %539 = vmatpush.msra.mxu0 %v234
  %540 = vmatpush.msra.mxu0 %v233
  %541 = vmatpush.msra.mxu0 %v232
  %542 = vmatpush.msra.mxu0 %v231
  %543 = vmatpush.msra.mxu0 %v230
  %544 = vmatpush.msra.mxu0 %v229
  %545 = vmatpush.msra.mxu0 %v228
  %546 = vmatpush.msra.mxu0 %v227
  %547 = vmatpush.msra.mxu0 %v226
  %548 = vmatmul.f32.gmra.mxu0 %v257
  %v549 = vpop.f32.mrf.mxu0
  %v550 = vadd.f32 %v509, %v549
  %551 = vmatmul.f32.gmra.mxu0 %v267
  %v552 = vpop.f32.mrf.mxu0
  %v553 = vadd.f32 %v512, %v552
  %554 = vmatmul.f32.gmra.mxu0 %v277
  %v555 = vpop.f32.mrf.mxu0
  %v556 = vadd.f32 %v515, %v555
  %557 = vmatmul.f32.gmra.mxu0 %v287
  %v558 = vpop.f32.mrf.mxu0
  %v559 = vadd.f32 %v518, %v558
  %560 = vmatmul.f32.gmra.mxu0 %v297
  %v561 = vpop.f32.mrf.mxu0
  %v562 = vadd.f32 %v521, %v561
  %563 = vmatmul.f32.gmra.mxu0 %v307
  %v564 = vpop.f32.mrf.mxu0
  %v565 = vadd.f32 %v524, %v564
  %566 = vmatmul.f32.gmra.mxu0 %v317
  %v567 = vpop.f32.mrf.mxu0
  %v568 = vadd.f32 %v527, %v567
  %569 = vmatmul.f32.gmra.mxu0 %v327
  %v570 = vpop.f32.mrf.mxu0
  %v571 = vadd.f32 %v530, %v570
  %572 = vdwg.mxu0
  %v573 = vld [vmem:[%s2] sm:$0x1]
  %v575 = vperm.slane %v573, 0
  %v577 = vmul.f32 %v550, %v575
  %v578 = vmul.f32 %v553, %v575
  %v579 = vmul.f32 %v556, %v575
  %v580 = vmul.f32 %v559, %v575
  %v581 = vmul.f32 %v562, %v575
  %v582 = vmul.f32 %v565, %v575
  %v583 = vmul.f32 %v568, %v575
  %v584 = vmul.f32 %v571, %v575
  %v585 = vld [vmem:[%s3] sm:$0x1]
  %v587 = vperm.slane %v585, 0
  %v589 = vadd.f32 %v577, %v587
  %v590 = vadd.f32 %v578, %v587
  %v591 = vadd.f32 %v579, %v587
  %v592 = vadd.f32 %v580, %v587
  %v593 = vadd.f32 %v581, %v587
  %v594 = vadd.f32 %v582, %v587
  %v595 = vadd.f32 %v583, %v587
  %v596 = vadd.f32 %v584, %v587
  %v597 = vtanh.pop %v589
  %v598 = vtanh.pop %v590
  %v599 = vtanh.pop %v591
  %v600 = vtanh.pop %v592
  %v601 = vtanh.pop %v593
  %v602 = vtanh.pop %v594
  %v603 = vtanh.pop %v595
  %v604 = vtanh.pop %v596
  %v605 = vmul.f32 %v597, %v35
  %v606 = vmul.f32 %v598, %v40
  %v607 = vmul.f32 %v599, %v45
  %v608 = vmul.f32 %v600, %v50
  %v609 = vmul.f32 %v601, %v55
  %v610 = vmul.f32 %v602, %v60
  %v611 = vmul.f32 %v603, %v65
  %v612 = vmul.f32 %v604, %v70
  %613 = vst [vmem:[#allocation2 + $0x8] sm:$0xff] %v605
  %614 = vst [vmem:[#allocation2 + $0x10] sm:$0xff] %v606
  %615 = vst [vmem:[#allocation2 + $0x18] sm:$0xff] %v607
  %616 = vst [vmem:[#allocation2 + $0x20] sm:$0xff] %v608
  %617 = vst [vmem:[#allocation2 + $0x28] sm:$0xff] %v609
  %618 = vst [vmem:[#allocation2 + $0x30] sm:$0xff] %v610
  %619 = vst [vmem:[#allocation2 + $0x38] sm:$0xff] %v611
  %620 = vst [vmem:[#allocation2 + $0x40] sm:$0xff] %v612
  %v621 = vld [vmem:[#allocation2] sm:$0xff]
  %v622 = vld [vmem:[#allocation2 + $0x8] sm:$0xff]
  %v623 = vld [vmem:[#allocation2 + $0x10] sm:$0xff]
  %v624 = vld [vmem:[#allocation2 + $0x18] sm:$0xff]
  %v625 = vld [vmem:[#allocation2 + $0x20] sm:$0xff]
  %v626 = vld [vmem:[#allocation2 + $0x28] sm:$0xff]
  %v627 = vld [vmem:[#allocation2 + $0x30] sm:$0xff]
  %v628 = vld [vmem:[#allocation2 + $0x38] sm:$0xff]
  %v629 = vld [vmem:[#allocation2 + $0x40] sm:$0xff]
  %v630 = vld [vmem:[#allocation2 + $0x48] sm:$0xff]
  %v640 = vrot.slane %v621, 1
  %v641 = vrot.slane %v622, 1
  %v642 = vsel %vm91, %v640, %v641
  %v643 = vrot.slane %v623, 1
  %v644 = vsel %vm91, %v641, %v643
  %v645 = vrot.slane %v624, 1
  %v646 = vsel %vm91, %v643, %v645
  %v647 = vrot.slane %v625, 1
  %v648 = vsel %vm91, %v645, %v647
  %v649 = vrot.slane %v626, 1
  %v650 = vsel %vm91, %v647, %v649
  %v651 = vrot.slane %v627, 1
  %v652 = vsel %vm91, %v649, %v651
  %v653 = vrot.slane %v628, 1
  %v654 = vsel %vm91, %v651, %v653
  %v655 = vrot.slane %v629, 1
  %v656 = vsel %vm91, %v653, %v655
  %v657 = vrot.slane %v622, 2
  %v658 = vrot.slane %v623, 2
  %v659 = vsel %vm109, %v657, %v658
  %v660 = vrot.slane %v624, 2
  %v661 = vsel %vm109, %v658, %v660
  %v662 = vrot.slane %v625, 2
  %v663 = vsel %vm109, %v660, %v662
  %v664 = vrot.slane %v626, 2
  %v665 = vsel %vm109, %v662, %v664
  %v666 = vrot.slane %v627, 2
  %v667 = vsel %vm109, %v664, %v666
  %v668 = vrot.slane %v628, 2
  %v669 = vsel %vm109, %v666, %v668
  %v670 = vrot.slane %v629, 2
  %v671 = vsel %vm109, %v668, %v670
  %v673 = vrot.slane %v622, 3
  %v674 = vrot.slane %v623, 3
  %v675 = vsel %vm126, %v673, %v674
  %v676 = vrot.slane %v624, 3
  %v677 = vsel %vm126, %v674, %v676
  %v678 = vrot.slane %v625, 3
  %v679 = vsel %vm126, %v676, %v678
  %v680 = vrot.slane %v626, 3
  %v681 = vsel %vm126, %v678, %v680
  %v682 = vrot.slane %v627, 3
  %v683 = vsel %vm126, %v680, %v682
  %v684 = vrot.slane %v628, 3
  %v685 = vsel %vm126, %v682, %v684
  %v686 = vrot.slane %v629, 3
  %v687 = vsel %vm126, %v684, %v686
  %v688 = vrot.slane %v630, 3
  %v689 = vsel %vm126, %v686, %v688
  %v690 = vrot.slane %v622, 4
  %v691 = vrot.slane %v623, 4
  %v692 = vsel %vm144, %v690, %v691
  %v693 = vrot.slane %v624, 4
  %v694 = vsel %vm144, %v691, %v693
  %v695 = vrot.slane %v625, 4
  %v696 = vsel %vm144, %v693, %v695
  %v697 = vrot.slane %v626, 4
  %v698 = vsel %vm144, %v695, %v697
  %v699 = vrot.slane %v627, 4
  %v700 = vsel %vm144, %v697, %v699
  %v701 = vrot.slane %v628, 4
  %v702 = vsel %vm144, %v699, %v701
  %v703 = vrot.slane %v629, 4
  %v704 = vsel %vm144, %v701, %v703
  %v705 = vrot.slane %v630, 4
  %v706 = vsel %vm144, %v703, %v705
  %s707 = scalar_lea.vmem %s1, 640
  %v708 = vld [vmem:[%s707] sm:$0xff]
  %v709 = vld [vmem:[%s707 + $0x8] sm:$0xff]
  %v710 = vld [vmem:[%s707 + $0x10] sm:$0xff]
  %v711 = vld [vmem:[%s707 + $0x18] sm:$0xff]
  %v712 = vld [vmem:[%s707 + $0x20] sm:$0xff]
  %v713 = vld [vmem:[%s707 + $0x28] sm:$0xff]
  %v714 = vld [vmem:[%s707 + $0x30] sm:$0xff]
  %v715 = vld [vmem:[%s707 + $0x38] sm:$0xff]
  %v716 = vld [vmem:[%s707 + $0x40] sm:$0xff]
  %v717 = vld [vmem:[%s707 + $0x48] sm:$0xff]
  %v718 = vld [vmem:[%s707 + $0x50] sm:$0xff]
  %v719 = vld [vmem:[%s707 + $0x58] sm:$0xff]
  %v720 = vld [vmem:[%s707 + $0x60] sm:$0xff]
  %v721 = vld [vmem:[%s707 + $0x68] sm:$0xff]
  %v722 = vld [vmem:[%s707 + $0x70] sm:$0xff]
  %v723 = vld [vmem:[%s707 + $0x78] sm:$0xff]
  %v724 = vld [vmem:[%s707 + $0x80] sm:$0xff]
  %v725 = vld [vmem:[%s707 + $0x88] sm:$0xff]
  %v726 = vld [vmem:[%s707 + $0x90] sm:$0xff]
  %v727 = vld [vmem:[%s707 + $0x98] sm:$0xff]
  %v728 = vld [vmem:[%s707 + $0xa0] sm:$0xff]
  %v729 = vld [vmem:[%s707 + $0xa8] sm:$0xff]
  %v730 = vld [vmem:[%s707 + $0xb0] sm:$0xff]
  %v731 = vld [vmem:[%s707 + $0xb8] sm:$0xff]
  %v732 = vld [vmem:[%s707 + $0xc0] sm:$0xff]
  %v733 = vld [vmem:[%s707 + $0xc8] sm:$0xff]
  %v734 = vld [vmem:[%s707 + $0xd0] sm:$0xff]
  %v735 = vld [vmem:[%s707 + $0xd8] sm:$0xff]
  %v736 = vld [vmem:[%s707 + $0xe0] sm:$0xff]
  %v737 = vld [vmem:[%s707 + $0xe8] sm:$0xff]
  %v738 = vld [vmem:[%s707 + $0xf0] sm:$0xff]
  %v739 = vld [vmem:[%s707 + $0xf8] sm:$0xff]
  %v740 = vld [vmem:[%s707 + $0x100] sm:$0xff]
  %v741 = vld [vmem:[%s707 + $0x108] sm:$0xff]
  %v742 = vld [vmem:[%s707 + $0x110] sm:$0xff]
  %v743 = vld [vmem:[%s707 + $0x118] sm:$0xff]
  %v744 = vld [vmem:[%s707 + $0x120] sm:$0xff]
  %v745 = vld [vmem:[%s707 + $0x128] sm:$0xff]
  %v746 = vld [vmem:[%s707 + $0x130] sm:$0xff]
  %v747 = vld [vmem:[%s707 + $0x138] sm:$0xff]
  %v748 = vld [vmem:[%s707 + $0x140] sm:$0xff]
  %v749 = vld [vmem:[%s707 + $0x148] sm:$0xff]
  %v750 = vld [vmem:[%s707 + $0x150] sm:$0xff]
  %v751 = vld [vmem:[%s707 + $0x158] sm:$0xff]
  %v752 = vld [vmem:[%s707 + $0x160] sm:$0xff]
  %v753 = vld [vmem:[%s707 + $0x168] sm:$0xff]
  %v754 = vld [vmem:[%s707 + $0x170] sm:$0xff]
  %v755 = vld [vmem:[%s707 + $0x178] sm:$0xff]
  %v756 = vld [vmem:[%s707 + $0x180] sm:$0xff]
  %v757 = vld [vmem:[%s707 + $0x188] sm:$0xff]
  %v758 = vld [vmem:[%s707 + $0x190] sm:$0xff]
  %v759 = vld [vmem:[%s707 + $0x198] sm:$0xff]
  %v760 = vld [vmem:[%s707 + $0x1a0] sm:$0xff]
  %v761 = vld [vmem:[%s707 + $0x1a8] sm:$0xff]
  %v762 = vld [vmem:[%s707 + $0x1b0] sm:$0xff]
  %v763 = vld [vmem:[%s707 + $0x1b8] sm:$0xff]
  %v764 = vld [vmem:[%s707 + $0x1c0] sm:$0xff]
  %v765 = vld [vmem:[%s707 + $0x1c8] sm:$0xff]
  %v766 = vld [vmem:[%s707 + $0x1d0] sm:$0xff]
  %v767 = vld [vmem:[%s707 + $0x1d8] sm:$0xff]
  %v768 = vld [vmem:[%s707 + $0x1e0] sm:$0xff]
  %v769 = vld [vmem:[%s707 + $0x1e8] sm:$0xff]
  %v770 = vld [vmem:[%s707 + $0x1f0] sm:$0xff]
  %v771 = vld [vmem:[%s707 + $0x1f8] sm:$0xff]
  %v772 = vld [vmem:[%s707 + $0x200] sm:$0xff]
  %v773 = vld [vmem:[%s707 + $0x208] sm:$0xff]
  %v774 = vld [vmem:[%s707 + $0x210] sm:$0xff]
  %v775 = vld [vmem:[%s707 + $0x218] sm:$0xff]
  %v776 = vld [vmem:[%s707 + $0x220] sm:$0xff]
  %v777 = vld [vmem:[%s707 + $0x228] sm:$0xff]
  %v778 = vld [vmem:[%s707 + $0x230] sm:$0xff]
  %v779 = vld [vmem:[%s707 + $0x238] sm:$0xff]
  %v780 = vld [vmem:[%s707 + $0x240] sm:$0xff]
  %v781 = vld [vmem:[%s707 + $0x248] sm:$0xff]
  %v782 = vld [vmem:[%s707 + $0x250] sm:$0xff]
  %v783 = vld [vmem:[%s707 + $0x258] sm:$0xff]
  %v784 = vld [vmem:[%s707 + $0x260] sm:$0xff]
  %v785 = vld [vmem:[%s707 + $0x268] sm:$0xff]
  %v786 = vld [vmem:[%s707 + $0x270] sm:$0xff]
  %v787 = vld [vmem:[%s707 + $0x278] sm:$0xff]
  %v788 = vrot.slane %v621, 6
  %v789 = vrot.slane %v622, 6
  %v790 = vsel %vm242, %v788, %v789
  %v791 = vrot.slane %v642, 6
  %v792 = vrot.slane %v644, 6
  %v793 = vsel %vm242, %v791, %v792
  %v794 = vrot.slane %v657, 6
  %v795 = vrot.slane %v659, 6
  %v796 = vsel %vm242, %v794, %v795
  %v797 = vrot.slane %v673, 6
  %v798 = vrot.slane %v675, 6
  %v799 = vsel %vm242, %v797, %v798
  %v800 = vrot.slane %v690, 6
  %v801 = vrot.slane %v692, 6
  %v802 = vsel %vm242, %v800, %v801
  %v803 = vrot.slane %v623, 6
  %v804 = vsel %vm242, %v789, %v803
  %v805 = vrot.slane %v646, 6
  %v806 = vsel %vm242, %v792, %v805
  %v807 = vrot.slane %v661, 6
  %v808 = vsel %vm242, %v795, %v807
  %v809 = vrot.slane %v677, 6
  %v810 = vsel %vm242, %v798, %v809
  %v811 = vrot.slane %v694, 6
  %v812 = vsel %vm242, %v801, %v811
  %v813 = vrot.slane %v624, 6
  %v814 = vsel %vm242, %v803, %v813
  %v815 = vrot.slane %v648, 6
  %v816 = vsel %vm242, %v805, %v815
  %v817 = vrot.slane %v663, 6
  %v818 = vsel %vm242, %v807, %v817
  %v819 = vrot.slane %v679, 6
  %v820 = vsel %vm242, %v809, %v819
  %v821 = vrot.slane %v696, 6
  %v822 = vsel %vm242, %v811, %v821
  %v823 = vrot.slane %v625, 6
  %v824 = vsel %vm242, %v813, %v823
  %v825 = vrot.slane %v650, 6
  %v826 = vsel %vm242, %v815, %v825
  %v827 = vrot.slane %v665, 6
  %v828 = vsel %vm242, %v817, %v827
  %v829 = vrot.slane %v681, 6
  %v830 = vsel %vm242, %v819, %v829
  %v831 = vrot.slane %v698, 6
  %v832 = vsel %vm242, %v821, %v831
  %v833 = vrot.slane %v626, 6
  %v834 = vsel %vm242, %v823, %v833
  %v835 = vrot.slane %v652, 6
  %v836 = vsel %vm242, %v825, %v835
  %v837 = vrot.slane %v667, 6
  %v838 = vsel %vm242, %v827, %v837
  %v839 = vrot.slane %v683, 6
  %v840 = vsel %vm242, %v829, %v839
  %v841 = vrot.slane %v700, 6
  %v842 = vsel %vm242, %v831, %v841
  %v843 = vrot.slane %v627, 6
  %v844 = vsel %vm242, %v833, %v843
  %v845 = vrot.slane %v654, 6
  %v846 = vsel %vm242, %v835, %v845
  %v847 = vrot.slane %v669, 6
  %v848 = vsel %vm242, %v837, %v847
  %v849 = vrot.slane %v685, 6
  %v850 = vsel %vm242, %v839, %v849
  %v851 = vrot.slane %v702, 6
  %v852 = vsel %vm242, %v841, %v851
  %v853 = vrot.slane %v628, 6
  %v854 = vsel %vm242, %v843, %v853
  %v855 = vrot.slane %v656, 6
  %v856 = vsel %vm242, %v845, %v855
  %v857 = vrot.slane %v671, 6
  %v858 = vsel %vm242, %v847, %v857
  %v859 = vrot.slane %v687, 6
  %v860 = vsel %vm242, %v849, %v859
  %v861 = vrot.slane %v704, 6
  %v862 = vsel %vm242, %v851, %v861
  %v863 = vrot.slane %v629, 6
  %v864 = vsel %vm242, %v853, %v863
  %v865 = vrot.slane %v655, 6
  %v866 = vsel %vm242, %v855, %v865
  %v867 = vrot.slane %v670, 6
  %v868 = vsel %vm242, %v857, %v867
  %v869 = vrot.slane %v689, 6
  %v870 = vsel %vm242, %v859, %v869
  %v871 = vrot.slane %v706, 6
  %v872 = vsel %vm242, %v861, %v871
  %913 = vmatpush.msra.mxu0 %v723
  %914 = vmatpush.msra.mxu0 %v722
  %915 = vmatpush.msra.mxu0 %v721
  %916 = vmatpush.msra.mxu0 %v720
  %917 = vmatpush.msra.mxu0 %v719
  %918 = vmatpush.msra.mxu0 %v718
  %919 = vmatpush.msra.mxu0 %v717
  %920 = vmatpush.msra.mxu0 %v716
  %921 = vmatpush.msra.mxu0 %v715
  %922 = vmatpush.msra.mxu0 %v714
  %923 = vmatpush.msra.mxu0 %v713
  %924 = vmatpush.msra.mxu0 %v712
  %925 = vmatpush.msra.mxu0 %v711
  %926 = vmatpush.msra.mxu0 %v710
  %927 = vmatpush.msra.mxu0 %v709
  %928 = vmatpush.msra.mxu0 %v708
  %929 = vmatmul.f32.gmra.mxu0 %v790
  %v930 = vpop.f32.mrf.mxu0
  %v931 = vadd.f32 0.0, %v930
  %932 = vmatmul.f32.gmra.mxu0 %v804
  %v933 = vpop.f32.mrf.mxu0
  %v934 = vadd.f32 0.0, %v933
  %935 = vmatmul.f32.gmra.mxu0 %v814
  %v936 = vpop.f32.mrf.mxu0
  %v937 = vadd.f32 0.0, %v936
  %938 = vmatmul.f32.gmra.mxu0 %v824
  %v939 = vpop.f32.mrf.mxu0
  %v940 = vadd.f32 0.0, %v939
  %941 = vmatmul.f32.gmra.mxu0 %v834
  %v942 = vpop.f32.mrf.mxu0
  %v943 = vadd.f32 0.0, %v942
  %944 = vmatmul.f32.gmra.mxu0 %v844
  %v945 = vpop.f32.mrf.mxu0
  %v946 = vadd.f32 0.0, %v945
  %947 = vmatmul.f32.gmra.mxu0 %v854
  %v948 = vpop.f32.mrf.mxu0
  %v949 = vadd.f32 0.0, %v948
  %950 = vmatmul.f32.gmra.mxu0 %v864
  %v951 = vpop.f32.mrf.mxu0
  %v952 = vadd.f32 0.0, %v951
  %953 = vdwg.mxu0
  %954 = vmatpush.msra.mxu0 %v739
  %955 = vmatpush.msra.mxu0 %v738
  %956 = vmatpush.msra.mxu0 %v737
  %957 = vmatpush.msra.mxu0 %v736
  %958 = vmatpush.msra.mxu0 %v735
  %959 = vmatpush.msra.mxu0 %v734
  %960 = vmatpush.msra.mxu0 %v733
  %961 = vmatpush.msra.mxu0 %v732
  %962 = vmatpush.msra.mxu0 %v731
  %963 = vmatpush.msra.mxu0 %v730
  %964 = vmatpush.msra.mxu0 %v729
  %965 = vmatpush.msra.mxu0 %v728
  %966 = vmatpush.msra.mxu0 %v727
  %967 = vmatpush.msra.mxu0 %v726
  %968 = vmatpush.msra.mxu0 %v725
  %969 = vmatpush.msra.mxu0 %v724
  %970 = vmatmul.f32.gmra.mxu0 %v793
  %v971 = vpop.f32.mrf.mxu0
  %v972 = vadd.f32 %v931, %v971
  %973 = vmatmul.f32.gmra.mxu0 %v806
  %v974 = vpop.f32.mrf.mxu0
  %v975 = vadd.f32 %v934, %v974
  %976 = vmatmul.f32.gmra.mxu0 %v816
  %v977 = vpop.f32.mrf.mxu0
  %v978 = vadd.f32 %v937, %v977
  %979 = vmatmul.f32.gmra.mxu0 %v826
  %v980 = vpop.f32.mrf.mxu0
  %v981 = vadd.f32 %v940, %v980
  %982 = vmatmul.f32.gmra.mxu0 %v836
  %v983 = vpop.f32.mrf.mxu0
  %v984 = vadd.f32 %v943, %v983
  %985 = vmatmul.f32.gmra.mxu0 %v846
  %v986 = vpop.f32.mrf.mxu0
  %v987 = vadd.f32 %v946, %v986
  %988 = vmatmul.f32.gmra.mxu0 %v856
  %v989 = vpop.f32.mrf.mxu0
  %v990 = vadd.f32 %v949, %v989
  %991 = vmatmul.f32.gmra.mxu0 %v866
  %v992 = vpop.f32.mrf.mxu0
  %v993 = vadd.f32 %v952, %v992
  %994 = vdwg.mxu0
  %995 = vmatpush.msra.mxu0 %v755
  %996 = vmatpush.msra.mxu0 %v754
  %997 = vmatpush.msra.mxu0 %v753
  %998 = vmatpush.msra.mxu0 %v752
  %999 = vmatpush.msra.mxu0 %v751
  %1000 = vmatpush.msra.mxu0 %v750
  %1001 = vmatpush.msra.mxu0 %v749
  %1002 = vmatpush.msra.mxu0 %v748
  %1003 = vmatpush.msra.mxu0 %v747
  %1004 = vmatpush.msra.mxu0 %v746
  %1005 = vmatpush.msra.mxu0 %v745
  %1006 = vmatpush.msra.mxu0 %v744
  %1007 = vmatpush.msra.mxu0 %v743
  %1008 = vmatpush.msra.mxu0 %v742
  %1009 = vmatpush.msra.mxu0 %v741
  %1010 = vmatpush.msra.mxu0 %v740
  %1011 = vmatmul.f32.gmra.mxu0 %v796
  %v1012 = vpop.f32.mrf.mxu0
  %v1013 = vadd.f32 %v972, %v1012
  %1014 = vmatmul.f32.gmra.mxu0 %v808
  %v1015 = vpop.f32.mrf.mxu0
  %v1016 = vadd.f32 %v975, %v1015
  %1017 = vmatmul.f32.gmra.mxu0 %v818
  %v1018 = vpop.f32.mrf.mxu0
  %v1019 = vadd.f32 %v978, %v1018
  %1020 = vmatmul.f32.gmra.mxu0 %v828
  %v1021 = vpop.f32.mrf.mxu0
  %v1022 = vadd.f32 %v981, %v1021
  %1023 = vmatmul.f32.gmra.mxu0 %v838
  %v1024 = vpop.f32.mrf.mxu0
  %v1025 = vadd.f32 %v984, %v1024
  %1026 = vmatmul.f32.gmra.mxu0 %v848
  %v1027 = vpop.f32.mrf.mxu0
  %v1028 = vadd.f32 %v987, %v1027
  %1029 = vmatmul.f32.gmra.mxu0 %v858
  %v1030 = vpop.f32.mrf.mxu0
  %v1031 = vadd.f32 %v990, %v1030
  %1032 = vmatmul.f32.gmra.mxu0 %v868
  %v1033 = vpop.f32.mrf.mxu0
  %v1034 = vadd.f32 %v993, %v1033
  %1035 = vdwg.mxu0
  %1036 = vmatpush.msra.mxu0 %v771
  %1037 = vmatpush.msra.mxu0 %v770
  %1038 = vmatpush.msra.mxu0 %v769
  %1039 = vmatpush.msra.mxu0 %v768
  %1040 = vmatpush.msra.mxu0 %v767
  %1041 = vmatpush.msra.mxu0 %v766
  %1042 = vmatpush.msra.mxu0 %v765
  %1043 = vmatpush.msra.mxu0 %v764
  %1044 = vmatpush.msra.mxu0 %v763
  %1045 = vmatpush.msra.mxu0 %v762
  %1046 = vmatpush.msra.mxu0 %v761
  %1047 = vmatpush.msra.mxu0 %v760
  %1048 = vmatpush.msra.mxu0 %v759
  %1049 = vmatpush.msra.mxu0 %v758
  %1050 = vmatpush.msra.mxu0 %v757
  %1051 = vmatpush.msra.mxu0 %v756
  %1052 = vmatmul.f32.gmra.mxu0 %v799
  %v1053 = vpop.f32.mrf.mxu0
  %v1054 = vadd.f32 %v1013, %v1053
  %1055 = vmatmul.f32.gmra.mxu0 %v810
  %v1056 = vpop.f32.mrf.mxu0
  %v1057 = vadd.f32 %v1016, %v1056
  %1058 = vmatmul.f32.gmra.mxu0 %v820
  %v1059 = vpop.f32.mrf.mxu0
  %v1060 = vadd.f32 %v1019, %v1059
  %1061 = vmatmul.f32.gmra.mxu0 %v830
  %v1062 = vpop.f32.mrf.mxu0
  %v1063 = vadd.f32 %v1022, %v1062
  %1064 = vmatmul.f32.gmra.mxu0 %v840
  %v1065 = vpop.f32.mrf.mxu0
  %v1066 = vadd.f32 %v1025, %v1065
  %1067 = vmatmul.f32.gmra.mxu0 %v850
  %v1068 = vpop.f32.mrf.mxu0
  %v1069 = vadd.f32 %v1028, %v1068
  %1070 = vmatmul.f32.gmra.mxu0 %v860
  %v1071 = vpop.f32.mrf.mxu0
  %v1072 = vadd.f32 %v1031, %v1071
  %1073 = vmatmul.f32.gmra.mxu0 %v870
  %v1074 = vpop.f32.mrf.mxu0
  %v1075 = vadd.f32 %v1034, %v1074
  %1076 = vdwg.mxu0
  %1077 = vmatpush.msra.mxu0 %v787
  %1078 = vmatpush.msra.mxu0 %v786
  %1079 = vmatpush.msra.mxu0 %v785
  %1080 = vmatpush.msra.mxu0 %v784
  %1081 = vmatpush.msra.mxu0 %v783
  %1082 = vmatpush.msra.mxu0 %v782
  %1083 = vmatpush.msra.mxu0 %v781
  %1084 = vmatpush.msra.mxu0 %v780
  %1085 = vmatpush.msra.mxu0 %v779
  %1086 = vmatpush.msra.mxu0 %v778
  %1087 = vmatpush.msra.mxu0 %v777
  %1088 = vmatpush.msra.mxu0 %v776
  %1089 = vmatpush.msra.mxu0 %v775
  %1090 = vmatpush.msra.mxu0 %v774
  %1091 = vmatpush.msra.mxu0 %v773
  %1092 = vmatpush.msra.mxu0 %v772
  %1093 = vmatmul.f32.gmra.mxu0 %v802
  %v1094 = vpop.f32.mrf.mxu0
  %v1095 = vadd.f32 %v1054, %v1094
  %1096 = vmatmul.f32.gmra.mxu0 %v812
  %v1097 = vpop.f32.mrf.mxu0
  %v1098 = vadd.f32 %v1057, %v1097
  %1099 = vmatmul.f32.gmra.mxu0 %v822
  %v1100 = vpop.f32.mrf.mxu0
  %v1101 = vadd.f32 %v1060, %v1100
  %1102 = vmatmul.f32.gmra.mxu0 %v832
  %v1103 = vpop.f32.mrf.mxu0
  %v1104 = vadd.f32 %v1063, %v1103
  %1105 = vmatmul.f32.gmra.mxu0 %v842
  %v1106 = vpop.f32.mrf.mxu0
  %v1107 = vadd.f32 %v1066, %v1106
  %1108 = vmatmul.f32.gmra.mxu0 %v852
  %v1109 = vpop.f32.mrf.mxu0
  %v1110 = vadd.f32 %v1069, %v1109
  %1111 = vmatmul.f32.gmra.mxu0 %v862
  %v1112 = vpop.f32.mrf.mxu0
  %v1113 = vadd.f32 %v1072, %v1112
  %1114 = vmatmul.f32.gmra.mxu0 %v872
  %v1115 = vpop.f32.mrf.mxu0
  %v1116 = vadd.f32 %v1075, %v1115
  %1117 = vdwg.mxu0
  %s1118 = scalar_lea.vmem %s2, 1
  %v1119 = vld [vmem:[%s1118] sm:$0x1]
  %v1121 = vperm.slane %v1119, 0
  %v1123 = vmul.f32 %v1095, %v1121
  %v1124 = vmul.f32 %v1098, %v1121
  %v1125 = vmul.f32 %v1101, %v1121
  %v1126 = vmul.f32 %v1104, %v1121
  %v1127 = vmul.f32 %v1107, %v1121
  %v1128 = vmul.f32 %v1110, %v1121
  %v1129 = vmul.f32 %v1113, %v1121
  %v1130 = vmul.f32 %v1116, %v1121
  %s1131 = scalar_lea.vmem %s3, 1
  %v1132 = vld [vmem:[%s1131] sm:$0x1]
  %v1134 = vperm.slane %v1132, 0
  %v1136 = vadd.f32 %v1123, %v1134
  %v1137 = vadd.f32 %v1124, %v1134
  %v1138 = vadd.f32 %v1125, %v1134
  %v1139 = vadd.f32 %v1126, %v1134
  %v1140 = vadd.f32 %v1127, %v1134
  %v1141 = vadd.f32 %v1128, %v1134
  %v1142 = vadd.f32 %v1129, %v1134
  %v1143 = vadd.f32 %v1130, %v1134
  %v1144 = vtanh.pop %v1136
  %v1145 = vtanh.pop %v1137
  %v1146 = vtanh.pop %v1138
  %v1147 = vtanh.pop %v1139
  %v1148 = vtanh.pop %v1140
  %v1149 = vtanh.pop %v1141
  %v1150 = vtanh.pop %v1142
  %v1151 = vtanh.pop %v1143
  %v1152 = vmul.f32 %v1144, %v35
  %v1153 = vmul.f32 %v1145, %v40
  %v1154 = vmul.f32 %v1146, %v45
  %v1155 = vmul.f32 %v1147, %v50
  %v1156 = vmul.f32 %v1148, %v55
  %v1157 = vmul.f32 %v1149, %v60
  %v1158 = vmul.f32 %v1150, %v65
  %v1159 = vmul.f32 %v1151, %v70
  %1160 = vst [vmem:[#allocation3 + $0x8] sm:$0xff] %v1152
  %1161 = vst [vmem:[#allocation3 + $0x10] sm:$0xff] %v1153
  %1162 = vst [vmem:[#allocation3 + $0x18] sm:$0xff] %v1154
  %1163 = vst [vmem:[#allocation3 + $0x20] sm:$0xff] %v1155
  %1164 = vst [vmem:[#allocation3 + $0x28] sm:$0xff] %v1156
  %1165 = vst [vmem:[#allocation3 + $0x30] sm:$0xff] %v1157
  %1166 = vst [vmem:[#allocation3 + $0x38] sm:$0xff] %v1158
  %1167 = vst [vmem:[#allocation3 + $0x40] sm:$0xff] %v1159
  %v1168 = vld [vmem:[#allocation3] sm:$0xff]
  %v1169 = vld [vmem:[#allocation3 + $0x8] sm:$0xff]
  %v1170 = vld [vmem:[#allocation3 + $0x10] sm:$0xff]
  %v1171 = vld [vmem:[#allocation3 + $0x18] sm:$0xff]
  %v1172 = vld [vmem:[#allocation3 + $0x20] sm:$0xff]
  %v1173 = vld [vmem:[#allocation3 + $0x28] sm:$0xff]
  %v1174 = vld [vmem:[#allocation3 + $0x30] sm:$0xff]
  %v1175 = vld [vmem:[#allocation3 + $0x38] sm:$0xff]
  %v1176 = vld [vmem:[#allocation3 + $0x40] sm:$0xff]
  %v1177 = vld [vmem:[#allocation3 + $0x48] sm:$0xff]
  %v1187 = vrot.slane %v1168, 1
  %v1188 = vrot.slane %v1169, 1
  %v1189 = vsel %vm91, %v1187, %v1188
  %v1190 = vrot.slane %v1170, 1
  %v1191 = vsel %vm91, %v1188, %v1190
  %v1192 = vrot.slane %v1171, 1
  %v1193 = vsel %vm91, %v1190, %v1192
  %v1194 = vrot.slane %v1172, 1
  %v1195 = vsel %vm91, %v1192, %v1194
  %v1196 = vrot.slane %v1173, 1
  %v1197 = vsel %vm91, %v1194, %v1196
  %v1198 = vrot.slane %v1174, 1
  %v1199 = vsel %vm91, %v1196, %v1198
  %v1200 = vrot.slane %v1175, 1
  %v1201 = vsel %vm91, %v1198, %v1200
  %v1202 = vrot.slane %v1176, 1
  %v1203 = vsel %vm91, %v1200, %v1202
  %v1204 = vrot.slane %v1169, 2
  %v1205 = vrot.slane %v1170, 2
  %v1206 = vsel %vm109, %v1204, %v1205
  %v1207 = vrot.slane %v1171, 2
  %v1208 = vsel %vm109, %v1205, %v1207
  %v1209 = vrot.slane %v1172, 2
  %v1210 = vsel %vm109, %v1207, %v1209
  %v1211 = vrot.slane %v1173, 2
  %v1212 = vsel %vm109, %v1209, %v1211
  %v1213 = vrot.slane %v1174, 2
  %v1214 = vsel %vm109, %v1211, %v1213
  %v1215 = vrot.slane %v1175, 2
  %v1216 = vsel %vm109, %v1213, %v1215
  %v1217 = vrot.slane %v1176, 2
  %v1218 = vsel %vm109, %v1215, %v1217
  %v1220 = vrot.slane %v1169, 3
  %v1221 = vrot.slane %v1170, 3
  %v1222 = vsel %vm126, %v1220, %v1221
  %v1223 = vrot.slane %v1171, 3
  %v1224 = vsel %vm126, %v1221, %v1223
  %v1225 = vrot.slane %v1172, 3
  %v1226 = vsel %vm126, %v1223, %v1225
  %v1227 = vrot.slane %v1173, 3
  %v1228 = vsel %vm126, %v1225, %v1227
  %v1229 = vrot.slane %v1174, 3
  %v1230 = vsel %vm126, %v1227, %v1229
  %v1231 = vrot.slane %v1175, 3
  %v1232 = vsel %vm126, %v1229, %v1231
  %v1233 = vrot.slane %v1176, 3
  %v1234 = vsel %vm126, %v1231, %v1233
  %v1235 = vrot.slane %v1177, 3
  %v1236 = vsel %vm126, %v1233, %v1235
  %v1237 = vrot.slane %v1169, 4
  %v1238 = vrot.slane %v1170, 4
  %v1239 = vsel %vm144, %v1237, %v1238
  %v1240 = vrot.slane %v1171, 4
  %v1241 = vsel %vm144, %v1238, %v1240
  %v1242 = vrot.slane %v1172, 4
  %v1243 = vsel %vm144, %v1240, %v1242
  %v1244 = vrot.slane %v1173, 4
  %v1245 = vsel %vm144, %v1242, %v1244
  %v1246 = vrot.slane %v1174, 4
  %v1247 = vsel %vm144, %v1244, %v1246
  %v1248 = vrot.slane %v1175, 4
  %v1249 = vsel %vm144, %v1246, %v1248
  %v1250 = vrot.slane %v1176, 4
  %v1251 = vsel %vm144, %v1248, %v1250
  %v1252 = vrot.slane %v1177, 4
  %v1253 = vsel %vm144, %v1250, %v1252
  %s1254 = scalar_lea.vmem %s1, 1280
  %v1255 = vld [vmem:[%s1254] sm:$0xff]
  %v1256 = vld [vmem:[%s1254 + $0x8] sm:$0xff]
  %v1257 = vld [vmem:[%s1254 + $0x10] sm:$0xff]
  %v1258 = vld [vmem:[%s1254 + $0x18] sm:$0xff]
  %v1259 = vld [vmem:[%s1254 + $0x20] sm:$0xff]
  %v1260 = vld [vmem:[%s1254 + $0x28] sm:$0xff]
  %v1261 = vld [vmem:[%s1254 + $0x30] sm:$0xff]
  %v1262 = vld [vmem:[%s1254 + $0x38] sm:$0xff]
  %v1263 = vld [vmem:[%s1254 + $0x40] sm:$0xff]
  %v1264 = vld [vmem:[%s1254 + $0x48] sm:$0xff]
  %v1265 = vld [vmem:[%s1254 + $0x50] sm:$0xff]
  %v1266 = vld [vmem:[%s1254 + $0x58] sm:$0xff]
  %v1267 = vld [vmem:[%s1254 + $0x60] sm:$0xff]
  %v1268 = vld [vmem:[%s1254 + $0x68] sm:$0xff]
  %v1269 = vld [vmem:[%s1254 + $0x70] sm:$0xff]
  %v1270 = vld [vmem:[%s1254 + $0x78] sm:$0xff]
  %v1271 = vld [vmem:[%s1254 + $0x80] sm:$0xff]
  %v1272 = vld [vmem:[%s1254 + $0x88] sm:$0xff]
  %v1273 = vld [vmem:[%s1254 + $0x90] sm:$0xff]
  %v1274 = vld [vmem:[%s1254 + $0x98] sm:$0xff]
  %v1275 = vld [vmem:[%s1254 + $0xa0] sm:$0xff]
  %v1276 = vld [vmem:[%s1254 + $0xa8] sm:$0xff]
  %v1277 = vld [vmem:[%s1254 + $0xb0] sm:$0xff]
  %v1278 = vld [vmem:[%s1254 + $0xb8] sm:$0xff]
  %v1279 = vld [vmem:[%s1254 + $0xc0] sm:$0xff]
  %v1280 = vld [vmem:[%s1254 + $0xc8] sm:$0xff]
  %v1281 = vld [vmem:[%s1254 + $0xd0] sm:$0xff]
  %v1282 = vld [vmem:[%s1254 + $0xd8] sm:$0xff]
  %v1283 = vld [vmem:[%s1254 + $0xe0] sm:$0xff]
  %v1284 = vld [vmem:[%s1254 + $0xe8] sm:$0xff]
  %v1285 = vld [vmem:[%s1254 + $0xf0] sm:$0xff]
  %v1286 = vld [vmem:[%s1254 + $0xf8] sm:$0xff]
  %v1287 = vld [vmem:[%s1254 + $0x100] sm:$0xff]
  %v1288 = vld [vmem:[%s1254 + $0x108] sm:$0xff]
  %v1289 = vld [vmem:[%s1254 + $0x110] sm:$0xff]
  %v1290 = vld [vmem:[%s1254 + $0x118] sm:$0xff]
  %v1291 = vld [vmem:[%s1254 + $0x120] sm:$0xff]
  %v1292 = vld [vmem:[%s1254 + $0x128] sm:$0xff]
  %v1293 = vld [vmem:[%s1254 + $0x130] sm:$0xff]
  %v1294 = vld [vmem:[%s1254 + $0x138] sm:$0xff]
  %v1295 = vld [vmem:[%s1254 + $0x140] sm:$0xff]
  %v1296 = vld [vmem:[%s1254 + $0x148] sm:$0xff]
  %v1297 = vld [vmem:[%s1254 + $0x150] sm:$0xff]
  %v1298 = vld [vmem:[%s1254 + $0x158] sm:$0xff]
  %v1299 = vld [vmem:[%s1254 + $0x160] sm:$0xff]
  %v1300 = vld [vmem:[%s1254 + $0x168] sm:$0xff]
  %v1301 = vld [vmem:[%s1254 + $0x170] sm:$0xff]
  %v1302 = vld [vmem:[%s1254 + $0x178] sm:$0xff]
  %v1303 = vld [vmem:[%s1254 + $0x180] sm:$0xff]
  %v1304 = vld [vmem:[%s1254 + $0x188] sm:$0xff]
  %v1305 = vld [vmem:[%s1254 + $0x190] sm:$0xff]
  %v1306 = vld [vmem:[%s1254 + $0x198] sm:$0xff]
  %v1307 = vld [vmem:[%s1254 + $0x1a0] sm:$0xff]
  %v1308 = vld [vmem:[%s1254 + $0x1a8] sm:$0xff]
  %v1309 = vld [vmem:[%s1254 + $0x1b0] sm:$0xff]
  %v1310 = vld [vmem:[%s1254 + $0x1b8] sm:$0xff]
  %v1311 = vld [vmem:[%s1254 + $0x1c0] sm:$0xff]
  %v1312 = vld [vmem:[%s1254 + $0x1c8] sm:$0xff]
  %v1313 = vld [vmem:[%s1254 + $0x1d0] sm:$0xff]
  %v1314 = vld [vmem:[%s1254 + $0x1d8] sm:$0xff]
  %v1315 = vld [vmem:[%s1254 + $0x1e0] sm:$0xff]
  %v1316 = vld [vmem:[%s1254 + $0x1e8] sm:$0xff]
  %v1317 = vld [vmem:[%s1254 + $0x1f0] sm:$0xff]
  %v1318 = vld [vmem:[%s1254 + $0x1f8] sm:$0xff]
  %v1319 = vld [vmem:[%s1254 + $0x200] sm:$0xff]
  %v1320 = vld [vmem:[%s1254 + $0x208] sm:$0xff]
  %v1321 = vld [vmem:[%s1254 + $0x210] sm:$0xff]
  %v1322 = vld [vmem:[%s1254 + $0x218] sm:$0xff]
  %v1323 = vld [vmem:[%s1254 + $0x220] sm:$0xff]
  %v1324 = vld [vmem:[%s1254 + $0x228] sm:$0xff]
  %v1325 = vld [vmem:[%s1254 + $0x230] sm:$0xff]
  %v1326 = vld [vmem:[%s1254 + $0x238] sm:$0xff]
  %v1327 = vld [vmem:[%s1254 + $0x240] sm:$0xff]
  %v1328 = vld [vmem:[%s1254 + $0x248] sm:$0xff]
  %v1329 = vld [vmem:[%s1254 + $0x250] sm:$0xff]
  %v1330 = vld [vmem:[%s1254 + $0x258] sm:$0xff]
  %v1331 = vld [vmem:[%s1254 + $0x260] sm:$0xff]
  %v1332 = vld [vmem:[%s1254 + $0x268] sm:$0xff]
  %v1333 = vld [vmem:[%s1254 + $0x270] sm:$0xff]
  %v1334 = vld [vmem:[%s1254 + $0x278] sm:$0xff]
  %v1335 = vrot.slane %v1168, 6
  %v1336 = vrot.slane %v1169, 6
  %v1337 = vsel %vm242, %v1335, %v1336
  %v1338 = vrot.slane %v1189, 6
  %v1339 = vrot.slane %v1191, 6
  %v1340 = vsel %vm242, %v1338, %v1339
  %v1341 = vrot.slane %v1204, 6
  %v1342 = vrot.slane %v1206, 6
  %v1343 = vsel %vm242, %v1341, %v1342
  %v1344 = vrot.slane %v1220, 6
  %v1345 = vrot.slane %v1222, 6
  %v1346 = vsel %vm242, %v1344, %v1345
  %v1347 = vrot.slane %v1237, 6
  %v1348 = vrot.slane %v1239, 6
  %v1349 = vsel %vm242, %v1347, %v1348
  %v1350 = vrot.slane %v1170, 6
  %v1351 = vsel %vm242, %v1336, %v1350
  %v1352 = vrot.slane %v1193, 6
  %v1353 = vsel %vm242, %v1339, %v1352
  %v1354 = vrot.slane %v1208, 6
  %v1355 = vsel %vm242, %v1342, %v1354
  %v1356 = vrot.slane %v1224, 6
  %v1357 = vsel %vm242, %v1345, %v1356
  %v1358 = vrot.slane %v1241, 6
  %v1359 = vsel %vm242, %v1348, %v1358
  %v1360 = vrot.slane %v1171, 6
  %v1361 = vsel %vm242, %v1350, %v1360
  %v1362 = vrot.slane %v1195, 6
  %v1363 = vsel %vm242, %v1352, %v1362
  %v1364 = vrot.slane %v1210, 6
  %v1365 = vsel %vm242, %v1354, %v1364
  %v1366 = vrot.slane %v1226, 6
  %v1367 = vsel %vm242, %v1356, %v1366
  %v1368 = vrot.slane %v1243, 6
  %v1369 = vsel %vm242, %v1358, %v1368
  %v1370 = vrot.slane %v1172, 6
  %v1371 = vsel %vm242, %v1360, %v1370
  %v1372 = vrot.slane %v1197, 6
  %v1373 = vsel %vm242, %v1362, %v1372
  %v1374 = vrot.slane %v1212, 6
  %v1375 = vsel %vm242, %v1364, %v1374
  %v1376 = vrot.slane %v1228, 6
  %v1377 = vsel %vm242, %v1366, %v1376
  %v1378 = vrot.slane %v1245, 6
  %v1379 = vsel %vm242, %v1368, %v1378
  %v1380 = vrot.slane %v1173, 6
  %v1381 = vsel %vm242, %v1370, %v1380
  %v1382 = vrot.slane %v1199, 6
  %v1383 = vsel %vm242, %v1372, %v1382
  %v1384 = vrot.slane %v1214, 6
  %v1385 = vsel %vm242, %v1374, %v1384
  %v1386 = vrot.slane %v1230, 6
  %v1387 = vsel %vm242, %v1376, %v1386
  %v1388 = vrot.slane %v1247, 6
  %v1389 = vsel %vm242, %v1378, %v1388
  %v1390 = vrot.slane %v1174, 6
  %v1391 = vsel %vm242, %v1380, %v1390
  %v1392 = vrot.slane %v1201, 6
  %v1393 = vsel %vm242, %v1382, %v1392
  %v1394 = vrot.slane %v1216, 6
  %v1395 = vsel %vm242, %v1384, %v1394
  %v1396 = vrot.slane %v1232, 6
  %v1397 = vsel %vm242, %v1386, %v1396
  %v1398 = vrot.slane %v1249, 6
  %v1399 = vsel %vm242, %v1388, %v1398
  %v1400 = vrot.slane %v1175, 6
  %v1401 = vsel %vm242, %v1390, %v1400
  %v1402 = vrot.slane %v1203, 6
  %v1403 = vsel %vm242, %v1392, %v1402
  %v1404 = vrot.slane %v1218, 6
  %v1405 = vsel %vm242, %v1394, %v1404
  %v1406 = vrot.slane %v1234, 6
  %v1407 = vsel %vm242, %v1396, %v1406
  %v1408 = vrot.slane %v1251, 6
  %v1409 = vsel %vm242, %v1398, %v1408
  %v1410 = vrot.slane %v1176, 6
  %v1411 = vsel %vm242, %v1400, %v1410
  %v1412 = vrot.slane %v1202, 6
  %v1413 = vsel %vm242, %v1402, %v1412
  %v1414 = vrot.slane %v1217, 6
  %v1415 = vsel %vm242, %v1404, %v1414
  %v1416 = vrot.slane %v1236, 6
  %v1417 = vsel %vm242, %v1406, %v1416
  %v1418 = vrot.slane %v1253, 6
  %v1419 = vsel %vm242, %v1408, %v1418
  %1460 = vmatpush.msra.mxu0 %v1270
  %1461 = vmatpush.msra.mxu0 %v1269
  %1462 = vmatpush.msra.mxu0 %v1268
  %1463 = vmatpush.msra.mxu0 %v1267
  %1464 = vmatpush.msra.mxu0 %v1266
  %1465 = vmatpush.msra.mxu0 %v1265
  %1466 = vmatpush.msra.mxu0 %v1264
  %1467 = vmatpush.msra.mxu0 %v1263
  %1468 = vmatpush.msra.mxu0 %v1262
  %1469 = vmatpush.msra.mxu0 %v1261
  %1470 = vmatpush.msra.mxu0 %v1260
  %1471 = vmatpush.msra.mxu0 %v1259
  %1472 = vmatpush.msra.mxu0 %v1258
  %1473 = vmatpush.msra.mxu0 %v1257
  %1474 = vmatpush.msra.mxu0 %v1256
  %1475 = vmatpush.msra.mxu0 %v1255
  %1476 = vmatmul.f32.gmra.mxu0 %v1337
  %v1477 = vpop.f32.mrf.mxu0
  %v1478 = vadd.f32 0.0, %v1477
  %1479 = vmatmul.f32.gmra.mxu0 %v1351
  %v1480 = vpop.f32.mrf.mxu0
  %v1481 = vadd.f32 0.0, %v1480
  %1482 = vmatmul.f32.gmra.mxu0 %v1361
  %v1483 = vpop.f32.mrf.mxu0
  %v1484 = vadd.f32 0.0, %v1483
  %1485 = vmatmul.f32.gmra.mxu0 %v1371
  %v1486 = vpop.f32.mrf.mxu0
  %v1487 = vadd.f32 0.0, %v1486
  %1488 = vmatmul.f32.gmra.mxu0 %v1381
  %v1489 = vpop.f32.mrf.mxu0
  %v1490 = vadd.f32 0.0, %v1489
  %1491 = vmatmul.f32.gmra.mxu0 %v1391
  %v1492 = vpop.f32.mrf.mxu0
  %v1493 = vadd.f32 0.0, %v1492
  %1494 = vmatmul.f32.gmra.mxu0 %v1401
  %v1495 = vpop.f32.mrf.mxu0
  %v1496 = vadd.f32 0.0, %v1495
  %1497 = vmatmul.f32.gmra.mxu0 %v1411
  %v1498 = vpop.f32.mrf.mxu0
  %v1499 = vadd.f32 0.0, %v1498
  %1500 = vdwg.mxu0
  %1501 = vmatpush.msra.mxu0 %v1286
  %1502 = vmatpush.msra.mxu0 %v1285
  %1503 = vmatpush.msra.mxu0 %v1284
  %1504 = vmatpush.msra.mxu0 %v1283
  %1505 = vmatpush.msra.mxu0 %v1282
  %1506 = vmatpush.msra.mxu0 %v1281
  %1507 = vmatpush.msra.mxu0 %v1280
  %1508 = vmatpush.msra.mxu0 %v1279
  %1509 = vmatpush.msra.mxu0 %v1278
  %1510 = vmatpush.msra.mxu0 %v1277
  %1511 = vmatpush.msra.mxu0 %v1276
  %1512 = vmatpush.msra.mxu0 %v1275
  %1513 = vmatpush.msra.mxu0 %v1274
  %1514 = vmatpush.msra.mxu0 %v1273
  %1515 = vmatpush.msra.mxu0 %v1272
  %1516 = vmatpush.msra.mxu0 %v1271
  %1517 = vmatmul.f32.gmra.mxu0 %v1340
  %v1518 = vpop.f32.mrf.mxu0
  %v1519 = vadd.f32 %v1478, %v1518
  %1520 = vmatmul.f32.gmra.mxu0 %v1353
  %v1521 = vpop.f32.mrf.mxu0
  %v1522 = vadd.f32 %v1481, %v1521
  %1523 = vmatmul.f32.gmra.mxu0 %v1363
  %v1524 = vpop.f32.mrf.mxu0
  %v1525 = vadd.f32 %v1484, %v1524
  %1526 = vmatmul.f32.gmra.mxu0 %v1373
  %v1527 = vpop.f32.mrf.mxu0
  %v1528 = vadd.f32 %v1487, %v1527
  %1529 = vmatmul.f32.gmra.mxu0 %v1383
  %v1530 = vpop.f32.mrf.mxu0
  %v1531 = vadd.f32 %v1490, %v1530
  %1532 = vmatmul.f32.gmra.mxu0 %v1393
  %v1533 = vpop.f32.mrf.mxu0
  %v1534 = vadd.f32 %v1493, %v1533
  %1535 = vmatmul.f32.gmra.mxu0 %v1403
  %v1536 = vpop.f32.mrf.mxu0
  %v1537 = vadd.f32 %v1496, %v1536
  %1538 = vmatmul.f32.gmra.mxu0 %v1413
  %v1539 = vpop.f32.mrf.mxu0
  %v1540 = vadd.f32 %v1499, %v1539
  %1541 = vdwg.mxu0
  %1542 = vmatpush.msra.mxu0 %v1302
  %1543 = vmatpush.msra.mxu0 %v1301
  %1544 = vmatpush.msra.mxu0 %v1300
  %1545 = vmatpush.msra.mxu0 %v1299
  %1546 = vmatpush.msra.mxu0 %v1298
  %1547 = vmatpush.msra.mxu0 %v1297
  %1548 = vmatpush.msra.mxu0 %v1296
  %1549 = vmatpush.msra.mxu0 %v1295
  %1550 = vmatpush.msra.mxu0 %v1294
  %1551 = vmatpush.msra.mxu0 %v1293
  %1552 = vmatpush.msra.mxu0 %v1292
  %1553 = vmatpush.msra.mxu0 %v1291
  %1554 = vmatpush.msra.mxu0 %v1290
  %1555 = vmatpush.msra.mxu0 %v1289
  %1556 = vmatpush.msra.mxu0 %v1288
  %1557 = vmatpush.msra.mxu0 %v1287
  %1558 = vmatmul.f32.gmra.mxu0 %v1343
  %v1559 = vpop.f32.mrf.mxu0
  %v1560 = vadd.f32 %v1519, %v1559
  %1561 = vmatmul.f32.gmra.mxu0 %v1355
  %v1562 = vpop.f32.mrf.mxu0
  %v1563 = vadd.f32 %v1522, %v1562
  %1564 = vmatmul.f32.gmra.mxu0 %v1365
  %v1565 = vpop.f32.mrf.mxu0
  %v1566 = vadd.f32 %v1525, %v1565
  %1567 = vmatmul.f32.gmra.mxu0 %v1375
  %v1568 = vpop.f32.mrf.mxu0
  %v1569 = vadd.f32 %v1528, %v1568
  %1570 = vmatmul.f32.gmra.mxu0 %v1385
  %v1571 = vpop.f32.mrf.mxu0
  %v1572 = vadd.f32 %v1531, %v1571
  %1573 = vmatmul.f32.gmra.mxu0 %v1395
  %v1574 = vpop.f32.mrf.mxu0
  %v1575 = vadd.f32 %v1534, %v1574
  %1576 = vmatmul.f32.gmra.mxu0 %v1405
  %v1577 = vpop.f32.mrf.mxu0
  %v1578 = vadd.f32 %v1537, %v1577
  %1579 = vmatmul.f32.gmra.mxu0 %v1415
  %v1580 = vpop.f32.mrf.mxu0
  %v1581 = vadd.f32 %v1540, %v1580
  %1582 = vdwg.mxu0
  %1583 = vmatpush.msra.mxu0 %v1318
  %1584 = vmatpush.msra.mxu0 %v1317
  %1585 = vmatpush.msra.mxu0 %v1316
  %1586 = vmatpush.msra.mxu0 %v1315
  %1587 = vmatpush.msra.mxu0 %v1314
  %1588 = vmatpush.msra.mxu0 %v1313
  %1589 = vmatpush.msra.mxu0 %v1312
  %1590 = vmatpush.msra.mxu0 %v1311
  %1591 = vmatpush.msra.mxu0 %v1310
  %1592 = vmatpush.msra.mxu0 %v1309
  %1593 = vmatpush.msra.mxu0 %v1308
  %1594 = vmatpush.msra.mxu0 %v1307
  %1595 = vmatpush.msra.mxu0 %v1306
  %1596 = vmatpush.msra.mxu0 %v1305
  %1597 = vmatpush.msra.mxu0 %v1304
  %1598 = vmatpush.msra.mxu0 %v1303
  %1599 = vmatmul.f32.gmra.mxu0 %v1346
  %v1600 = vpop.f32.mrf.mxu0
  %v1601 = vadd.f32 %v1560, %v1600
  %1602 = vmatmul.f32.gmra.mxu0 %v1357
  %v1603 = vpop.f32.mrf.mxu0
  %v1604 = vadd.f32 %v1563, %v1603
  %1605 = vmatmul.f32.gmra.mxu0 %v1367
  %v1606 = vpop.f32.mrf.mxu0
  %v1607 = vadd.f32 %v1566, %v1606
  %1608 = vmatmul.f32.gmra.mxu0 %v1377
  %v1609 = vpop.f32.mrf.mxu0
  %v1610 = vadd.f32 %v1569, %v1609
  %1611 = vmatmul.f32.gmra.mxu0 %v1387
  %v1612 = vpop.f32.mrf.mxu0
  %v1613 = vadd.f32 %v1572, %v1612
  %1614 = vmatmul.f32.gmra.mxu0 %v1397
  %v1615 = vpop.f32.mrf.mxu0
  %v1616 = vadd.f32 %v1575, %v1615
  %1617 = vmatmul.f32.gmra.mxu0 %v1407
  %v1618 = vpop.f32.mrf.mxu0
  %v1619 = vadd.f32 %v1578, %v1618
  %1620 = vmatmul.f32.gmra.mxu0 %v1417
  %v1621 = vpop.f32.mrf.mxu0
  %v1622 = vadd.f32 %v1581, %v1621
  %1623 = vdwg.mxu0
  %1624 = vmatpush.msra.mxu0 %v1334
  %1625 = vmatpush.msra.mxu0 %v1333
  %1626 = vmatpush.msra.mxu0 %v1332
  %1627 = vmatpush.msra.mxu0 %v1331
  %1628 = vmatpush.msra.mxu0 %v1330
  %1629 = vmatpush.msra.mxu0 %v1329
  %1630 = vmatpush.msra.mxu0 %v1328
  %1631 = vmatpush.msra.mxu0 %v1327
  %1632 = vmatpush.msra.mxu0 %v1326
  %1633 = vmatpush.msra.mxu0 %v1325
  %1634 = vmatpush.msra.mxu0 %v1324
  %1635 = vmatpush.msra.mxu0 %v1323
  %1636 = vmatpush.msra.mxu0 %v1322
  %1637 = vmatpush.msra.mxu0 %v1321
  %1638 = vmatpush.msra.mxu0 %v1320
  %1639 = vmatpush.msra.mxu0 %v1319
  %1640 = vmatmul.f32.gmra.mxu0 %v1349
  %v1641 = vpop.f32.mrf.mxu0
  %v1642 = vadd.f32 %v1601, %v1641
  %1643 = vmatmul.f32.gmra.mxu0 %v1359
  %v1644 = vpop.f32.mrf.mxu0
  %v1645 = vadd.f32 %v1604, %v1644
  %1646 = vmatmul.f32.gmra.mxu0 %v1369
  %v1647 = vpop.f32.mrf.mxu0
  %v1648 = vadd.f32 %v1607, %v1647
  %1649 = vmatmul.f32.gmra.mxu0 %v1379
  %v1650 = vpop.f32.mrf.mxu0
  %v1651 = vadd.f32 %v1610, %v1650
  %1652 = vmatmul.f32.gmra.mxu0 %v1389
  %v1653 = vpop.f32.mrf.mxu0
  %v1654 = vadd.f32 %v1613, %v1653
  %1655 = vmatmul.f32.gmra.mxu0 %v1399
  %v1656 = vpop.f32.mrf.mxu0
  %v1657 = vadd.f32 %v1616, %v1656
  %1658 = vmatmul.f32.gmra.mxu0 %v1409
  %v1659 = vpop.f32.mrf.mxu0
  %v1660 = vadd.f32 %v1619, %v1659
  %1661 = vmatmul.f32.gmra.mxu0 %v1419
  %v1662 = vpop.f32.mrf.mxu0
  %v1663 = vadd.f32 %v1622, %v1662
  %1664 = vdwg.mxu0
  %s1665 = scalar_lea.vmem %s2, 2
  %v1666 = vld [vmem:[%s1665] sm:$0x1]
  %v1668 = vperm.slane %v1666, 0
  %v1670 = vmul.f32 %v1642, %v1668
  %v1671 = vmul.f32 %v1645, %v1668
  %v1672 = vmul.f32 %v1648, %v1668
  %v1673 = vmul.f32 %v1651, %v1668
  %v1674 = vmul.f32 %v1654, %v1668
  %v1675 = vmul.f32 %v1657, %v1668
  %v1676 = vmul.f32 %v1660, %v1668
  %v1677 = vmul.f32 %v1663, %v1668
  %s1678 = scalar_lea.vmem %s3, 2
  %v1679 = vld [vmem:[%s1678] sm:$0x1]
  %v1681 = vperm.slane %v1679, 0
  %v1683 = vadd.f32 %v1670, %v1681
  %v1684 = vadd.f32 %v1671, %v1681
  %v1685 = vadd.f32 %v1672, %v1681
  %v1686 = vadd.f32 %v1673, %v1681
  %v1687 = vadd.f32 %v1674, %v1681
  %v1688 = vadd.f32 %v1675, %v1681
  %v1689 = vadd.f32 %v1676, %v1681
  %v1690 = vadd.f32 %v1677, %v1681
  %v1691 = vtanh.pop %v1683
  %v1692 = vtanh.pop %v1684
  %v1693 = vtanh.pop %v1685
  %v1694 = vtanh.pop %v1686
  %v1695 = vtanh.pop %v1687
  %v1696 = vtanh.pop %v1688
  %v1697 = vtanh.pop %v1689
  %v1698 = vtanh.pop %v1690
  %v1699 = vmul.f32 %v1691, %v35
  %v1700 = vmul.f32 %v1692, %v40
  %v1701 = vmul.f32 %v1693, %v45
  %v1702 = vmul.f32 %v1694, %v50
  %v1703 = vmul.f32 %v1695, %v55
  %v1704 = vmul.f32 %v1696, %v60
  %v1705 = vmul.f32 %v1697, %v65
  %v1706 = vmul.f32 %v1698, %v70
  %1707 = vst [vmem:[#allocation2 + $0x8] sm:$0xff] %v1699
  %1708 = vst [vmem:[#allocation2 + $0x10] sm:$0xff] %v1700
  %1709 = vst [vmem:[#allocation2 + $0x18] sm:$0xff] %v1701
  %1710 = vst [vmem:[#allocation2 + $0x20] sm:$0xff] %v1702
  %1711 = vst [vmem:[#allocation2 + $0x28] sm:$0xff] %v1703
  %1712 = vst [vmem:[#allocation2 + $0x30] sm:$0xff] %v1704
  %1713 = vst [vmem:[#allocation2 + $0x38] sm:$0xff] %v1705
  %1714 = vst [vmem:[#allocation2 + $0x40] sm:$0xff] %v1706
  %v1715 = vld [vmem:[#allocation2] sm:$0xff]
  %v1716 = vld [vmem:[#allocation2 + $0x8] sm:$0xff]
  %v1717 = vld [vmem:[#allocation2 + $0x10] sm:$0xff]
  %v1718 = vld [vmem:[#allocation2 + $0x18] sm:$0xff]
  %v1719 = vld [vmem:[#allocation2 + $0x20] sm:$0xff]
  %v1720 = vld [vmem:[#allocation2 + $0x28] sm:$0xff]
  %v1721 = vld [vmem:[#allocation2 + $0x30] sm:$0xff]
  %v1722 = vld [vmem:[#allocation2 + $0x38] sm:$0xff]
  %v1723 = vld [vmem:[#allocation2 + $0x40] sm:$0xff]
  %v1724 = vld [vmem:[#allocation2 + $0x48] sm:$0xff]
  %v1734 = vrot.slane %v1715, 1
  %v1735 = vrot.slane %v1716, 1
  %v1736 = vsel %vm91, %v1734, %v1735
  %v1737 = vrot.slane %v1717, 1
  %v1738 = vsel %vm91, %v1735, %v1737
  %v1739 = vrot.slane %v1718, 1
  %v1740 = vsel %vm91, %v1737, %v1739
  %v1741 = vrot.slane %v1719, 1
  %v1742 = vsel %vm91, %v1739, %v1741
  %v1743 = vrot.slane %v1720, 1
  %v1744 = vsel %vm91, %v1741, %v1743
  %v1745 = vrot.slane %v1721, 1
  %v1746 = vsel %vm91, %v1743, %v1745
  %v1747 = vrot.slane %v1722, 1
  %v1748 = vsel %vm91, %v1745, %v1747
  %v1749 = vrot.slane %v1723, 1
  %v1750 = vsel %vm91, %v1747, %v1749
  %v1751 = vrot.slane %v1716, 2
  %v1752 = vrot.slane %v1717, 2
  %v1753 = vsel %vm109, %v1751, %v1752
  %v1754 = vrot.slane %v1718, 2
  %v1755 = vsel %vm109, %v1752, %v1754
  %v1756 = vrot.slane %v1719, 2
  %v1757 = vsel %vm109, %v1754, %v1756
  %v1758 = vrot.slane %v1720, 2
  %v1759 = vsel %vm109, %v1756, %v1758
  %v1760 = vrot.slane %v1721, 2
  %v1761 = vsel %vm109, %v1758, %v1760
  %v1762 = vrot.slane %v1722, 2
  %v1763 = vsel %vm109, %v1760, %v1762
  %v1764 = vrot.slane %v1723, 2
  %v1765 = vsel %vm109, %v1762, %v1764
  %v1767 = vrot.slane %v1716, 3
  %v1768 = vrot.slane %v1717, 3
  %v1769 = vsel %vm126, %v1767, %v1768
  %v1770 = vrot.slane %v1718, 3
  %v1771 = vsel %vm126, %v1768, %v1770
  %v1772 = vrot.slane %v1719, 3
  %v1773 = vsel %vm126, %v1770, %v1772
  %v1774 = vrot.slane %v1720, 3
  %v1775 = vsel %vm126, %v1772, %v1774
  %v1776 = vrot.slane %v1721, 3
  %v1777 = vsel %vm126, %v1774, %v1776
  %v1778 = vrot.slane %v1722, 3
  %v1779 = vsel %vm126, %v1776, %v1778
  %v1780 = vrot.slane %v1723, 3
  %v1781 = vsel %vm126, %v1778, %v1780
  %v1782 = vrot.slane %v1724, 3
  %v1783 = vsel %vm126, %v1780, %v1782
  %v1784 = vrot.slane %v1716, 4
  %v1785 = vrot.slane %v1717, 4
  %v1786 = vsel %vm144, %v1784, %v1785
  %v1787 = vrot.slane %v1718, 4
  %v1788 = vsel %vm144, %v1785, %v1787
  %v1789 = vrot.slane %v1719, 4
  %v1790 = vsel %vm144, %v1787, %v1789
  %v1791 = vrot.slane %v1720, 4
  %v1792 = vsel %vm144, %v1789, %v1791
  %v1793 = vrot.slane %v1721, 4
  %v1794 = vsel %vm144, %v1791, %v1793
  %v1795 = vrot.slane %v1722, 4
  %v1796 = vsel %vm144, %v1793, %v1795
  %v1797 = vrot.slane %v1723, 4
  %v1798 = vsel %vm144, %v1795, %v1797
  %v1799 = vrot.slane %v1724, 4
  %v1800 = vsel %vm144, %v1797, %v1799
  %s1801 = scalar_lea.vmem %s1, 1920
  %v1802 = vld [vmem:[%s1801] sm:$0xff]
  %v1803 = vld [vmem:[%s1801 + $0x8] sm:$0xff]
  %v1804 = vld [vmem:[%s1801 + $0x10] sm:$0xff]
  %v1805 = vld [vmem:[%s1801 + $0x18] sm:$0xff]
  %v1806 = vld [vmem:[%s1801 + $0x20] sm:$0xff]
  %v1807 = vld [vmem:[%s1801 + $0x28] sm:$0xff]
  %v1808 = vld [vmem:[%s1801 + $0x30] sm:$0xff]
  %v1809 = vld [vmem:[%s1801 + $0x38] sm:$0xff]
  %v1810 = vld [vmem:[%s1801 + $0x40] sm:$0xff]
  %v1811 = vld [vmem:[%s1801 + $0x48] sm:$0xff]
  %v1812 = vld [vmem:[%s1801 + $0x50] sm:$0xff]
  %v1813 = vld [vmem:[%s1801 + $0x58] sm:$0xff]
  %v1814 = vld [vmem:[%s1801 + $0x60] sm:$0xff]
  %v1815 = vld [vmem:[%s1801 + $0x68] sm:$0xff]
  %v1816 = vld [vmem:[%s1801 + $0x70] sm:$0xff]
  %v1817 = vld [vmem:[%s1801 + $0x78] sm:$0xff]
  %v1818 = vld [vmem:[%s1801 + $0x80] sm:$0xff]
  %v1819 = vld [vmem:[%s1801 + $0x88] sm:$0xff]
  %v1820 = vld [vmem:[%s1801 + $0x90] sm:$0xff]
  %v1821 = vld [vmem:[%s1801 + $0x98] sm:$0xff]
  %v1822 = vld [vmem:[%s1801 + $0xa0] sm:$0xff]
  %v1823 = vld [vmem:[%s1801 + $0xa8] sm:$0xff]
  %v1824 = vld [vmem:[%s1801 + $0xb0] sm:$0xff]
  %v1825 = vld [vmem:[%s1801 + $0xb8] sm:$0xff]
  %v1826 = vld [vmem:[%s1801 + $0xc0] sm:$0xff]
  %v1827 = vld [vmem:[%s1801 + $0xc8] sm:$0xff]
  %v1828 = vld [vmem:[%s1801 + $0xd0] sm:$0xff]
  %v1829 = vld [vmem:[%s1801 + $0xd8] sm:$0xff]
  %v1830 = vld [vmem:[%s1801 + $0xe0] sm:$0xff]
  %v1831 = vld [vmem:[%s1801 + $0xe8] sm:$0xff]
  %v1832 = vld [vmem:[%s1801 + $0xf0] sm:$0xff]
  %v1833 = vld [vmem:[%s1801 + $0xf8] sm:$0xff]
  %v1834 = vld [vmem:[%s1801 + $0x100] sm:$0xff]
  %v1835 = vld [vmem:[%s1801 + $0x108] sm:$0xff]
  %v1836 = vld [vmem:[%s1801 + $0x110] sm:$0xff]
  %v1837 = vld [vmem:[%s1801 + $0x118] sm:$0xff]
  %v1838 = vld [vmem:[%s1801 + $0x120] sm:$0xff]
  %v1839 = vld [vmem:[%s1801 + $0x128] sm:$0xff]
  %v1840 = vld [vmem:[%s1801 + $0x130] sm:$0xff]
  %v1841 = vld [vmem:[%s1801 + $0x138] sm:$0xff]
  %v1842 = vld [vmem:[%s1801 + $0x140] sm:$0xff]
  %v1843 = vld [vmem:[%s1801 + $0x148] sm:$0xff]
  %v1844 = vld [vmem:[%s1801 + $0x150] sm:$0xff]
  %v1845 = vld [vmem:[%s1801 + $0x158] sm:$0xff]
  %v1846 = vld [vmem:[%s1801 + $0x160] sm:$0xff]
  %v1847 = vld [vmem:[%s1801 + $0x168] sm:$0xff]
  %v1848 = vld [vmem:[%s1801 + $0x170] sm:$0xff]
  %v1849 = vld [vmem:[%s1801 + $0x178] sm:$0xff]
  %v1850 = vld [vmem:[%s1801 + $0x180] sm:$0xff]
  %v1851 = vld [vmem:[%s1801 + $0x188] sm:$0xff]
  %v1852 = vld [vmem:[%s1801 + $0x190] sm:$0xff]
  %v1853 = vld [vmem:[%s1801 + $0x198] sm:$0xff]
  %v1854 = vld [vmem:[%s1801 + $0x1a0] sm:$0xff]
  %v1855 = vld [vmem:[%s1801 + $0x1a8] sm:$0xff]
  %v1856 = vld [vmem:[%s1801 + $0x1b0] sm:$0xff]
  %v1857 = vld [vmem:[%s1801 + $0x1b8] sm:$0xff]
  %v1858 = vld [vmem:[%s1801 + $0x1c0] sm:$0xff]
  %v1859 = vld [vmem:[%s1801 + $0x1c8] sm:$0xff]
  %v1860 = vld [vmem:[%s1801 + $0x1d0] sm:$0xff]
  %v1861 = vld [vmem:[%s1801 + $0x1d8] sm:$0xff]
  %v1862 = vld [vmem:[%s1801 + $0x1e0] sm:$0xff]
  %v1863 = vld [vmem:[%s1801 + $0x1e8] sm:$0xff]
  %v1864 = vld [vmem:[%s1801 + $0x1f0] sm:$0xff]
  %v1865 = vld [vmem:[%s1801 + $0x1f8] sm:$0xff]
  %v1866 = vld [vmem:[%s1801 + $0x200] sm:$0xff]
  %v1867 = vld [vmem:[%s1801 + $0x208] sm:$0xff]
  %v1868 = vld [vmem:[%s1801 + $0x210] sm:$0xff]
  %v1869 = vld [vmem:[%s1801 + $0x218] sm:$0xff]
  %v1870 = vld [vmem:[%s1801 + $0x220] sm:$0xff]
  %v1871 = vld [vmem:[%s1801 + $0x228] sm:$0xff]
  %v1872 = vld [vmem:[%s1801 + $0x230] sm:$0xff]
  %v1873 = vld [vmem:[%s1801 + $0x238] sm:$0xff]
  %v1874 = vld [vmem:[%s1801 + $0x240] sm:$0xff]
  %v1875 = vld [vmem:[%s1801 + $0x248] sm:$0xff]
  %v1876 = vld [vmem:[%s1801 + $0x250] sm:$0xff]
  %v1877 = vld [vmem:[%s1801 + $0x258] sm:$0xff]
  %v1878 = vld [vmem:[%s1801 + $0x260] sm:$0xff]
  %v1879 = vld [vmem:[%s1801 + $0x268] sm:$0xff]
  %v1880 = vld [vmem:[%s1801 + $0x270] sm:$0xff]
  %v1881 = vld [vmem:[%s1801 + $0x278] sm:$0xff]
  %v1882 = vrot.slane %v1715, 6
  %v1883 = vrot.slane %v1716, 6
  %v1884 = vsel %vm242, %v1882, %v1883
  %v1885 = vrot.slane %v1736, 6
  %v1886 = vrot.slane %v1738, 6
  %v1887 = vsel %vm242, %v1885, %v1886
  %v1888 = vrot.slane %v1751, 6
  %v1889 = vrot.slane %v1753, 6
  %v1890 = vsel %vm242, %v1888, %v1889
  %v1891 = vrot.slane %v1767, 6
  %v1892 = vrot.slane %v1769, 6
  %v1893 = vsel %vm242, %v1891, %v1892
  %v1894 = vrot.slane %v1784, 6
  %v1895 = vrot.slane %v1786, 6
  %v1896 = vsel %vm242, %v1894, %v1895
  %v1897 = vrot.slane %v1717, 6
  %v1898 = vsel %vm242, %v1883, %v1897
  %v1899 = vrot.slane %v1740, 6
  %v1900 = vsel %vm242, %v1886, %v1899
  %v1901 = vrot.slane %v1755, 6
  %v1902 = vsel %vm242, %v1889, %v1901
  %v1903 = vrot.slane %v1771, 6
  %v1904 = vsel %vm242, %v1892, %v1903
  %v1905 = vrot.slane %v1788, 6
  %v1906 = vsel %vm242, %v1895, %v1905
  %v1907 = vrot.slane %v1718, 6
  %v1908 = vsel %vm242, %v1897, %v1907
  %v1909 = vrot.slane %v1742, 6
  %v1910 = vsel %vm242, %v1899, %v1909
  %v1911 = vrot.slane %v1757, 6
  %v1912 = vsel %vm242, %v1901, %v1911
  %v1913 = vrot.slane %v1773, 6
  %v1914 = vsel %vm242, %v1903, %v1913
  %v1915 = vrot.slane %v1790, 6
  %v1916 = vsel %vm242, %v1905, %v1915
  %v1917 = vrot.slane %v1719, 6
  %v1918 = vsel %vm242, %v1907, %v1917
  %v1919 = vrot.slane %v1744, 6
  %v1920 = vsel %vm242, %v1909, %v1919
  %v1921 = vrot.slane %v1759, 6
  %v1922 = vsel %vm242, %v1911, %v1921
  %v1923 = vrot.slane %v1775, 6
  %v1924 = vsel %vm242, %v1913, %v1923
  %v1925 = vrot.slane %v1792, 6
  %v1926 = vsel %vm242, %v1915, %v1925
  %v1927 = vrot.slane %v1720, 6
  %v1928 = vsel %vm242, %v1917, %v1927
  %v1929 = vrot.slane %v1746, 6
  %v1930 = vsel %vm242, %v1919, %v1929
  %v1931 = vrot.slane %v1761, 6
  %v1932 = vsel %vm242, %v1921, %v1931
  %v1933 = vrot.slane %v1777, 6
  %v1934 = vsel %vm242, %v1923, %v1933
  %v1935 = vrot.slane %v1794, 6
  %v1936 = vsel %vm242, %v1925, %v1935
  %v1937 = vrot.slane %v1721, 6
  %v1938 = vsel %vm242, %v1927, %v1937
  %v1939 = vrot.slane %v1748, 6
  %v1940 = vsel %vm242, %v1929, %v1939
  %v1941 = vrot.slane %v1763, 6
  %v1942 = vsel %vm242, %v1931, %v1941
  %v1943 = vrot.slane %v1779, 6
  %v1944 = vsel %vm242, %v1933, %v1943
  %v1945 = vrot.slane %v1796, 6
  %v1946 = vsel %vm242, %v1935, %v1945
  %v1947 = vrot.slane %v1722, 6
  %v1948 = vsel %vm242, %v1937, %v1947
  %v1949 = vrot.slane %v1750, 6
  %v1950 = vsel %vm242, %v1939, %v1949
  %v1951 = vrot.slane %v1765, 6
  %v1952 = vsel %vm242, %v1941, %v1951
  %v1953 = vrot.slane %v1781, 6
  %v1954 = vsel %vm242, %v1943, %v1953
  %v1955 = vrot.slane %v1798, 6
  %v1956 = vsel %vm242, %v1945, %v1955
  %v1957 = vrot.slane %v1723, 6
  %v1958 = vsel %vm242, %v1947, %v1957
  %v1959 = vrot.slane %v1749, 6
  %v1960 = vsel %vm242, %v1949, %v1959
  %v1961 = vrot.slane %v1764, 6
  %v1962 = vsel %vm242, %v1951, %v1961
  %v1963 = vrot.slane %v1783, 6
  %v1964 = vsel %vm242, %v1953, %v1963
  %v1965 = vrot.slane %v1800, 6
  %v1966 = vsel %vm242, %v1955, %v1965
  %2007 = vmatpush.msra.mxu0 %v1817
  %2008 = vmatpush.msra.mxu0 %v1816
  %2009 = vmatpush.msra.mxu0 %v1815
  %2010 = vmatpush.msra.mxu0 %v1814
  %2011 = vmatpush.msra.mxu0 %v1813
  %2012 = vmatpush.msra.mxu0 %v1812
  %2013 = vmatpush.msra.mxu0 %v1811
  %2014 = vmatpush.msra.mxu0 %v1810
  %2015 = vmatpush.msra.mxu0 %v1809
  %2016 = vmatpush.msra.mxu0 %v1808
  %2017 = vmatpush.msra.mxu0 %v1807
  %2018 = vmatpush.msra.mxu0 %v1806
  %2019 = vmatpush.msra.mxu0 %v1805
  %2020 = vmatpush.msra.mxu0 %v1804
  %2021 = vmatpush.msra.mxu0 %v1803
  %2022 = vmatpush.msra.mxu0 %v1802
  %2023 = vmatmul.f32.gmra.mxu0 %v1884
  %v2024 = vpop.f32.mrf.mxu0
  %v2025 = vadd.f32 0.0, %v2024
  %2026 = vmatmul.f32.gmra.mxu0 %v1898
  %v2027 = vpop.f32.mrf.mxu0
  %v2028 = vadd.f32 0.0, %v2027
  %2029 = vmatmul.f32.gmra.mxu0 %v1908
  %v2030 = vpop.f32.mrf.mxu0
  %v2031 = vadd.f32 0.0, %v2030
  %2032 = vmatmul.f32.gmra.mxu0 %v1918
  %v2033 = vpop.f32.mrf.mxu0
  %v2034 = vadd.f32 0.0, %v2033
  %2035 = vmatmul.f32.gmra.mxu0 %v1928
  %v2036 = vpop.f32.mrf.mxu0
  %v2037 = vadd.f32 0.0, %v2036
  %2038 = vmatmul.f32.gmra.mxu0 %v1938
  %v2039 = vpop.f32.mrf.mxu0
  %v2040 = vadd.f32 0.0, %v2039
  %2041 = vmatmul.f32.gmra.mxu0 %v1948
  %v2042 = vpop.f32.mrf.mxu0
  %v2043 = vadd.f32 0.0, %v2042
  %2044 = vmatmul.f32.gmra.mxu0 %v1958
  %v2045 = vpop.f32.mrf.mxu0
  %v2046 = vadd.f32 0.0, %v2045
  %2047 = vdwg.mxu0
  %2048 = vmatpush.msra.mxu0 %v1833
  %2049 = vmatpush.msra.mxu0 %v1832
  %2050 = vmatpush.msra.mxu0 %v1831
  %2051 = vmatpush.msra.mxu0 %v1830
  %2052 = vmatpush.msra.mxu0 %v1829
  %2053 = vmatpush.msra.mxu0 %v1828
  %2054 = vmatpush.msra.mxu0 %v1827
  %2055 = vmatpush.msra.mxu0 %v1826
  %2056 = vmatpush.msra.mxu0 %v1825
  %2057 = vmatpush.msra.mxu0 %v1824
  %2058 = vmatpush.msra.mxu0 %v1823
  %2059 = vmatpush.msra.mxu0 %v1822
  %2060 = vmatpush.msra.mxu0 %v1821
  %2061 = vmatpush.msra.mxu0 %v1820
  %2062 = vmatpush.msra.mxu0 %v1819
  %2063 = vmatpush.msra.mxu0 %v1818
  %2064 = vmatmul.f32.gmra.mxu0 %v1887
  %v2065 = vpop.f32.mrf.mxu0
  %v2066 = vadd.f32 %v2025, %v2065
  %2067 = vmatmul.f32.gmra.mxu0 %v1900
  %v2068 = vpop.f32.mrf.mxu0
  %v2069 = vadd.f32 %v2028, %v2068
  %2070 = vmatmul.f32.gmra.mxu0 %v1910
  %v2071 = vpop.f32.mrf.mxu0
  %v2072 = vadd.f32 %v2031, %v2071
  %2073 = vmatmul.f32.gmra.mxu0 %v1920
  %v2074 = vpop.f32.mrf.mxu0
  %v2075 = vadd.f32 %v2034, %v2074
  %2076 = vmatmul.f32.gmra.mxu0 %v1930
  %v2077 = vpop.f32.mrf.mxu0
  %v2078 = vadd.f32 %v2037, %v2077
  %2079 = vmatmul.f32.gmra.mxu0 %v1940
  %v2080 = vpop.f32.mrf.mxu0
  %v2081 = vadd.f32 %v2040, %v2080
  %2082 = vmatmul.f32.gmra.mxu0 %v1950
  %v2083 = vpop.f32.mrf.mxu0
  %v2084 = vadd.f32 %v2043, %v2083
  %2085 = vmatmul.f32.gmra.mxu0 %v1960
  %v2086 = vpop.f32.mrf.mxu0
  %v2087 = vadd.f32 %v2046, %v2086
  %2088 = vdwg.mxu0
  %2089 = vmatpush.msra.mxu0 %v1849
  %2090 = vmatpush.msra.mxu0 %v1848
  %2091 = vmatpush.msra.mxu0 %v1847
  %2092 = vmatpush.msra.mxu0 %v1846
  %2093 = vmatpush.msra.mxu0 %v1845
  %2094 = vmatpush.msra.mxu0 %v1844
  %2095 = vmatpush.msra.mxu0 %v1843
  %2096 = vmatpush.msra.mxu0 %v1842
  %2097 = vmatpush.msra.mxu0 %v1841
  %2098 = vmatpush.msra.mxu0 %v1840
  %2099 = vmatpush.msra.mxu0 %v1839
  %2100 = vmatpush.msra.mxu0 %v1838
  %2101 = vmatpush.msra.mxu0 %v1837
  %2102 = vmatpush.msra.mxu0 %v1836
  %2103 = vmatpush.msra.mxu0 %v1835
  %2104 = vmatpush.msra.mxu0 %v1834
  %2105 = vmatmul.f32.gmra.mxu0 %v1890
  %v2106 = vpop.f32.mrf.mxu0
  %v2107 = vadd.f32 %v2066, %v2106
  %2108 = vmatmul.f32.gmra.mxu0 %v1902
  %v2109 = vpop.f32.mrf.mxu0
  %v2110 = vadd.f32 %v2069, %v2109
  %2111 = vmatmul.f32.gmra.mxu0 %v1912
  %v2112 = vpop.f32.mrf.mxu0
  %v2113 = vadd.f32 %v2072, %v2112
  %2114 = vmatmul.f32.gmra.mxu0 %v1922
  %v2115 = vpop.f32.mrf.mxu0
  %v2116 = vadd.f32 %v2075, %v2115
  %2117 = vmatmul.f32.gmra.mxu0 %v1932
  %v2118 = vpop.f32.mrf.mxu0
  %v2119 = vadd.f32 %v2078, %v2118
  %2120 = vmatmul.f32.gmra.mxu0 %v1942
  %v2121 = vpop.f32.mrf.mxu0
  %v2122 = vadd.f32 %v2081, %v2121
  %2123 = vmatmul.f32.gmra.mxu0 %v1952
  %v2124 = vpop.f32.mrf.mxu0
  %v2125 = vadd.f32 %v2084, %v2124
  %2126 = vmatmul.f32.gmra.mxu0 %v1962
  %v2127 = vpop.f32.mrf.mxu0
  %v2128 = vadd.f32 %v2087, %v2127
  %2129 = vdwg.mxu0
  %2130 = vmatpush.msra.mxu0 %v1865
  %2131 = vmatpush.msra.mxu0 %v1864
  %2132 = vmatpush.msra.mxu0 %v1863
  %2133 = vmatpush.msra.mxu0 %v1862
  %2134 = vmatpush.msra.mxu0 %v1861
  %2135 = vmatpush.msra.mxu0 %v1860
  %2136 = vmatpush.msra.mxu0 %v1859
  %2137 = vmatpush.msra.mxu0 %v1858
  %2138 = vmatpush.msra.mxu0 %v1857
  %2139 = vmatpush.msra.mxu0 %v1856
  %2140 = vmatpush.msra.mxu0 %v1855
  %2141 = vmatpush.msra.mxu0 %v1854
  %2142 = vmatpush.msra.mxu0 %v1853
  %2143 = vmatpush.msra.mxu0 %v1852
  %2144 = vmatpush.msra.mxu0 %v1851
  %2145 = vmatpush.msra.mxu0 %v1850
  %2146 = vmatmul.f32.gmra.mxu0 %v1893
  %v2147 = vpop.f32.mrf.mxu0
  %v2148 = vadd.f32 %v2107, %v2147
  %2149 = vmatmul.f32.gmra.mxu0 %v1904
  %v2150 = vpop.f32.mrf.mxu0
  %v2151 = vadd.f32 %v2110, %v2150
  %2152 = vmatmul.f32.gmra.mxu0 %v1914
  %v2153 = vpop.f32.mrf.mxu0
  %v2154 = vadd.f32 %v2113, %v2153
  %2155 = vmatmul.f32.gmra.mxu0 %v1924
  %v2156 = vpop.f32.mrf.mxu0
  %v2157 = vadd.f32 %v2116, %v2156
  %2158 = vmatmul.f32.gmra.mxu0 %v1934
  %v2159 = vpop.f32.mrf.mxu0
  %v2160 = vadd.f32 %v2119, %v2159
  %2161 = vmatmul.f32.gmra.mxu0 %v1944
  %v2162 = vpop.f32.mrf.mxu0
  %v2163 = vadd.f32 %v2122, %v2162
  %2164 = vmatmul.f32.gmra.mxu0 %v1954
  %v2165 = vpop.f32.mrf.mxu0
  %v2166 = vadd.f32 %v2125, %v2165
  %2167 = vmatmul.f32.gmra.mxu0 %v1964
  %v2168 = vpop.f32.mrf.mxu0
  %v2169 = vadd.f32 %v2128, %v2168
  %2170 = vdwg.mxu0
  %2171 = vmatpush.msra.mxu0 %v1881
  %2172 = vmatpush.msra.mxu0 %v1880
  %2173 = vmatpush.msra.mxu0 %v1879
  %2174 = vmatpush.msra.mxu0 %v1878
  %2175 = vmatpush.msra.mxu0 %v1877
  %2176 = vmatpush.msra.mxu0 %v1876
  %2177 = vmatpush.msra.mxu0 %v1875
  %2178 = vmatpush.msra.mxu0 %v1874
  %2179 = vmatpush.msra.mxu0 %v1873
  %2180 = vmatpush.msra.mxu0 %v1872
  %2181 = vmatpush.msra.mxu0 %v1871
  %2182 = vmatpush.msra.mxu0 %v1870
  %2183 = vmatpush.msra.mxu0 %v1869
  %2184 = vmatpush.msra.mxu0 %v1868
  %2185 = vmatpush.msra.mxu0 %v1867
  %2186 = vmatpush.msra.mxu0 %v1866
  %2187 = vmatmul.f32.gmra.mxu0 %v1896
  %v2188 = vpop.f32.mrf.mxu0
  %v2189 = vadd.f32 %v2148, %v2188
  %2190 = vmatmul.f32.gmra.mxu0 %v1906
  %v2191 = vpop.f32.mrf.mxu0
  %v2192 = vadd.f32 %v2151, %v2191
  %2193 = vmatmul.f32.gmra.mxu0 %v1916
  %v2194 = vpop.f32.mrf.mxu0
  %v2195 = vadd.f32 %v2154, %v2194
  %2196 = vmatmul.f32.gmra.mxu0 %v1926
  %v2197 = vpop.f32.mrf.mxu0
  %v2198 = vadd.f32 %v2157, %v2197
  %2199 = vmatmul.f32.gmra.mxu0 %v1936
  %v2200 = vpop.f32.mrf.mxu0
  %v2201 = vadd.f32 %v2160, %v2200
  %2202 = vmatmul.f32.gmra.mxu0 %v1946
  %v2203 = vpop.f32.mrf.mxu0
  %v2204 = vadd.f32 %v2163, %v2203
  %2205 = vmatmul.f32.gmra.mxu0 %v1956
  %v2206 = vpop.f32.mrf.mxu0
  %v2207 = vadd.f32 %v2166, %v2206
  %2208 = vmatmul.f32.gmra.mxu0 %v1966
  %v2209 = vpop.f32.mrf.mxu0
  %v2210 = vadd.f32 %v2169, %v2209
  %2211 = vdwg.mxu0
  %s2212 = scalar_lea.vmem %s2, 3
  %v2213 = vld [vmem:[%s2212] sm:$0x1]
  %v2215 = vperm.slane %v2213, 0
  %v2217 = vmul.f32 %v2189, %v2215
  %v2218 = vmul.f32 %v2192, %v2215
  %v2219 = vmul.f32 %v2195, %v2215
  %v2220 = vmul.f32 %v2198, %v2215
  %v2221 = vmul.f32 %v2201, %v2215
  %v2222 = vmul.f32 %v2204, %v2215
  %v2223 = vmul.f32 %v2207, %v2215
  %v2224 = vmul.f32 %v2210, %v2215
  %s2225 = scalar_lea.vmem %s3, 3
  %v2226 = vld [vmem:[%s2225] sm:$0x1]
  %v2228 = vperm.slane %v2226, 0
  %v2230 = vadd.f32 %v2217, %v2228
  %v2231 = vadd.f32 %v2218, %v2228
  %v2232 = vadd.f32 %v2219, %v2228
  %v2233 = vadd.f32 %v2220, %v2228
  %v2234 = vadd.f32 %v2221, %v2228
  %v2235 = vadd.f32 %v2222, %v2228
  %v2236 = vadd.f32 %v2223, %v2228
  %v2237 = vadd.f32 %v2224, %v2228
  %v2238 = vtanh.pop %v2230
  %v2239 = vtanh.pop %v2231
  %v2240 = vtanh.pop %v2232
  %v2241 = vtanh.pop %v2233
  %v2242 = vtanh.pop %v2234
  %v2243 = vtanh.pop %v2235
  %v2244 = vtanh.pop %v2236
  %v2245 = vtanh.pop %v2237
  %v2246 = vmul.f32 %v2238, %v35
  %v2247 = vmul.f32 %v2239, %v40
  %v2248 = vmul.f32 %v2240, %v45
  %v2249 = vmul.f32 %v2241, %v50
  %v2250 = vmul.f32 %v2242, %v55
  %v2251 = vmul.f32 %v2243, %v60
  %v2252 = vmul.f32 %v2244, %v65
  %v2253 = vmul.f32 %v2245, %v70
  %2254 = vst [vmem:[#allocation3 + $0x8] sm:$0xff] %v2246
  %2255 = vst [vmem:[#allocation3 + $0x10] sm:$0xff] %v2247
  %2256 = vst [vmem:[#allocation3 + $0x18] sm:$0xff] %v2248
  %2257 = vst [vmem:[#allocation3 + $0x20] sm:$0xff] %v2249
  %2258 = vst [vmem:[#allocation3 + $0x28] sm:$0xff] %v2250
  %2259 = vst [vmem:[#allocation3 + $0x30] sm:$0xff] %v2251
  %2260 = vst [vmem:[#allocation3 + $0x38] sm:$0xff] %v2252
  %2261 = vst [vmem:[#allocation3 + $0x40] sm:$0xff] %v2253
  %v2262 = vld [vmem:[#allocation3] sm:$0xff]
  %v2263 = vld [vmem:[#allocation3 + $0x8] sm:$0xff]
  %v2264 = vld [vmem:[#allocation3 + $0x10] sm:$0xff]
  %v2265 = vld [vmem:[#allocation3 + $0x18] sm:$0xff]
  %v2266 = vld [vmem:[#allocation3 + $0x20] sm:$0xff]
  %v2267 = vld [vmem:[#allocation3 + $0x28] sm:$0xff]
  %v2268 = vld [vmem:[#allocation3 + $0x30] sm:$0xff]
  %v2269 = vld [vmem:[#allocation3 + $0x38] sm:$0xff]
  %v2270 = vld [vmem:[#allocation3 + $0x40] sm:$0xff]
  %v2271 = vld [vmem:[#allocation3 + $0x48] sm:$0xff]
  %v2281 = vrot.slane %v2262, 1
  %v2282 = vrot.slane %v2263, 1
  %v2283 = vsel %vm91, %v2281, %v2282
  %v2284 = vrot.slane %v2264, 1
  %v2285 = vsel %vm91, %v2282, %v2284
  %v2286 = vrot.slane %v2265, 1
  %v2287 = vsel %vm91, %v2284, %v2286
  %v2288 = vrot.slane %v2266, 1
  %v2289 = vsel %vm91, %v2286, %v2288
  %v2290 = vrot.slane %v2267, 1
  %v2291 = vsel %vm91, %v2288, %v2290
  %v2292 = vrot.slane %v2268, 1
  %v2293 = vsel %vm91, %v2290, %v2292
  %v2294 = vrot.slane %v2269, 1
  %v2295 = vsel %vm91, %v2292, %v2294
  %v2296 = vrot.slane %v2270, 1
  %v2297 = vsel %vm91, %v2294, %v2296
  %v2298 = vrot.slane %v2263, 2
  %v2299 = vrot.slane %v2264, 2
  %v2300 = vsel %vm109, %v2298, %v2299
  %v2301 = vrot.slane %v2265, 2
  %v2302 = vsel %vm109, %v2299, %v2301
  %v2303 = vrot.slane %v2266, 2
  %v2304 = vsel %vm109, %v2301, %v2303
  %v2305 = vrot.slane %v2267, 2
  %v2306 = vsel %vm109, %v2303, %v2305
  %v2307 = vrot.slane %v2268, 2
  %v2308 = vsel %vm109, %v2305, %v2307
  %v2309 = vrot.slane %v2269, 2
  %v2310 = vsel %vm109, %v2307, %v2309
  %v2311 = vrot.slane %v2270, 2
  %v2312 = vsel %vm109, %v2309, %v2311
  %v2314 = vrot.slane %v2263, 3
  %v2315 = vrot.slane %v2264, 3
  %v2316 = vsel %vm126, %v2314, %v2315
  %v2317 = vrot.slane %v2265, 3
  %v2318 = vsel %vm126, %v2315, %v2317
  %v2319 = vrot.slane %v2266, 3
  %v2320 = vsel %vm126, %v2317, %v2319
  %v2321 = vrot.slane %v2267, 3
  %v2322 = vsel %vm126, %v2319, %v2321
  %v2323 = vrot.slane %v2268, 3
  %v2324 = vsel %vm126, %v2321, %v2323
  %v2325 = vrot.slane %v2269, 3
  %v2326 = vsel %vm126, %v2323, %v2325
  %v2327 = vrot.slane %v2270, 3
  %v2328 = vsel %vm126, %v2325, %v2327
  %v2329 = vrot.slane %v2271, 3
  %v2330 = vsel %vm126, %v2327, %v2329
  %v2331 = vrot.slane %v2263, 4
  %v2332 = vrot.slane %v2264, 4
  %v2333 = vsel %vm144, %v2331, %v2332
  %v2334 = vrot.slane %v2265, 4
  %v2335 = vsel %vm144, %v2332, %v2334
  %v2336 = vrot.slane %v2266, 4
  %v2337 = vsel %vm144, %v2334, %v2336
  %v2338 = vrot.slane %v2267, 4
  %v2339 = vsel %vm144, %v2336, %v2338
  %v2340 = vrot.slane %v2268, 4
  %v2341 = vsel %vm144, %v2338, %v2340
  %v2342 = vrot.slane %v2269, 4
  %v2343 = vsel %vm144, %v2340, %v2342
  %v2344 = vrot.slane %v2270, 4
  %v2345 = vsel %vm144, %v2342, %v2344
  %v2346 = vrot.slane %v2271, 4
  %v2347 = vsel %vm144, %v2344, %v2346
  %s2348 = scalar_lea.vmem %s1, 2560
  %v2349 = vld [vmem:[%s2348] sm:$0xff]
  %v2350 = vld [vmem:[%s2348 + $0x8] sm:$0xff]
  %v2351 = vld [vmem:[%s2348 + $0x10] sm:$0xff]
  %v2352 = vld [vmem:[%s2348 + $0x18] sm:$0xff]
  %v2353 = vld [vmem:[%s2348 + $0x20] sm:$0xff]
  %v2354 = vld [vmem:[%s2348 + $0x28] sm:$0xff]
  %v2355 = vld [vmem:[%s2348 + $0x30] sm:$0xff]
  %v2356 = vld [vmem:[%s2348 + $0x38] sm:$0xff]
  %v2357 = vld [vmem:[%s2348 + $0x40] sm:$0xff]
  %v2358 = vld [vmem:[%s2348 + $0x48] sm:$0xff]
  %v2359 = vld [vmem:[%s2348 + $0x50] sm:$0xff]
  %v2360 = vld [vmem:[%s2348 + $0x58] sm:$0xff]
  %v2361 = vld [vmem:[%s2348 + $0x60] sm:$0xff]
  %v2362 = vld [vmem:[%s2348 + $0x68] sm:$0xff]
  %v2363 = vld [vmem:[%s2348 + $0x70] sm:$0xff]
  %v2364 = vld [vmem:[%s2348 + $0x78] sm:$0xff]
  %v2365 = vld [vmem:[%s2348 + $0x80] sm:$0xff]
  %v2366 = vld [vmem:[%s2348 + $0x88] sm:$0xff]
  %v2367 = vld [vmem:[%s2348 + $0x90] sm:$0xff]
  %v2368 = vld [vmem:[%s2348 + $0x98] sm:$0xff]
  %v2369 = vld [vmem:[%s2348 + $0xa0] sm:$0xff]
  %v2370 = vld [vmem:[%s2348 + $0xa8] sm:$0xff]
  %v2371 = vld [vmem:[%s2348 + $0xb0] sm:$0xff]
  %v2372 = vld [vmem:[%s2348 + $0xb8] sm:$0xff]
  %v2373 = vld [vmem:[%s2348 + $0xc0] sm:$0xff]
  %v2374 = vld [vmem:[%s2348 + $0xc8] sm:$0xff]
  %v2375 = vld [vmem:[%s2348 + $0xd0] sm:$0xff]
  %v2376 = vld [vmem:[%s2348 + $0xd8] sm:$0xff]
  %v2377 = vld [vmem:[%s2348 + $0xe0] sm:$0xff]
  %v2378 = vld [vmem:[%s2348 + $0xe8] sm:$0xff]
  %v2379 = vld [vmem:[%s2348 + $0xf0] sm:$0xff]
  %v2380 = vld [vmem:[%s2348 + $0xf8] sm:$0xff]
  %v2381 = vld [vmem:[%s2348 + $0x100] sm:$0xff]
  %v2382 = vld [vmem:[%s2348 + $0x108] sm:$0xff]
  %v2383 = vld [vmem:[%s2348 + $0x110] sm:$0xff]
  %v2384 = vld [vmem:[%s2348 + $0x118] sm:$0xff]
  %v2385 = vld [vmem:[%s2348 + $0x120] sm:$0xff]
  %v2386 = vld [vmem:[%s2348 + $0x128] sm:$0xff]
  %v2387 = vld [vmem:[%s2348 + $0x130] sm:$0xff]
  %v2388 = vld [vmem:[%s2348 + $0x138] sm:$0xff]
  %v2389 = vld [vmem:[%s2348 + $0x140] sm:$0xff]
  %v2390 = vld [vmem:[%s2348 + $0x148] sm:$0xff]
  %v2391 = vld [vmem:[%s2348 + $0x150] sm:$0xff]
  %v2392 = vld [vmem:[%s2348 + $0x158] sm:$0xff]
  %v2393 = vld [vmem:[%s2348 + $0x160] sm:$0xff]
  %v2394 = vld [vmem:[%s2348 + $0x168] sm:$0xff]
  %v2395 = vld [vmem:[%s2348 + $0x170] sm:$0xff]
  %v2396 = vld [vmem:[%s2348 + $0x178] sm:$0xff]
  %v2397 = vld [vmem:[%s2348 + $0x180] sm:$0xff]
  %v2398 = vld [vmem:[%s2348 + $0x188] sm:$0xff]
  %v2399 = vld [vmem:[%s2348 + $0x190] sm:$0xff]
  %v2400 = vld [vmem:[%s2348 + $0x198] sm:$0xff]
  %v2401 = vld [vmem:[%s2348 + $0x1a0] sm:$0xff]
  %v2402 = vld [vmem:[%s2348 + $0x1a8] sm:$0xff]
  %v2403 = vld [vmem:[%s2348 + $0x1b0] sm:$0xff]
  %v2404 = vld [vmem:[%s2348 + $0x1b8] sm:$0xff]
  %v2405 = vld [vmem:[%s2348 + $0x1c0] sm:$0xff]
  %v2406 = vld [vmem:[%s2348 + $0x1c8] sm:$0xff]
  %v2407 = vld [vmem:[%s2348 + $0x1d0] sm:$0xff]
  %v2408 = vld [vmem:[%s2348 + $0x1d8] sm:$0xff]
  %v2409 = vld [vmem:[%s2348 + $0x1e0] sm:$0xff]
  %v2410 = vld [vmem:[%s2348 + $0x1e8] sm:$0xff]
  %v2411 = vld [vmem:[%s2348 + $0x1f0] sm:$0xff]
  %v2412 = vld [vmem:[%s2348 + $0x1f8] sm:$0xff]
  %v2413 = vld [vmem:[%s2348 + $0x200] sm:$0xff]
  %v2414 = vld [vmem:[%s2348 + $0x208] sm:$0xff]
  %v2415 = vld [vmem:[%s2348 + $0x210] sm:$0xff]
  %v2416 = vld [vmem:[%s2348 + $0x218] sm:$0xff]
  %v2417 = vld [vmem:[%s2348 + $0x220] sm:$0xff]
  %v2418 = vld [vmem:[%s2348 + $0x228] sm:$0xff]
  %v2419 = vld [vmem:[%s2348 + $0x230] sm:$0xff]
  %v2420 = vld [vmem:[%s2348 + $0x238] sm:$0xff]
  %v2421 = vld [vmem:[%s2348 + $0x240] sm:$0xff]
  %v2422 = vld [vmem:[%s2348 + $0x248] sm:$0xff]
  %v2423 = vld [vmem:[%s2348 + $0x250] sm:$0xff]
  %v2424 = vld [vmem:[%s2348 + $0x258] sm:$0xff]
  %v2425 = vld [vmem:[%s2348 + $0x260] sm:$0xff]
  %v2426 = vld [vmem:[%s2348 + $0x268] sm:$0xff]
  %v2427 = vld [vmem:[%s2348 + $0x270] sm:$0xff]
  %v2428 = vld [vmem:[%s2348 + $0x278] sm:$0xff]
  %v2429 = vrot.slane %v2262, 6
  %v2430 = vrot.slane %v2263, 6
  %v2431 = vsel %vm242, %v2429, %v2430
  %v2432 = vrot.slane %v2283, 6
  %v2433 = vrot.slane %v2285, 6
  %v2434 = vsel %vm242, %v2432, %v2433
  %v2435 = vrot.slane %v2298, 6
  %v2436 = vrot.slane %v2300, 6
  %v2437 = vsel %vm242, %v2435, %v2436
  %v2438 = vrot.slane %v2314, 6
  %v2439 = vrot.slane %v2316, 6
  %v2440 = vsel %vm242, %v2438, %v2439
  %v2441 = vrot.slane %v2331, 6
  %v2442 = vrot.slane %v2333, 6
  %v2443 = vsel %vm242, %v2441, %v2442
  %v2444 = vrot.slane %v2264, 6
  %v2445 = vsel %vm242, %v2430, %v2444
  %v2446 = vrot.slane %v2287, 6
  %v2447 = vsel %vm242, %v2433, %v2446
  %v2448 = vrot.slane %v2302, 6
  %v2449 = vsel %vm242, %v2436, %v2448
  %v2450 = vrot.slane %v2318, 6
  %v2451 = vsel %vm242, %v2439, %v2450
  %v2452 = vrot.slane %v2335, 6
  %v2453 = vsel %vm242, %v2442, %v2452
  %v2454 = vrot.slane %v2265, 6
  %v2455 = vsel %vm242, %v2444, %v2454
  %v2456 = vrot.slane %v2289, 6
  %v2457 = vsel %vm242, %v2446, %v2456
  %v2458 = vrot.slane %v2304, 6
  %v2459 = vsel %vm242, %v2448, %v2458
  %v2460 = vrot.slane %v2320, 6
  %v2461 = vsel %vm242, %v2450, %v2460
  %v2462 = vrot.slane %v2337, 6
  %v2463 = vsel %vm242, %v2452, %v2462
  %v2464 = vrot.slane %v2266, 6
  %v2465 = vsel %vm242, %v2454, %v2464
  %v2466 = vrot.slane %v2291, 6
  %v2467 = vsel %vm242, %v2456, %v2466
  %v2468 = vrot.slane %v2306, 6
  %v2469 = vsel %vm242, %v2458, %v2468
  %v2470 = vrot.slane %v2322, 6
  %v2471 = vsel %vm242, %v2460, %v2470
  %v2472 = vrot.slane %v2339, 6
  %v2473 = vsel %vm242, %v2462, %v2472
  %v2474 = vrot.slane %v2267, 6
  %v2475 = vsel %vm242, %v2464, %v2474
  %v2476 = vrot.slane %v2293, 6
  %v2477 = vsel %vm242, %v2466, %v2476
  %v2478 = vrot.slane %v2308, 6
  %v2479 = vsel %vm242, %v2468, %v2478
  %v2480 = vrot.slane %v2324, 6
  %v2481 = vsel %vm242, %v2470, %v2480
  %v2482 = vrot.slane %v2341, 6
  %v2483 = vsel %vm242, %v2472, %v2482
  %v2484 = vrot.slane %v2268, 6
  %v2485 = vsel %vm242, %v2474, %v2484
  %v2486 = vrot.slane %v2295, 6
  %v2487 = vsel %vm242, %v2476, %v2486
  %v2488 = vrot.slane %v2310, 6
  %v2489 = vsel %vm242, %v2478, %v2488
  %v2490 = vrot.slane %v2326, 6
  %v2491 = vsel %vm242, %v2480, %v2490
  %v2492 = vrot.slane %v2343, 6
  %v2493 = vsel %vm242, %v2482, %v2492
  %v2494 = vrot.slane %v2269, 6
  %v2495 = vsel %vm242, %v2484, %v2494
  %v2496 = vrot.slane %v2297, 6
  %v2497 = vsel %vm242, %v2486, %v2496
  %v2498 = vrot.slane %v2312, 6
  %v2499 = vsel %vm242, %v2488, %v2498
  %v2500 = vrot.slane %v2328, 6
  %v2501 = vsel %vm242, %v2490, %v2500
  %v2502 = vrot.slane %v2345, 6
  %v2503 = vsel %vm242, %v2492, %v2502
  %v2504 = vrot.slane %v2270, 6
  %v2505 = vsel %vm242, %v2494, %v2504
  %v2506 = vrot.slane %v2296, 6
  %v2507 = vsel %vm242, %v2496, %v2506
  %v2508 = vrot.slane %v2311, 6
  %v2509 = vsel %vm242, %v2498, %v2508
  %v2510 = vrot.slane %v2330, 6
  %v2511 = vsel %vm242, %v2500, %v2510
  %v2512 = vrot.slane %v2347, 6
  %v2513 = vsel %vm242, %v2502, %v2512
  %2554 = vmatpush.msra.mxu0 %v2364
  %2555 = vmatpush.msra.mxu0 %v2363
  %2556 = vmatpush.msra.mxu0 %v2362
  %2557 = vmatpush.msra.mxu0 %v2361
  %2558 = vmatpush.msra.mxu0 %v2360
  %2559 = vmatpush.msra.mxu0 %v2359
  %2560 = vmatpush.msra.mxu0 %v2358
  %2561 = vmatpush.msra.mxu0 %v2357
  %2562 = vmatpush.msra.mxu0 %v2356
  %2563 = vmatpush.msra.mxu0 %v2355
  %2564 = vmatpush.msra.mxu0 %v2354
  %2565 = vmatpush.msra.mxu0 %v2353
  %2566 = vmatpush.msra.mxu0 %v2352
  %2567 = vmatpush.msra.mxu0 %v2351
  %2568 = vmatpush.msra.mxu0 %v2350
  %2569 = vmatpush.msra.mxu0 %v2349
  %2570 = vmatmul.f32.gmra.mxu0 %v2431
  %v2571 = vpop.f32.mrf.mxu0
  %v2572 = vadd.f32 0.0, %v2571
  %2573 = vmatmul.f32.gmra.mxu0 %v2445
  %v2574 = vpop.f32.mrf.mxu0
  %v2575 = vadd.f32 0.0, %v2574
  %2576 = vmatmul.f32.gmra.mxu0 %v2455
  %v2577 = vpop.f32.mrf.mxu0
  %v2578 = vadd.f32 0.0, %v2577
  %2579 = vmatmul.f32.gmra.mxu0 %v2465
  %v2580 = vpop.f32.mrf.mxu0
  %v2581 = vadd.f32 0.0, %v2580
  %2582 = vmatmul.f32.gmra.mxu0 %v2475
  %v2583 = vpop.f32.mrf.mxu0
  %v2584 = vadd.f32 0.0, %v2583
  %2585 = vmatmul.f32.gmra.mxu0 %v2485
  %v2586 = vpop.f32.mrf.mxu0
  %v2587 = vadd.f32 0.0, %v2586
  %2588 = vmatmul.f32.gmra.mxu0 %v2495
  %v2589 = vpop.f32.mrf.mxu0
  %v2590 = vadd.f32 0.0, %v2589
  %2591 = vmatmul.f32.gmra.mxu0 %v2505
  %v2592 = vpop.f32.mrf.mxu0
  %v2593 = vadd.f32 0.0, %v2592
  %2594 = vdwg.mxu0
  %2595 = vmatpush.msra.mxu0 %v2380
  %2596 = vmatpush.msra.mxu0 %v2379
  %2597 = vmatpush.msra.mxu0 %v2378
  %2598 = vmatpush.msra.mxu0 %v2377
  %2599 = vmatpush.msra.mxu0 %v2376
  %2600 = vmatpush.msra.mxu0 %v2375
  %2601 = vmatpush.msra.mxu0 %v2374
  %2602 = vmatpush.msra.mxu0 %v2373
  %2603 = vmatpush.msra.mxu0 %v2372
  %2604 = vmatpush.msra.mxu0 %v2371
  %2605 = vmatpush.msra.mxu0 %v2370
  %2606 = vmatpush.msra.mxu0 %v2369
  %2607 = vmatpush.msra.mxu0 %v2368
  %2608 = vmatpush.msra.mxu0 %v2367
  %2609 = vmatpush.msra.mxu0 %v2366
  %2610 = vmatpush.msra.mxu0 %v2365
  %2611 = vmatmul.f32.gmra.mxu0 %v2434
  %v2612 = vpop.f32.mrf.mxu0
  %v2613 = vadd.f32 %v2572, %v2612
  %2614 = vmatmul.f32.gmra.mxu0 %v2447
  %v2615 = vpop.f32.mrf.mxu0
  %v2616 = vadd.f32 %v2575, %v2615
  %2617 = vmatmul.f32.gmra.mxu0 %v2457
  %v2618 = vpop.f32.mrf.mxu0
  %v2619 = vadd.f32 %v2578, %v2618
  %2620 = vmatmul.f32.gmra.mxu0 %v2467
  %v2621 = vpop.f32.mrf.mxu0
  %v2622 = vadd.f32 %v2581, %v2621
  %2623 = vmatmul.f32.gmra.mxu0 %v2477
  %v2624 = vpop.f32.mrf.mxu0
  %v2625 = vadd.f32 %v2584, %v2624
  %2626 = vmatmul.f32.gmra.mxu0 %v2487
  %v2627 = vpop.f32.mrf.mxu0
  %v2628 = vadd.f32 %v2587, %v2627
  %2629 = vmatmul.f32.gmra.mxu0 %v2497
  %v2630 = vpop.f32.mrf.mxu0
  %v2631 = vadd.f32 %v2590, %v2630
  %2632 = vmatmul.f32.gmra.mxu0 %v2507
  %v2633 = vpop.f32.mrf.mxu0
  %v2634 = vadd.f32 %v2593, %v2633
  %2635 = vdwg.mxu0
  %2636 = vmatpush.msra.mxu0 %v2396
  %2637 = vmatpush.msra.mxu0 %v2395
  %2638 = vmatpush.msra.mxu0 %v2394
  %2639 = vmatpush.msra.mxu0 %v2393
  %2640 = vmatpush.msra.mxu0 %v2392
  %2641 = vmatpush.msra.mxu0 %v2391
  %2642 = vmatpush.msra.mxu0 %v2390
  %2643 = vmatpush.msra.mxu0 %v2389
  %2644 = vmatpush.msra.mxu0 %v2388
  %2645 = vmatpush.msra.mxu0 %v2387
  %2646 = vmatpush.msra.mxu0 %v2386
  %2647 = vmatpush.msra.mxu0 %v2385
  %2648 = vmatpush.msra.mxu0 %v2384
  %2649 = vmatpush.msra.mxu0 %v2383
  %2650 = vmatpush.msra.mxu0 %v2382
  %2651 = vmatpush.msra.mxu0 %v2381
  %2652 = vmatmul.f32.gmra.mxu0 %v2437
  %v2653 = vpop.f32.mrf.mxu0
  %v2654 = vadd.f32 %v2613, %v2653
  %2655 = vmatmul.f32.gmra.mxu0 %v2449
  %v2656 = vpop.f32.mrf.mxu0
  %v2657 = vadd.f32 %v2616, %v2656
  %2658 = vmatmul.f32.gmra.mxu0 %v2459
  %v2659 = vpop.f32.mrf.mxu0
  %v2660 = vadd.f32 %v2619, %v2659
  %2661 = vmatmul.f32.gmra.mxu0 %v2469
  %v2662 = vpop.f32.mrf.mxu0
  %v2663 = vadd.f32 %v2622, %v2662
  %2664 = vmatmul.f32.gmra.mxu0 %v2479
  %v2665 = vpop.f32.mrf.mxu0
  %v2666 = vadd.f32 %v2625, %v2665
  %2667 = vmatmul.f32.gmra.mxu0 %v2489
  %v2668 = vpop.f32.mrf.mxu0
  %v2669 = vadd.f32 %v2628, %v2668
  %2670 = vmatmul.f32.gmra.mxu0 %v2499
  %v2671 = vpop.f32.mrf.mxu0
  %v2672 = vadd.f32 %v2631, %v2671
  %2673 = vmatmul.f32.gmra.mxu0 %v2509
  %v2674 = vpop.f32.mrf.mxu0
  %v2675 = vadd.f32 %v2634, %v2674
  %2676 = vdwg.mxu0
  %2677 = vmatpush.msra.mxu0 %v2412
  %2678 = vmatpush.msra.mxu0 %v2411
  %2679 = vmatpush.msra.mxu0 %v2410
  %2680 = vmatpush.msra.mxu0 %v2409
  %2681 = vmatpush.msra.mxu0 %v2408
  %2682 = vmatpush.msra.mxu0 %v2407
  %2683 = vmatpush.msra.mxu0 %v2406
  %2684 = vmatpush.msra.mxu0 %v2405
  %2685 = vmatpush.msra.mxu0 %v2404
  %2686 = vmatpush.msra.mxu0 %v2403
  %2687 = vmatpush.msra.mxu0 %v2402
  %2688 = vmatpush.msra.mxu0 %v2401
  %2689 = vmatpush.msra.mxu0 %v2400
  %2690 = vmatpush.msra.mxu0 %v2399
  %2691 = vmatpush.msra.mxu0 %v2398
  %2692 = vmatpush.msra.mxu0 %v2397
  %2693 = vmatmul.f32.gmra.mxu0 %v2440
  %v2694 = vpop.f32.mrf.mxu0
  %v2695 = vadd.f32 %v2654, %v2694
  %2696 = vmatmul.f32.gmra.mxu0 %v2451
  %v2697 = vpop.f32.mrf.mxu0
  %v2698 = vadd.f32 %v2657, %v2697
  %2699 = vmatmul.f32.gmra.mxu0 %v2461
  %v2700 = vpop.f32.mrf.mxu0
  %v2701 = vadd.f32 %v2660, %v2700
  %2702 = vmatmul.f32.gmra.mxu0 %v2471
  %v2703 = vpop.f32.mrf.mxu0
  %v2704 = vadd.f32 %v2663, %v2703
  %2705 = vmatmul.f32.gmra.mxu0 %v2481
  %v2706 = vpop.f32.mrf.mxu0
  %v2707 = vadd.f32 %v2666, %v2706
  %2708 = vmatmul.f32.gmra.mxu0 %v2491
  %v2709 = vpop.f32.mrf.mxu0
  %v2710 = vadd.f32 %v2669, %v2709
  %2711 = vmatmul.f32.gmra.mxu0 %v2501
  %v2712 = vpop.f32.mrf.mxu0
  %v2713 = vadd.f32 %v2672, %v2712
  %2714 = vmatmul.f32.gmra.mxu0 %v2511
  %v2715 = vpop.f32.mrf.mxu0
  %v2716 = vadd.f32 %v2675, %v2715
  %2717 = vdwg.mxu0
  %2718 = vmatpush.msra.mxu0 %v2428
  %2719 = vmatpush.msra.mxu0 %v2427
  %2720 = vmatpush.msra.mxu0 %v2426
  %2721 = vmatpush.msra.mxu0 %v2425
  %2722 = vmatpush.msra.mxu0 %v2424
  %2723 = vmatpush.msra.mxu0 %v2423
  %2724 = vmatpush.msra.mxu0 %v2422
  %2725 = vmatpush.msra.mxu0 %v2421
  %2726 = vmatpush.msra.mxu0 %v2420
  %2727 = vmatpush.msra.mxu0 %v2419
  %2728 = vmatpush.msra.mxu0 %v2418
  %2729 = vmatpush.msra.mxu0 %v2417
  %2730 = vmatpush.msra.mxu0 %v2416
  %2731 = vmatpush.msra.mxu0 %v2415
  %2732 = vmatpush.msra.mxu0 %v2414
  %2733 = vmatpush.msra.mxu0 %v2413
  %2734 = vmatmul.f32.gmra.mxu0 %v2443
  %v2735 = vpop.f32.mrf.mxu0
  %v2736 = vadd.f32 %v2695, %v2735
  %2737 = vmatmul.f32.gmra.mxu0 %v2453
  %v2738 = vpop.f32.mrf.mxu0
  %v2739 = vadd.f32 %v2698, %v2738
  %2740 = vmatmul.f32.gmra.mxu0 %v2463
  %v2741 = vpop.f32.mrf.mxu0
  %v2742 = vadd.f32 %v2701, %v2741
  %2743 = vmatmul.f32.gmra.mxu0 %v2473
  %v2744 = vpop.f32.mrf.mxu0
  %v2745 = vadd.f32 %v2704, %v2744
  %2746 = vmatmul.f32.gmra.mxu0 %v2483
  %v2747 = vpop.f32.mrf.mxu0
  %v2748 = vadd.f32 %v2707, %v2747
  %2749 = vmatmul.f32.gmra.mxu0 %v2493
  %v2750 = vpop.f32.mrf.mxu0
  %v2751 = vadd.f32 %v2710, %v2750
  %2752 = vmatmul.f32.gmra.mxu0 %v2503
  %v2753 = vpop.f32.mrf.mxu0
  %v2754 = vadd.f32 %v2713, %v2753
  %2755 = vmatmul.f32.gmra.mxu0 %v2513
  %v2756 = vpop.f32.mrf.mxu0
  %v2757 = vadd.f32 %v2716, %v2756
  %2758 = vdwg.mxu0
  %s2759 = scalar_lea.vmem %s2, 4
  %v2760 = vld [vmem:[%s2759] sm:$0x1]
  %v2762 = vperm.slane %v2760, 0
  %v2764 = vmul.f32 %v2736, %v2762
  %v2765 = vmul.f32 %v2739, %v2762
  %v2766 = vmul.f32 %v2742, %v2762
  %v2767 = vmul.f32 %v2745, %v2762
  %v2768 = vmul.f32 %v2748, %v2762
  %v2769 = vmul.f32 %v2751, %v2762
  %v2770 = vmul.f32 %v2754, %v2762
  %v2771 = vmul.f32 %v2757, %v2762
  %s2772 = scalar_lea.vmem %s3, 4
  %v2773 = vld [vmem:[%s2772] sm:$0x1]
  %v2775 = vperm.slane %v2773, 0
  %v2777 = vadd.f32 %v2764, %v2775
  %v2778 = vadd.f32 %v2765, %v2775
  %v2779 = vadd.f32 %v2766, %v2775
  %v2780 = vadd.f32 %v2767, %v2775
  %v2781 = vadd.f32 %v2768, %v2775
  %v2782 = vadd.f32 %v2769, %v2775
  %v2783 = vadd.f32 %v2770, %v2775
  %v2784 = vadd.f32 %v2771, %v2775
  %2785 = vst [vmem:[%s5] sm:$0xff] %v2777
  %2786 = vst [vmem:[%s5 + $0x8] sm:$0xff] %v2778
  %2787 = vst [vmem:[%s5 + $0x10] sm:$0xff] %v2779
  %2788 = vst [vmem:[%s5 + $0x18] sm:$0xff] %v2780
  %2789 = vst [vmem:[%s5 + $0x20] sm:$0xff] %v2781
  %2790 = vst [vmem:[%s5 + $0x28] sm:$0xff] %v2782
  %2791 = vst [vmem:[%s5 + $0x30] sm:$0xff] %v2783
  %2792 = vst [vmem:[%s5 + $0x38] sm:$0xff] %v2784
  // Predicated region
  $region22: #{postnet_forward.1} parent=0 // pred_check
    _
  $region23: #{postnet_forward.1} parent=0 // pred_check_branch
    %2794 = sbr.rel (0) target = $region25
  $region24: #{postnet_forward.1} parent=0 // pred_region
    _
  $region25: #{postnet_forward.1} parent=0 // pred_fallthru
    _
  // Predicated region
  $region26: #{postnet_forward.1} parent=0 // pred_check
    _
  $region27: #{postnet_forward.1} parent=0 // pred_check_branch
    %2796 = sbr.rel (0) target = $region29
  $region28: #{postnet_forward.1} parent=0 // pred_region
    _
  $region29: #{postnet_forward.1} parent=0 // pred_fallthru
    _

</llo_original>
